<compile_context>
chip_gen: v6e
topology: v6e:2x2x1
jax: 0.10.0
libtpu: 0.0.40
codegen_flags: <defaults>
</compile_context>

<pallas_src>
import functools

import jax
import jax.numpy as jnp
import numpy as np
from jax.experimental import pallas as pl
from jax.experimental.pallas import tpu as pltpu


# ----------------------------------------------------------------------------
# helpers
# ----------------------------------------------------------------------------
def _pick_tile(n, cap=1024):
    """Largest multiple of 16 (fallback 8) that divides n, capped at `cap`."""
    cap = min(cap, n)
    for quantum in (16, 8):
        t = (cap // quantum) * quantum
        while t >= quantum:
            if n % t == 0:
                return t
            t -= quantum
    return n  # caller shapes (YOLO feature maps) keep this a multiple of 8


def _round_up(n, m):
    return ((n + m - 1) // m) * m


# ----------------------------------------------------------------------------
# Pallas kernel 1: Detect/Segment head for one pyramid level.
#   One tile = (tm rows of bs*HW) x (Np lanes), Np = round_up(na*no, 128).
#   t    = x @ W + b                       (raw head output, bf16 dense store)
#   dec  = select(cls) of:
#            xy   = (sigmoid(t)*2 + g) * stride      g built from gx/gy columns
#            wh   = (sigmoid(t)*2)^2 * A
#            conf = sigmoid(t)
#            mask = t  (passthrough; also covers the zero padding lanes)
#   Packed constants c_ref (8, Np) f32: row0=bias, row1=A, row2=isx, row3=isy,
#   row4=cls(float).  gxy_ref (tm, 2) f32: per-pixel (x-0.5, y-0.5).
# ----------------------------------------------------------------------------
def _detect_head_kernel(x_ref, w_ref, c_ref, gxy_ref, raw_ref, dec_ref, *, stride):
    bias = c_ref[0:1, :]
    A = c_ref[1:2, :]
    isx = c_ref[2:3, :]
    isy = c_ref[3:4, :]
    clsf = c_ref[4:5, :]

    t = jnp.dot(x_ref[...], w_ref[...],
                preferred_element_type=jnp.float32) + bias
    raw_ref[...] = t.astype(raw_ref.dtype)            # dense bf16 store

    gx = gxy_ref[:, 0:1]                               # (tm, 1)
    gy = gxy_ref[:, 1:2]
    g = gx * isx + gy * isy                            # (tm, Np) via broadcast

    s = jax.nn.sigmoid(t)                              # one sigmoid per tile (EUP)
    xy = (s * 2.0 + g) * stride
    wh = (s * 2.0) ** 2 * A
    dec = jnp.where(clsf == 0.0, xy,
          jnp.where(clsf == 1.0, wh,
          jnp.where(clsf == 2.0, s, t)))
    dec_ref[...] = dec.astype(dec_ref.dtype)           # dense bf16 store


def detect_head_level(x_flat, w_pad, dconst, gxy, *, HW, stride, Np):
    """x_flat: (bs*HW, C) bf16; w_pad: (C, Np) bf16; dconst: (8, Np) f32; gxy: (HW, 2)."""
    rows, C = x_flat.shape
    tm = _pick_tile(HW, cap=1024)
    tiles_per_img = HW // tm
    grid = (rows // tm,)

    if tiles_per_img == 1:
        g_map = lambda i: (0, 0)
    else:
        g_map = lambda i: (i % tiles_per_img, 0)

    raw, dec = pl.pallas_call(
        functools.partial(_detect_head_kernel, stride=float(stride)),
        out_shape=(jax.ShapeDtypeStruct((rows, Np), jnp.bfloat16),
                   jax.ShapeDtypeStruct((rows, Np), jnp.bfloat16)),
        grid=grid,
        in_specs=[
            pl.BlockSpec((tm, C), lambda i: (i, 0)),
            pl.BlockSpec((C, Np), lambda i: (0, 0)),
            pl.BlockSpec((8, Np), lambda i: (0, 0)),
            pl.BlockSpec((tm, 2), g_map),
        ],
        out_specs=(pl.BlockSpec((tm, Np), lambda i: (i, 0)),
                   pl.BlockSpec((tm, Np), lambda i: (i, 0))),
        compiler_params=pltpu.CompilerParams(
            dimension_semantics=("parallel",)),
    )(x_flat, w_pad, dconst, gxy)
    return raw, dec


def make_decode_constants(H, W, na, no, nc, anchors_level, stride, Np, b_row):
    """Trace-time per-lane constants + tiny per-pixel grid columns."""
    nao = na * no
    j = np.arange(Np)
    c = j % no
    a = np.minimum(j // no, na - 1)
    valid = j < nao

    clsf = np.full((Np,), 3.0, np.float32)             # 3 = mask / pad (passthrough)
    clsf[valid & (c < 2)] = 0.0                        # xy
    clsf[valid & (c >= 2) & (c < 4)] = 1.0             # wh
    clsf[valid & (c >= 4) & (c < 5 + nc)] = 2.0        # conf
    isx = (valid & (c == 0)).astype(np.float32)
    isy = (valid & (c == 1)).astype(np.float32)

    awh = np.asarray(anchors_level, np.float32) * float(stride)   # (na, 2)
    A = np.zeros((Np,), np.float32)
    m = valid & (c == 2); A[m] = awh[a[m], 0]
    m = valid & (c == 3); A[m] = awh[a[m], 1]

    ys, xs = np.meshgrid(np.arange(H, dtype=np.float32),
                         np.arange(W, dtype=np.float32), indexing='ij')
    gxy = np.stack([xs.reshape(-1), ys.reshape(-1)], axis=1) - 0.5   # (HW, 2)

    dconst = jnp.zeros((8, Np), jnp.float32)
    dconst = dconst.at[0, :nao].set(b_row.reshape(-1).astype(jnp.float32))
    dconst = dconst.at[1].set(jnp.asarray(A))
    dconst = dconst.at[2].set(jnp.asarray(isx))
    dconst = dconst.at[3].set(jnp.asarray(isy))
    dconst = dconst.at[4].set(jnp.asarray(clsf))
    return jnp.asarray(gxy), dconst


# ----------------------------------------------------------------------------
# Pallas kernel 2: fused 3x3 conv + (folded BN) bias + SiLU, channels-last.
# One grid step = one batch element.  No HBM pad: the 1-pixel halo lives in a
# zero-filled VMEM scratch; the f32 accumulator is a VMEM scratch as well.
# ----------------------------------------------------------------------------
def _conv3x3_silu_kernel(x_ref, w_ref, b_ref, o_ref, pad_ref, acc_ref,
                         *, H, W, C, Cout):
    pad_ref[...] = jnp.zeros_like(pad_ref)                       # zero halo (VMEM only)
    pad_ref[1:H + 1, 1:W + 1, :] = x_ref[0].astype(pad_ref.dtype)
    acc_ref[...] = jnp.zeros_like(acc_ref)
    for k in range(9):                                           # static unroll, dy*3+dx
        dy, dx = divmod(k, 3)
        win = pad_ref[dy:dy + H, dx:dx + W, :].reshape(H * W, C)
        acc_ref[...] += jnp.dot(win, w_ref[k], preferred_element_type=jnp.float32)
    t = acc_ref[...] + b_ref[...]
    t = t * jax.nn.sigmoid(t)                                    # SiLU
    o_ref[0] = t.reshape(H, W, Cout).astype(o_ref.dtype)


def conv_bn_silu_3x3(x_nhwc, w_oihw, b_fold, out_dtype=jnp.bfloat16):
    B, H, W, C = x_nhwc.shape
    Cout = w_oihw.shape[0]
    w9 = jnp.transpose(w_oihw, (2, 3, 1, 0)).reshape(9, C, Cout).astype(jnp.bfloat16)
    b = b_fold.reshape(1, Cout).astype(jnp.float32)
    return pl.pallas_call(
        functools.partial(_conv3x3_silu_kernel, H=H, W=W, C=C, Cout=Cout),
        out_shape=jax.ShapeDtypeStruct((B, H, W, Cout), out_dtype),
        grid=(B,),
        in_specs=[
            pl.BlockSpec((1, H, W, C), lambda b_: (b_, 0, 0, 0)),
            pl.BlockSpec((9, C, Cout), lambda b_: (0, 0, 0)),
            pl.BlockSpec((1, Cout), lambda b_: (0, 0)),
        ],
        out_specs=pl.BlockSpec((1, H, W, Cout), lambda b_: (b_, 0, 0, 0)),
        scratch_shapes=[pltpu.VMEM((H + 2, W + 2, C), jnp.bfloat16),
                        pltpu.VMEM((H * W, Cout), jnp.float32)],
        compiler_params=pltpu.CompilerParams(
            dimension_semantics=("parallel",)),
    )(x_nhwc, w9, b)


# ----------------------------------------------------------------------------
# Pallas kernel 3: row-tiled matmul + bias + SiLU (1x1 conv), lane-dense output.
# ----------------------------------------------------------------------------
def _matmul_bias_act_kernel(x_ref, w_ref, b_ref, o_ref, *, act):
    t = jnp.dot(x_ref[...], w_ref[...],
                preferred_element_type=jnp.float32) + b_ref[...]
    if act:
        t = t * jax.nn.sigmoid(t)
    o_ref[...] = t.astype(o_ref.dtype)


def matmul_bias_act(x2d, w2d, b_row, act=True, out_dtype=jnp.bfloat16):
    N, K = x2d.shape
    Cout = w2d.shape[1]
    tm = _pick_tile(N, cap=1024)
    return pl.pallas_call(
        functools.partial(_matmul_bias_act_kernel, act=act),
        out_shape=jax.ShapeDtypeStruct((N, Cout), out_dtype),
        grid=(N // tm,),
        in_specs=[
            pl.BlockSpec((tm, K), lambda i: (i, 0)),
            pl.BlockSpec((K, Cout), lambda i: (0, 0)),
            pl.BlockSpec((1, Cout), lambda i: (0, 0)),
        ],
        out_specs=pl.BlockSpec((tm, Cout), lambda i: (i, 0)),
        compiler_params=pltpu.CompilerParams(
            dimension_semantics=("parallel",)),
    )(x2d.astype(jnp.bfloat16), w2d.astype(jnp.bfloat16), b_row.astype(jnp.float32))


def conv_bn_silu_1x1(x_nhwc, w_oihw, b_fold, out_dtype=jnp.bfloat16):
    B, H, W, C = x_nhwc.shape
    Cout = w_oihw.shape[0]
    Cp = _round_up(Cout, 128)                          # lane-dense, unmasked stores
    w_mat = jnp.transpose(w_oihw, (2, 3, 1, 0)).reshape(C, Cout)
    w_pad = jnp.zeros((C, Cp), jnp.bfloat16).at[:, :Cout].set(w_mat.astype(jnp.bfloat16))
    b_pad = jnp.zeros((1, Cp), jnp.float32).at[:, :Cout].set(
        b_fold.reshape(1, Cout).astype(jnp.float32))
    out = matmul_bias_act(x_nhwc.reshape(B * H * W, C), w_pad, b_pad,
                          act=True, out_dtype=out_dtype)
    return out[:, :Cout].reshape(B, H, W, Cout)


# ----------------------------------------------------------------------------
# glue
# ----------------------------------------------------------------------------
def fold_bn(w_oihw, gamma, beta, mean, var, eps=1e-3):
    scale = gamma / jnp.sqrt(var + eps)
    return w_oihw * scale[:, None, None, None], beta - mean * scale


def make_grid(nx, ny):
    yv, xv = jnp.meshgrid(jnp.arange(ny, dtype=jnp.float32),
                          jnp.arange(nx, dtype=jnp.float32), indexing='ij')
    return jnp.stack([xv, yv], axis=-1).reshape(ny * nx, 2) - 0.5


def upsample2x_nearest(x_nhwc):
    return jnp.repeat(jnp.repeat(x_nhwc, 2, axis=1), 2, axis=2)


# ----------------------------------------------------------------------------
# Segment forward (eval mode, not export): returns (cat(z,1), p, x_list)
# ----------------------------------------------------------------------------
def segment_forward(x_levels_nchw, det_params, proto_params, anchors, strides,
                    *, na, no, nc, nm):
    anchors_np = np.asarray(anchors, np.float32)

    # --- Proto branch on x[0] ---
    (w1, b1), (w2, b2), (w3, b3) = proto_params
    x0 = jnp.transpose(x_levels_nchw[0], (0, 2, 3, 1)).astype(jnp.bfloat16)  # NCHW->NHWC
    y = conv_bn_silu_3x3(x0, w1, b1, out_dtype=jnp.bfloat16)
    # TODO(synk): fuse this 2x nearest upsample into the consuming 3x3 conv.
    y = upsample2x_nearest(y)
    y = conv_bn_silu_3x3(y, w2, b2, out_dtype=jnp.bfloat16)
    p_nhwc = conv_bn_silu_1x1(y, w3, b3, out_dtype=jnp.bfloat16)
    p = jnp.transpose(p_nhwc, (0, 3, 1, 2)).astype(jnp.float32)              # NCHW f32

    # --- Detect branch ---
    nao = na * no
    Np = _round_up(nao, 128)                            # lane-dense padded width
    z_parts, x_out = [], []
    for i, xl in enumerate(x_levels_nchw):
        B, C, H, W = xl.shape
        HW = H * W
        x_flat = jnp.transpose(xl, (0, 2, 3, 1)).reshape(B * HW, C).astype(jnp.bfloat16)
        w_mat, b_row = det_params[i]                    # (C, na*no), (1, na*no)
        w_pad = jnp.zeros((C, Np), jnp.bfloat16).at[:, :nao].set(
            w_mat.astype(jnp.bfloat16))
        gxy, dconst = make_decode_constants(H, W, na, no, nc, anchors_np[i],
                                            strides[i], Np, b_row)

        raw, dec = detect_head_level(x_flat, w_pad, dconst, gxy,
                                     HW=HW, stride=strides[i], Np=Np)

        # layout plumbing back to PyTorch semantics (bf16 -> cheap XLA pass)
        raw = raw[:, :nao].reshape(B, HW, na, no).transpose(0, 2, 1, 3)
        dec = dec[:, :nao].reshape(B, HW, na, no).transpose(0, 2, 1, 3)
        x_out.append(raw.reshape(B, na, H, W, no).astype(jnp.float32))
        z_parts.append(dec.reshape(B, na * HW, no).astype(jnp.float32))

    z_cat = jnp.concatenate(z_parts, axis=1)
    return z_cat, p, x_out


# ----------------------------------------------------------------------------
# Pure-JAX references (same bf16 operand casting, f32 accumulation) for checks.
# ----------------------------------------------------------------------------
def _ref_conv_silu(x_nhwc, w_oihw, b, pad):
    y = jax.lax.conv_general_dilated(
        x_nhwc.astype(jnp.bfloat16),
        jnp.transpose(w_oihw, (2, 3, 1, 0)).astype(jnp.bfloat16),
        (1, 1), [(pad, pad), (pad, pad)],
        dimension_numbers=('NHWC', 'HWIO', 'NHWC'),
        preferred_element_type=jnp.float32) + b
    return y * jax.nn.sigmoid(y)


def _ref_proto(x_nhwc, proto_params):
    (w1, b1), (w2, b2), (w3, b3) = proto_params
    y = _ref_conv_silu(x_nhwc, w1, b1, pad=1).astype(jnp.bfloat16)
    y = upsample2x_nearest(y)
    y = _ref_conv_silu(y, w2, b2, pad=1).astype(jnp.bfloat16)
    return _ref_conv_silu(y, w3, b3, pad=0)


def _ref_detect_level(x_flat, w_mat, b_row, gxy, awh, na, no, nc, stride):
    t = jnp.dot(x_flat.astype(jnp.bfloat16), w_mat.astype(jnp.bfloat16),
                preferred_element_type=jnp.float32) + b_row
    B, HW, _ = x_flat.shape
    t = t.reshape(B, HW, na, no).transpose(0, 2, 1, 3)
    xy = (jax.nn.sigmoid(t[..., 0:2]) * 2 + gxy[None, None]) * stride
    wh = (jax.nn.sigmoid(t[..., 2:4]) * 2) ** 2 * awh[None, :, None, :]
    conf = jax.nn.sigmoid(t[..., 4:5 + nc])
    mask = t[..., 5 + nc:]
    return t, jnp.concatenate([xy, wh, conf, mask], axis=-1)


# ----------------------------------------------------------------------------
if __name__ == "__main__":
    # Small, Segment-consistent configuration.
    nc, nm, npr, na, nl = 3, 4, 8, 3, 2
    no = 5 + nc + nm                        # = 12
    ch = (8, 16)
    bs = 2
    spatial = ((16, 16), (8, 8))
    strides = (8.0, 16.0)
    anchors = jnp.asarray(
        [[10, 13, 16, 30, 33, 23], [30, 61, 62, 45, 59, 119]],
        dtype=jnp.float32).reshape(nl, na, 2)

    key = jax.random.PRNGKey(0)
    ks = jax.random.split(key, 20)

    # Inputs (PyTorch NCHW convention).
    x_levels = [
        jax.random.normal(ks[0], (bs, ch[0], spatial[0][0], spatial[0][1]), jnp.float32),
        jax.random.normal(ks[1], (bs, ch[1], spatial[1][0], spatial[1][1]), jnp.float32),
    ]

    # Detect-head 1x1 convs: nn.Conv2d(ch[i], no*na, 1)  (weight (na*no, C, 1, 1) + bias).
    det_params = []
    for i in range(nl):
        w = jax.random.normal(ks[2 + i], (na * no, ch[i], 1, 1), jnp.float32) \
            * (1.0 / np.sqrt(ch[i]))
        b = jax.random.normal(ks[4 + i], (na * no,), jnp.float32) * 0.1
        det_params.append((w[:, :, 0, 0].T, b.reshape(1, na * no)))  # matmul layout

    # Proto: Conv(ch0, npr, 3) -> up2x -> Conv(npr, npr, 3) -> Conv(npr, nm, 1),
    # each Conv = Conv2d(bias=False) + BN + SiLU; BN folded deterministically.
    def init_proto_conv(kw, kg, kb, cout, cin, k):
        w = jax.random.normal(kw, (cout, cin, k, k), jnp.float32) \
            * (1.0 / np.sqrt(cin * k * k))
        gamma = 1.0 + 0.1 * jax.random.normal(kg, (cout,), jnp.float32)
        beta = 0.1 * jax.random.normal(kb, (cout,), jnp.float32)
        return fold_bn(w, gamma, beta, jnp.zeros((cout,)), jnp.ones((cout,)))

    proto_params = (
        init_proto_conv(ks[6], ks[7], ks[8], npr, ch[0], 3),
        init_proto_conv(ks[9], ks[10], ks[11], npr, npr, 3),
        init_proto_conv(ks[12], ks[13], ks[14], nm, npr, 1),
    )

    # Run the Pallas implementation (eval mode, not export): (cat(z,1), p, x_list).
    z_cat, p, x_out = segment_forward(
        x_levels, det_params, proto_params, anchors, strides,
        na=na, no=no, nc=nc, nm=nm)
    jax.block_until_ready((z_cat, p, x_out))

    # --- sanity check against pure-JAX reference (bf16 output rounding -> 2e-2) ---
    p_ref = jnp.transpose(
        _ref_proto(jnp.transpose(x_levels[0], (0, 2, 3, 1)), proto_params),
        (0, 3, 1, 2))
    np.testing.assert_allclose(np.asarray(p), np.asarray(p_ref), rtol=2e-2, atol=2e-2)

    z_ref_parts = []
    for i, xl in enumerate(x_levels):
        B, C, H, W = xl.shape
        x_flat = jnp.transpose(xl, (0, 2, 3, 1)).reshape(B, H * W, C)
        t_ref, dec_ref = _ref_detect_level(
            x_flat, det_params[i][0], det_params[i][1], make_grid(W, H),
            anchors[i] * strides[i], na, no, nc, strides[i])
        np.testing.assert_allclose(
            np.asarray(x_out[i].reshape(B, na, H * W, no)), np.asarray(t_ref),
            rtol=2e-2, atol=2e-2)
        z_ref_parts.append(dec_ref.reshape(B, na * H * W, no))
    np.testing.assert_allclose(
        np.asarray(z_cat), np.asarray(jnp.concatenate(z_ref_parts, axis=1)),
        rtol=2e-2, atol=2e-2)

    assert z_cat.shape == (bs, na * (16 * 16 + 8 * 8), no)
    assert p.shape == (bs, nm, 32, 32)
    assert x_out[0].shape == (bs, na, 16, 16, no) and x_out[1].shape == (bs, na, 8, 8, no)

    print("KERNEL_OK")
</pallas_src>

<mosaic_0001>
module attributes {stable_mosaic.version = 11 : i64} {
  func.func @_conv3x3_silu_kernel(%arg0: i32, %arg1: memref<1x16x16x8xbf16, #tpu.memory_space<vmem>>, %arg2: memref<9x8x8xbf16, #tpu.memory_space<vmem>>, %arg3: memref<1x8xf32, #tpu.memory_space<vmem>>, %arg4: memref<1x16x16x8xbf16, #tpu.memory_space<vmem>>, %arg5: memref<18x18x8xbf16, #tpu.memory_space<vmem>>, %arg6: memref<256x8xf32, #tpu.memory_space<vmem>>) attributes {dimension_semantics = [#tpu.dimension_semantics<parallel>], iteration_bounds = array<i64: 2>, scalar_prefetch = 0 : i64, scratch_operands = 2 : i64, tpu.core_type = #tpu.core_type<tc>, window_params = [{transform_indices = @transform_0, window_bounds = array<i64: 1, 16, 16, 8>}, {pipeline_mode = #tpu.pipeline_mode<synchronous>, transform_indices = @transform_1, window_bounds = array<i64: 9, 8, 8>}, {pipeline_mode = #tpu.pipeline_mode<synchronous>, transform_indices = @transform_2, window_bounds = array<i64: 1, 8>}, {transform_indices = @transform_3, window_bounds = array<i64: 1, 16, 16, 8>}]} {
    %cst = arith.constant 0.000000e+00 : bf16
    %0 = vector.broadcast %cst : bf16 to vector<18x18x8xbf16>
    %c0 = arith.constant 0 : index
    %c0_0 = arith.constant 0 : index
    %c0_1 = arith.constant 0 : index
    %1 = vector.load %arg5[%c0, %c0_0, %c0_1] : memref<18x18x8xbf16, #tpu.memory_space<vmem>>, vector<18x18x8xbf16>
    tpu.vector_store %arg5[%c0, %c0_0, %c0_1], %0 {strides = array<i32>} : memref<18x18x8xbf16, #tpu.memory_space<vmem>>, vector<18x18x8xbf16>,
    %c0_2 = arith.constant 0 : index
    %c0_3 = arith.constant 0 : index
    %c0_4 = arith.constant 0 : index
    %c0_5 = arith.constant 0 : index
    %2 = vector.load %arg1[%c0_2, %c0_3, %c0_4, %c0_5] : memref<1x16x16x8xbf16, #tpu.memory_space<vmem>>, vector<1x16x16x8xbf16>
    %3 = vector.shape_cast %2 : vector<1x16x16x8xbf16> to vector<16x16x8xbf16>
    %c1 = arith.constant 1 : index
    %c1_6 = arith.constant 1 : index
    %c0_7 = arith.constant 0 : index
    %4 = vector.load %arg5[%c1, %c1_6, %c0_7] : memref<18x18x8xbf16, #tpu.memory_space<vmem>>, vector<16x16x8xbf16>
    tpu.vector_store %arg5[%c1, %c1_6, %c0_7], %3 {strides = array<i32>} : memref<18x18x8xbf16, #tpu.memory_space<vmem>>, vector<16x16x8xbf16>,
    %cst_8 = arith.constant 0.000000e+00 : f32
    %5 = vector.broadcast %cst_8 : f32 to vector<256x8xf32>
    %c0_9 = arith.constant 0 : index
    %c0_10 = arith.constant 0 : index
    %6 = vector.load %arg6[%c0_9, %c0_10] : memref<256x8xf32, #tpu.memory_space<vmem>>, vector<256x8xf32>
    tpu.vector_store %arg6[%c0_9, %c0_10], %5 {strides = array<i32>} : memref<256x8xf32, #tpu.memory_space<vmem>>, vector<256x8xf32>,
    %c0_11 = arith.constant 0 : index
    %c0_12 = arith.constant 0 : index
    %c0_13 = arith.constant 0 : index
    %7 = vector.load %arg5[%c0_11, %c0_12, %c0_13] : memref<18x18x8xbf16, #tpu.memory_space<vmem>>, vector<16x16x8xbf16>
    %8 = vector.shape_cast %7 : vector<16x16x8xbf16> to vector<256x8xbf16>
    %c0_14 = arith.constant 0 : index
    %c0_15 = arith.constant 0 : index
    %9 = vector.load %arg6[%c0_14, %c0_15] : memref<256x8xf32, #tpu.memory_space<vmem>>, vector<256x8xf32>
    %c0_16 = arith.constant 0 : index
    %c0_17 = arith.constant 0 : index
    %c0_18 = arith.constant 0 : index
    %10 = vector.load %arg2[%c0_16, %c0_17, %c0_18] : memref<9x8x8xbf16, #tpu.memory_space<vmem>>, vector<1x8x8xbf16>
    %11 = vector.shape_cast %10 : vector<1x8x8xbf16> to vector<8x8xbf16>
    %cst_19 = arith.constant dense<0.000000e+00> : vector<256x8xf32>
    %12 = tpu.matmul %8, %11, %cst_19 {dimension_numbers = #tpu.dot_dimension_numbers<[1], [0], [0], [1], [0, 0, 1, 1], [], []>} : vector<256x8xbf16>, vector<8x8xbf16>, vector<256x8xf32> -> vector<256x8xf32>
    %13 = arith.addf %9, %12 : vector<256x8xf32>
    %c0_20 = arith.constant 0 : index
    %c0_21 = arith.constant 0 : index
    %14 = vector.load %arg6[%c0_20, %c0_21] : memref<256x8xf32, #tpu.memory_space<vmem>>, vector<256x8xf32>
    tpu.vector_store %arg6[%c0_20, %c0_21], %13 {strides = array<i32>} : memref<256x8xf32, #tpu.memory_space<vmem>>, vector<256x8xf32>,
    %c0_22 = arith.constant 0 : index
    %c1_23 = arith.constant 1 : index
    %c0_24 = arith.constant 0 : index
    %15 = vector.load %arg5[%c0_22, %c1_23, %c0_24] : memref<18x18x8xbf16, #tpu.memory_space<vmem>>, vector<16x16x8xbf16>
    %16 = vector.shape_cast %15 : vector<16x16x8xbf16> to vector<256x8xbf16>
    %c0_25 = arith.constant 0 : index
    %c0_26 = arith.constant 0 : index
    %17 = vector.load %arg6[%c0_25, %c0_26] : memref<256x8xf32, #tpu.memory_space<vmem>>, vector<256x8xf32>
    %c1_27 = arith.constant 1 : index
    %c0_28 = arith.constant 0 : index
    %c0_29 = arith.constant 0 : index
    %18 = vector.load %arg2[%c1_27, %c0_28, %c0_29] : memref<9x8x8xbf16, #tpu.memory_space<vmem>>, vector<1x8x8xbf16>
    %19 = vector.shape_cast %18 : vector<1x8x8xbf16> to vector<8x8xbf16>
    %cst_30 = arith.constant dense<0.000000e+00> : vector<256x8xf32>
    %20 = tpu.matmul %16, %19, %cst_30 {dimension_numbers = #tpu.dot_dimension_numbers<[1], [0], [0], [1], [0, 0, 1, 1], [], []>} : vector<256x8xbf16>, vector<8x8xbf16>, vector<256x8xf32> -> vector<256x8xf32>
    %21 = arith.addf %17, %20 : vector<256x8xf32>
    %c0_31 = arith.constant 0 : index
    %c0_32 = arith.constant 0 : index
    %22 = vector.load %arg6[%c0_31, %c0_32] : memref<256x8xf32, #tpu.memory_space<vmem>>, vector<256x8xf32>
    tpu.vector_store %arg6[%c0_31, %c0_32], %21 {strides = array<i32>} : memref<256x8xf32, #tpu.memory_space<vmem>>, vector<256x8xf32>,
    %c0_33 = arith.constant 0 : index
    %c2 = arith.constant 2 : index
    %c0_34 = arith.constant 0 : index
    %23 = vector.load %arg5[%c0_33, %c2, %c0_34] : memref<18x18x8xbf16, #tpu.memory_space<vmem>>, vector<16x16x8xbf16>
    %24 = vector.shape_cast %23 : vector<16x16x8xbf16> to vector<256x8xbf16>
    %c0_35 = arith.constant 0 : index
    %c0_36 = arith.constant 0 : index
    %25 = vector.load %arg6[%c0_35, %c0_36] : memref<256x8xf32, #tpu.memory_space<vmem>>, vector<256x8xf32>
    %c2_37 = arith.constant 2 : index
    %c0_38 = arith.constant 0 : index
    %c0_39 = arith.constant 0 : index
    %26 = vector.load %arg2[%c2_37, %c0_38, %c0_39] : memref<9x8x8xbf16, #tpu.memory_space<vmem>>, vector<1x8x8xbf16>
    %27 = vector.shape_cast %26 : vector<1x8x8xbf16> to vector<8x8xbf16>
    %cst_40 = arith.constant dense<0.000000e+00> : vector<256x8xf32>
    %28 = tpu.matmul %24, %27, %cst_40 {dimension_numbers = #tpu.dot_dimension_numbers<[1], [0], [0], [1], [0, 0, 1, 1], [], []>} : vector<256x8xbf16>, vector<8x8xbf16>, vector<256x8xf32> -> vector<256x8xf32>
    %29 = arith.addf %25, %28 : vector<256x8xf32>
    %c0_41 = arith.constant 0 : index
    %c0_42 = arith.constant 0 : index
    %30 = vector.load %arg6[%c0_41, %c0_42] : memref<256x8xf32, #tpu.memory_space<vmem>>, vector<256x8xf32>
    tpu.vector_store %arg6[%c0_41, %c0_42], %29 {strides = array<i32>} : memref<256x8xf32, #tpu.memory_space<vmem>>, vector<256x8xf32>,
    %c1_43 = arith.constant 1 : index
    %c0_44 = arith.constant 0 : index
    %c0_45 = arith.constant 0 : index
    %31 = vector.load %arg5[%c1_43, %c0_44, %c0_45] : memref<18x18x8xbf16, #tpu.memory_space<vmem>>, vector<16x16x8xbf16>
    %32 = vector.shape_cast %31 : vector<16x16x8xbf16> to vector<256x8xbf16>
    %c0_46 = arith.constant 0 : index
    %c0_47 = arith.constant 0 : index
    %33 = vector.load %arg6[%c0_46, %c0_47] : memref<256x8xf32, #tpu.memory_space<vmem>>, vector<256x8xf32>
    %c3 = arith.constant 3 : index
    %c0_48 = arith.constant 0 : index
    %c0_49 = arith.constant 0 : index
    %34 = vector.load %arg2[%c3, %c0_48, %c0_49] : memref<9x8x8xbf16, #tpu.memory_space<vmem>>, vector<1x8x8xbf16>
    %35 = vector.shape_cast %34 : vector<1x8x8xbf16> to vector<8x8xbf16>
    %cst_50 = arith.constant dense<0.000000e+00> : vector<256x8xf32>
    %36 = tpu.matmul %32, %35, %cst_50 {dimension_numbers = #tpu.dot_dimension_numbers<[1], [0], [0], [1], [0, 0, 1, 1], [], []>} : vector<256x8xbf16>, vector<8x8xbf16>, vector<256x8xf32> -> vector<256x8xf32>
    %37 = arith.addf %33, %36 : vector<256x8xf32>
    %c0_51 = arith.constant 0 : index
    %c0_52 = arith.constant 0 : index
    %38 = vector.load %arg6[%c0_51, %c0_52] : memref<256x8xf32, #tpu.memory_space<vmem>>, vector<256x8xf32>
    tpu.vector_store %arg6[%c0_51, %c0_52], %37 {strides = array<i32>} : memref<256x8xf32, #tpu.memory_space<vmem>>, vector<256x8xf32>,
    %c1_53 = arith.constant 1 : index
    %c1_54 = arith.constant 1 : index
    %c0_55 = arith.constant 0 : index
    %39 = vector.load %arg5[%c1_53, %c1_54, %c0_55] : memref<18x18x8xbf16, #tpu.memory_space<vmem>>, vector<16x16x8xbf16>
    %40 = vector.shape_cast %39 : vector<16x16x8xbf16> to vector<256x8xbf16>
    %c0_56 = arith.constant 0 : index
    %c0_57 = arith.constant 0 : index
    %41 = vector.load %arg6[%c0_56, %c0_57] : memref<256x8xf32, #tpu.memory_space<vmem>>, vector<256x8xf32>
    %c4 = arith.constant 4 : index
    %c0_58 = arith.constant 0 : index
    %c0_59 = arith.constant 0 : index
    %42 = vector.load %arg2[%c4, %c0_58, %c0_59] : memref<9x8x8xbf16, #tpu.memory_space<vmem>>, vector<1x8x8xbf16>
    %43 = vector.shape_cast %42 : vector<1x8x8xbf16> to vector<8x8xbf16>
    %cst_60 = arith.constant dense<0.000000e+00> : vector<256x8xf32>
    %44 = tpu.matmul %40, %43, %cst_60 {dimension_numbers = #tpu.dot_dimension_numbers<[1], [0], [0], [1], [0, 0, 1, 1], [], []>} : vector<256x8xbf16>, vector<8x8xbf16>, vector<256x8xf32> -> vector<256x8xf32>
    %45 = arith.addf %41, %44 : vector<256x8xf32>
    %c0_61 = arith.constant 0 : index
    %c0_62 = arith.constant 0 : index
    %46 = vector.load %arg6[%c0_61, %c0_62] : memref<256x8xf32, #tpu.memory_space<vmem>>, vector<256x8xf32>
    tpu.vector_store %arg6[%c0_61, %c0_62], %45 {strides = array<i32>} : memref<256x8xf32, #tpu.memory_space<vmem>>, vector<256x8xf32>,
    %c1_63 = arith.constant 1 : index
    %c2_64 = arith.constant 2 : index
    %c0_65 = arith.constant 0 : index
    %47 = vector.load %arg5[%c1_63, %c2_64, %c0_65] : memref<18x18x8xbf16, #tpu.memory_space<vmem>>, vector<16x16x8xbf16>
    %48 = vector.shape_cast %47 : vector<16x16x8xbf16> to vector<256x8xbf16>
    %c0_66 = arith.constant 0 : index
    %c0_67 = arith.constant 0 : index
    %49 = vector.load %arg6[%c0_66, %c0_67] : memref<256x8xf32, #tpu.memory_space<vmem>>, vector<256x8xf32>
    %c5 = arith.constant 5 : index
    %c0_68 = arith.constant 0 : index
    %c0_69 = arith.constant 0 : index
    %50 = vector.load %arg2[%c5, %c0_68, %c0_69] : memref<9x8x8xbf16, #tpu.memory_space<vmem>>, vector<1x8x8xbf16>
    %51 = vector.shape_cast %50 : vector<1x8x8xbf16> to vector<8x8xbf16>
    %cst_70 = arith.constant dense<0.000000e+00> : vector<256x8xf32>
    %52 = tpu.matmul %48, %51, %cst_70 {dimension_numbers = #tpu.dot_dimension_numbers<[1], [0], [0], [1], [0, 0, 1, 1], [], []>} : vector<256x8xbf16>, vector<8x8xbf16>, vector<256x8xf32> -> vector<256x8xf32>
    %53 = arith.addf %49, %52 : vector<256x8xf32>
    %c0_71 = arith.constant 0 : index
    %c0_72 = arith.constant 0 : index
    %54 = vector.load %arg6[%c0_71, %c0_72] : memref<256x8xf32, #tpu.memory_space<vmem>>, vector<256x8xf32>
    tpu.vector_store %arg6[%c0_71, %c0_72], %53 {strides = array<i32>} : memref<256x8xf32, #tpu.memory_space<vmem>>, vector<256x8xf32>,
    %c2_73 = arith.constant 2 : index
    %c0_74 = arith.constant 0 : index
    %c0_75 = arith.constant 0 : index
    %55 = vector.load %arg5[%c2_73, %c0_74, %c0_75] : memref<18x18x8xbf16, #tpu.memory_space<vmem>>, vector<16x16x8xbf16>
    %56 = vector.shape_cast %55 : vector<16x16x8xbf16> to vector<256x8xbf16>
    %c0_76 = arith.constant 0 : index
    %c0_77 = arith.constant 0 : index
    %57 = vector.load %arg6[%c0_76, %c0_77] : memref<256x8xf32, #tpu.memory_space<vmem>>, vector<256x8xf32>
    %c6 = arith.constant 6 : index
    %c0_78 = arith.constant 0 : index
    %c0_79 = arith.constant 0 : index
    %58 = vector.load %arg2[%c6, %c0_78, %c0_79] : memref<9x8x8xbf16, #tpu.memory_space<vmem>>, vector<1x8x8xbf16>
    %59 = vector.shape_cast %58 : vector<1x8x8xbf16> to vector<8x8xbf16>
    %cst_80 = arith.constant dense<0.000000e+00> : vector<256x8xf32>
    %60 = tpu.matmul %56, %59, %cst_80 {dimension_numbers = #tpu.dot_dimension_numbers<[1], [0], [0], [1], [0, 0, 1, 1], [], []>} : vector<256x8xbf16>, vector<8x8xbf16>, vector<256x8xf32> -> vector<256x8xf32>
    %61 = arith.addf %57, %60 : vector<256x8xf32>
    %c0_81 = arith.constant 0 : index
    %c0_82 = arith.constant 0 : index
    %62 = vector.load %arg6[%c0_81, %c0_82] : memref<256x8xf32, #tpu.memory_space<vmem>>, vector<256x8xf32>
    tpu.vector_store %arg6[%c0_81, %c0_82], %61 {strides = array<i32>} : memref<256x8xf32, #tpu.memory_space<vmem>>, vector<256x8xf32>,
    %c2_83 = arith.constant 2 : index
    %c1_84 = arith.constant 1 : index
    %c0_85 = arith.constant 0 : index
    %63 = vector.load %arg5[%c2_83, %c1_84, %c0_85] : memref<18x18x8xbf16, #tpu.memory_space<vmem>>, vector<16x16x8xbf16>
    %64 = vector.shape_cast %63 : vector<16x16x8xbf16> to vector<256x8xbf16>
    %c0_86 = arith.constant 0 : index
    %c0_87 = arith.constant 0 : index
    %65 = vector.load %arg6[%c0_86, %c0_87] : memref<256x8xf32, #tpu.memory_space<vmem>>, vector<256x8xf32>
    %c7 = arith.constant 7 : index
    %c0_88 = arith.constant 0 : index
    %c0_89 = arith.constant 0 : index
    %66 = vector.load %arg2[%c7, %c0_88, %c0_89] : memref<9x8x8xbf16, #tpu.memory_space<vmem>>, vector<1x8x8xbf16>
    %67 = vector.shape_cast %66 : vector<1x8x8xbf16> to vector<8x8xbf16>
    %cst_90 = arith.constant dense<0.000000e+00> : vector<256x8xf32>
    %68 = tpu.matmul %64, %67, %cst_90 {dimension_numbers = #tpu.dot_dimension_numbers<[1], [0], [0], [1], [0, 0, 1, 1], [], []>} : vector<256x8xbf16>, vector<8x8xbf16>, vector<256x8xf32> -> vector<256x8xf32>
    %69 = arith.addf %65, %68 : vector<256x8xf32>
    %c0_91 = arith.constant 0 : index
    %c0_92 = arith.constant 0 : index
    %70 = vector.load %arg6[%c0_91, %c0_92] : memref<256x8xf32, #tpu.memory_space<vmem>>, vector<256x8xf32>
    tpu.vector_store %arg6[%c0_91, %c0_92], %69 {strides = array<i32>} : memref<256x8xf32, #tpu.memory_space<vmem>>, vector<256x8xf32>,
    %c2_93 = arith.constant 2 : index
    %c2_94 = arith.constant 2 : index
    %c0_95 = arith.constant 0 : index
    %71 = vector.load %arg5[%c2_93, %c2_94, %c0_95] : memref<18x18x8xbf16, #tpu.memory_space<vmem>>, vector<16x16x8xbf16>
    %72 = vector.shape_cast %71 : vector<16x16x8xbf16> to vector<256x8xbf16>
    %c0_96 = arith.constant 0 : index
    %c0_97 = arith.constant 0 : index
    %73 = vector.load %arg6[%c0_96, %c0_97] : memref<256x8xf32, #tpu.memory_space<vmem>>, vector<256x8xf32>
    %c8 = arith.constant 8 : index
    %c0_98 = arith.constant 0 : index
    %c0_99 = arith.constant 0 : index
    %74 = vector.load %arg2[%c8, %c0_98, %c0_99] : memref<9x8x8xbf16, #tpu.memory_space<vmem>>, vector<1x8x8xbf16>
    %75 = vector.shape_cast %74 : vector<1x8x8xbf16> to vector<8x8xbf16>
    %cst_100 = arith.constant dense<0.000000e+00> : vector<256x8xf32>
    %76 = tpu.matmul %72, %75, %cst_100 {dimension_numbers = #tpu.dot_dimension_numbers<[1], [0], [0], [1], [0, 0, 1, 1], [], []>} : vector<256x8xbf16>, vector<8x8xbf16>, vector<256x8xf32> -> vector<256x8xf32>
    %77 = arith.addf %73, %76 : vector<256x8xf32>
    %c0_101 = arith.constant 0 : index
    %c0_102 = arith.constant 0 : index
    %78 = vector.load %arg6[%c0_101, %c0_102] : memref<256x8xf32, #tpu.memory_space<vmem>>, vector<256x8xf32>
    tpu.vector_store %arg6[%c0_101, %c0_102], %77 {strides = array<i32>} : memref<256x8xf32, #tpu.memory_space<vmem>>, vector<256x8xf32>,
    %c0_103 = arith.constant 0 : index
    %c0_104 = arith.constant 0 : index
    %79 = vector.load %arg6[%c0_103, %c0_104] : memref<256x8xf32, #tpu.memory_space<vmem>>, vector<256x8xf32>
    %c0_105 = arith.constant 0 : index
    %c0_106 = arith.constant 0 : index
    %80 = vector.load %arg3[%c0_105, %c0_106] : memref<1x8xf32, #tpu.memory_space<vmem>>, vector<1x8xf32>
    %81 = vector.broadcast %80 : vector<1x8xf32> to vector<256x8xf32>
    %82 = arith.addf %79, %81 : vector<256x8xf32>
    %83 = arith.negf %82 : vector<256x8xf32>
    %84 = math.exp %83 : vector<256x8xf32>
    %cst_107 = arith.constant 1.000000e+00 : f32
    %85 = vector.broadcast %cst_107 : f32 to vector<256x8xf32>
    %86 = arith.addf %85, %84 : vector<256x8xf32>
    %87 = arith.divf %85, %86 : vector<256x8xf32>
    %88 = arith.mulf %82, %87 : vector<256x8xf32>
    %89 = vector.shape_cast %88 : vector<256x8xf32> to vector<16x16x8xf32>
    %90 = arith.truncf %89 : vector<16x16x8xf32> to vector<16x16x8xbf16>
    %c0_108 = arith.constant 0 : index
    %c0_109 = arith.constant 0 : index
    %c0_110 = arith.constant 0 : index
    %c0_111 = arith.constant 0 : index
    %91 = vector.load %arg4[%c0_108, %c0_109, %c0_110, %c0_111] : memref<1x16x16x8xbf16, #tpu.memory_space<vmem>>, vector<1x16x16x8xbf16>
    %92 = vector.shape_cast %91 : vector<1x16x16x8xbf16> to vector<16x16x8xbf16>
    %93 = vector.shape_cast %90 : vector<16x16x8xbf16> to vector<1x16x16x8xbf16>
    tpu.vector_store %arg4[%c0_108, %c0_109, %c0_110, %c0_111], %93 {strides = array<i32>} : memref<1x16x16x8xbf16, #tpu.memory_space<vmem>>, vector<1x16x16x8xbf16>,
    return
  }
  func.func @transform_0(%arg0: i32) -> (i32, i32, i32, i32) {
    %c0_i32 = arith.constant 0 : i32
    %c0_i32_0 = arith.constant 0 : i32
    %c0_i32_1 = arith.constant 0 : i32
    %c0_i32_2 = arith.constant 0 : i32
    return %arg0, %c0_i32, %c0_i32_0, %c0_i32_1 : i32, i32, i32, i32
  }
  func.func @transform_1(%arg0: i32) -> (i32, i32, i32) {
    %c0_i32 = arith.constant 0 : i32
    %c0_i32_0 = arith.constant 0 : i32
    %c0_i32_1 = arith.constant 0 : i32
    %c0_i32_2 = arith.constant 0 : i32
    return %c0_i32, %c0_i32_0, %c0_i32_1 : i32, i32, i32
  }
  func.func @transform_2(%arg0: i32) -> (i32, i32) {
    %c0_i32 = arith.constant 0 : i32
    %c0_i32_0 = arith.constant 0 : i32
    %c0_i32_1 = arith.constant 0 : i32
    return %c0_i32, %c0_i32_0 : i32, i32
  }
  func.func @transform_3(%arg0: i32) -> (i32, i32, i32, i32) {
    %c0_i32 = arith.constant 0 : i32
    %c0_i32_0 = arith.constant 0 : i32
    %c0_i32_1 = arith.constant 0 : i32
    %c0_i32_2 = arith.constant 0 : i32
    return %arg0, %c0_i32, %c0_i32_0, %c0_i32_1 : i32, i32, i32, i32
  }
}

</mosaic_0001>

<llo_original>
// kernel: tpu_custom_call.1
$region0: #{tpu_custom_call.1}
  #allocation0 [shape = 'u32[]', space=smem, size = 0x4, offset = 0x4, fixed_abs, tag = 'smem constant byte address 0x4 - core index']
  #allocation1 [shape = 'u32[144,128]{1,0:T(1,128)}', space=vmem, size = 0x12000, scoped, tag = 'internal scratch']
  #allocation2 [shape = 'bf16[18,18,8]{2,1,0:T(8,128)(2,1)}', space=vmem, size = 0x1b000, scoped, tag = 'scratch operand']
  #allocation3 [shape = 'f32[256,8]{1,0:T(8,128)}', space=vmem, size = 0x20000, scoped, tag = 'scratch operand']
  %s0 = inlined_call_operand.vmem [shape: bf16[2,16,16,8], index: 0, kind: input, shape index: {}]
  %s1 = inlined_call_operand.vmem [shape: bf16[9,8,8], index: 1, kind: input, shape index: {}]
  %s2 = inlined_call_operand.vmem [shape: f32[1,8], index: 2, kind: input, shape index: {}]
  %s3 = inlined_call_operand.vmem [shape: bf16[2,16,16,8], index: 3, kind: output, shape index: {}]
  %s4 = sld [smem:[#allocation0]]
  $region45: #{tpu_custom_call.1} parent=0
    _
  %s6 = ssub.s32 1, %s4
  %s7 = scalar_select 0, %s6, %s4
  loop: start=0, step=1, limit=4
  $region2: #{tpu_custom_call.1} parent=0 // loop_pre_header
    _
  $region3: #{tpu_custom_call.1} parent=0 // loop_header
    %s9 = sphi 0, %s13
    %p10 = scmp.ge.s32.totalorder %s9, 4
    %s19 = sphi 0, %s21
    %s22 = sphi 0, %s19
    %s23 = sphi 0, %s22
    %s39 = sphi 0, %s23
    %s43 = sphi 0, %s43
    %s45 = sphi 0, %s43
    %s46 = sphi 0, %s45
    %s60 = sphi 0, %s46
    %s64 = sphi 0, %s64
    %s66 = sphi 0, %s64
    %s67 = sphi 0, %s66
    %s81 = sphi 0, %s67
    %s87 = sphi 0, %s89
    %s90 = sphi 0, %s87
    %s91 = sphi 0, %s90
    %s107 = sphi 0, %s91
  $region4: #{tpu_custom_call.1} parent=0 // loop_header_branch
    %12 = sbr.rel (%p10) target = $region8
  $region5: #{tpu_custom_call.1} parent=0 // loop_body
    %s14 = ssub.s32 %s9, 1
    %s15 = ssub.s32 %s9, 2
    %s16 = sadd.s32 %s9, 1
    %s17 = ssub.s32 %s9, %s16
    %p18 = scmp.eq.s32.totalorder %s17, 0
    %s20 = sadd.s32 %s19, 1
    %s21 = scalar_select %p18, %s19, %s20
    %p24 = pneg %p18
    %p25 = scmp.eq.s32.totalorder %s9, 1
    %p26 = por %p24, %p25
    %p27 = scmp.ne.s32.totalorder %s19, %s22
    %p28 = scmp.eq.s32.totalorder %s9, 0
    %p29 = por %p27, %p28
    %p30 = scmp.ne.s32.totalorder %s19, %s22
    %p31 = scmp.eq.s32.totalorder %s14, 1
    %p32 = por %p30, %p31
    %p33 = scmp.ne.s32.totalorder %s22, %s23
    %p34 = scmp.eq.s32.totalorder %s14, 0
    %p35 = por %p33, %p34
    %p36 = scmp.ne.s32.totalorder %s22, %s23
    %p37 = scmp.eq.s32.totalorder %s15, 1
    %p38 = por %p36, %p37
    %p40 = scmp.ne.s32.totalorder %s23, %s39
    %p41 = scmp.eq.s32.totalorder %s15, 0
    %p42 = por %p40, %p41
    %s44 = sadd.s32 %s43, 1
    %p47 = scmp.eq.s32.totalorder %s9, 1
    %p48 = scmp.ne.s32.totalorder %s43, %s45
    %p49 = scmp.eq.s32.totalorder %s9, 0
    %p50 = por %p48, %p49
    %p51 = scmp.ne.s32.totalorder %s43, %s45
    %p52 = scmp.eq.s32.totalorder %s14, 1
    %p53 = por %p51, %p52
    %p54 = scmp.ne.s32.totalorder %s45, %s46
    %p55 = scmp.eq.s32.totalorder %s14, 0
    %p56 = por %p54, %p55
    %p57 = scmp.ne.s32.totalorder %s45, %s46
    %p58 = scmp.eq.s32.totalorder %s15, 1
    %p59 = por %p57, %p58
    %p61 = scmp.ne.s32.totalorder %s46, %s60
    %p62 = scmp.eq.s32.totalorder %s15, 0
    %p63 = por %p61, %p62
    %s65 = sadd.s32 %s64, 1
    %p68 = scmp.eq.s32.totalorder %s9, 1
    %p69 = scmp.ne.s32.totalorder %s64, %s66
    %p70 = scmp.eq.s32.totalorder %s9, 0
    %p71 = por %p69, %p70
    %p72 = scmp.ne.s32.totalorder %s64, %s66
    %p73 = scmp.eq.s32.totalorder %s14, 1
    %p74 = por %p72, %p73
    %p75 = scmp.ne.s32.totalorder %s66, %s67
    %p76 = scmp.eq.s32.totalorder %s14, 0
    %p77 = por %p75, %p76
    %p78 = scmp.ne.s32.totalorder %s66, %s67
    %p79 = scmp.eq.s32.totalorder %s15, 1
    %p80 = por %p78, %p79
    %p82 = scmp.ne.s32.totalorder %s67, %s81
    %p83 = scmp.eq.s32.totalorder %s15, 0
    %p84 = por %p82, %p83
    %s85 = ssub.s32 %s9, %s16
    %p86 = scmp.eq.s32.totalorder %s85, 0
    %s88 = sadd.s32 %s87, 1
    %s89 = scalar_select %p86, %s87, %s88
    %p92 = pneg %p86
    %p93 = scmp.eq.s32.totalorder %s9, 1
    %p94 = por %p92, %p93
    %p95 = scmp.ne.s32.totalorder %s87, %s90
    %p96 = scmp.eq.s32.totalorder %s9, 0
    %p97 = por %p95, %p96
    %p98 = scmp.ne.s32.totalorder %s87, %s90
    %p99 = scmp.eq.s32.totalorder %s14, 1
    %p100 = por %p98, %p99
    %p101 = scmp.ne.s32.totalorder %s90, %s91
    %p102 = scmp.eq.s32.totalorder %s14, 0
    %p103 = por %p101, %p102
    %p104 = scmp.ne.s32.totalorder %s90, %s91
    %p105 = scmp.eq.s32.totalorder %s15, 1
    %p106 = por %p104, %p105
    %p108 = scmp.ne.s32.totalorder %s91, %s107
    %p109 = scmp.eq.s32.totalorder %s15, 0
    %p110 = por %p108, %p109
    %p111 = scmp.le.s32.totalorder 1, %s9
    %p112 = scmp.lt.s32.totalorder %s9, 3
    %p113 = pnand %p111, %p112
    %p114 = pneg %p113
    // Predicated region
    $region9: #{tpu_custom_call.1} parent=5 // pred_check
      _
    $region10: #{tpu_custom_call.1} parent=5 // pred_check_branch
      %116 = sbr.rel (%p113) target = $region12
    $region11: #{tpu_custom_call.1} parent=5 // pred_region
      %s117 = ssub.s32 %s9, 1
      // Predicated region
      $region13: #{tpu_custom_call.1} parent=11 // pred_check
        %p118 = pneg %p56
      $region14: #{tpu_custom_call.1} parent=11 // pred_check_branch
        %120 = sbr.rel (%p118) target = $region16
      $region15: #{tpu_custom_call.1} parent=11 // pred_region
        _
      $region16: #{tpu_custom_call.1} parent=11 // pred_fallthru
        _
      // Predicated region
      $region17: #{tpu_custom_call.1} parent=11 // pred_check
        %p121 = pneg %p77
      $region18: #{tpu_custom_call.1} parent=11 // pred_check_branch
        %123 = sbr.rel (%p121) target = $region20
      $region19: #{tpu_custom_call.1} parent=11 // pred_region
        _
      $region20: #{tpu_custom_call.1} parent=11 // pred_fallthru
        _
    $region12: #{tpu_custom_call.1} parent=5 // pred_fallthru
      _
    %p124 = scmp.lt.s32.totalorder %s9, 2
    // Predicated region
    $region21: #{tpu_custom_call.1} parent=5 // pred_check
      %p125 = pneg %p124
    $region22: #{tpu_custom_call.1} parent=5 // pred_check_branch
      %127 = sbr.rel (%p125) target = $region24
    $region23: #{tpu_custom_call.1} parent=5 // pred_region
      // Predicated region
      $region25: #{tpu_custom_call.1} parent=23 // pred_check
        %p128 = pneg %p29
      $region26: #{tpu_custom_call.1} parent=23 // pred_check_branch
        %130 = sbr.rel (%p128) target = $region28
      $region27: #{tpu_custom_call.1} parent=23 // pred_region
        %p131 = scmp.lt.s32.totalorder %s9, 1
        %s132 = scalar_select %p131, %s9, 1
        %s133 = smul.addr %s132, 32
        %s134 = smul.addr %s133, 4
        %s135 = scalar_lea.vmem %s0, %s134
      $region28: #{tpu_custom_call.1} parent=23 // pred_fallthru
        _
    $region24: #{tpu_custom_call.1} parent=5 // pred_fallthru
      _
    %p136 = scmp.le.s32.totalorder 1, %s9
    %p137 = scmp.lt.s32.totalorder %s9, 3
    %p138 = pnand %p136, %p137
    %p139 = pneg %p138
    // Predicated region
    $region29: #{tpu_custom_call.1} parent=5 // pred_check
      _
    $region30: #{tpu_custom_call.1} parent=5 // pred_check_branch
      %141 = sbr.rel (%p138) target = $region32
    $region31: #{tpu_custom_call.1} parent=5 // pred_region
      %s142 = ssub.s32 %s9, 1
      %p143 = scmp.lt.s32.totalorder %s14, 1
      %s144 = scalar_select %p143, %s14, 1
      %s145 = smul.addr %s144, 32
      %s146 = smul.addr %s145, 4
      %s147 = scalar_lea.vmem %s0, %s146
      %p148 = pneg %p35
      %p149 = pneg %p32
      %p150 = pneg %p56
      %p151 = pneg %p53
      %p152 = pneg %p77
      %p153 = pneg %p74
      %p154 = pneg %p103
      %p155 = pneg %p100
      %p156 = scmp.lt.s32.totalorder %s14, 1
      %s157 = scalar_select %p156, %s14, 1
      %s158 = smul.addr %s157, 32
      %s159 = smul.addr %s158, 4
      %s160 = scalar_lea.vmem %s3, %s159
      %p161 = scmp.lt.s32.totalorder %s14, 1
      %s162 = scalar_select %p161, %s14, 1
      %s163 = smul.addr %s162, 32
      %s164 = smul.addr %s163, 4
      %s165 = scalar_lea.vmem %s0, %s164
      %p166 = scmp.lt.s32.totalorder %s14, 1
      %s167 = scalar_select %p166, %s14, 1
      %s168 = smul.addr %s167, 32
      %s169 = smul.addr %s168, 4
      %s170 = scalar_lea.vmem %s3, %s169
      %vm172 = vcmask 60416
      %173 = vst.msk [vmem:[#allocation2] sm:$0xf] %vm172, 0
      %174 = vst.msk [vmem:[#allocation2 + $0x4] sm:$0xf] %vm172, 0
      %vm175 = vcmask 57344
      %176 = vst.msk [vmem:[#allocation2 + $0x8] sm:$0x1] %vm175, 0
      %177 = vst.msk [vmem:[#allocation2 + $0xc] sm:$0xf] %vm172, 0
      %178 = vst.msk [vmem:[#allocation2 + $0x10] sm:$0xf] %vm172, 0
      %179 = vst.msk [vmem:[#allocation2 + $0x14] sm:$0x1] %vm175, 0
      %180 = vst.msk [vmem:[#allocation2 + $0x18] sm:$0xf] %vm172, 0
      %181 = vst.msk [vmem:[#allocation2 + $0x1c] sm:$0xf] %vm172, 0
      %182 = vst.msk [vmem:[#allocation2 + $0x20] sm:$0x1] %vm175, 0
      %183 = vst.msk [vmem:[#allocation2 + $0x24] sm:$0xf] %vm172, 0
      %184 = vst.msk [vmem:[#allocation2 + $0x28] sm:$0xf] %vm172, 0
      %185 = vst.msk [vmem:[#allocation2 + $0x2c] sm:$0x1] %vm175, 0
      %186 = vst.msk [vmem:[#allocation2 + $0x30] sm:$0xf] %vm172, 0
      %187 = vst.msk [vmem:[#allocation2 + $0x34] sm:$0xf] %vm172, 0
      %188 = vst.msk [vmem:[#allocation2 + $0x38] sm:$0x1] %vm175, 0
      %189 = vst.msk [vmem:[#allocation2 + $0x3c] sm:$0xf] %vm172, 0
      %190 = vst.msk [vmem:[#allocation2 + $0x40] sm:$0xf] %vm172, 0
      %191 = vst.msk [vmem:[#allocation2 + $0x44] sm:$0x1] %vm175, 0
      %192 = vst.msk [vmem:[#allocation2 + $0x48] sm:$0xf] %vm172, 0
      %193 = vst.msk [vmem:[#allocation2 + $0x4c] sm:$0xf] %vm172, 0
      %194 = vst.msk [vmem:[#allocation2 + $0x50] sm:$0x1] %vm175, 0
      %195 = vst.msk [vmem:[#allocation2 + $0x54] sm:$0xf] %vm172, 0
      %196 = vst.msk [vmem:[#allocation2 + $0x58] sm:$0xf] %vm172, 0
      %197 = vst.msk [vmem:[#allocation2 + $0x5c] sm:$0x1] %vm175, 0
      %198 = vst.msk [vmem:[#allocation2 + $0x60] sm:$0xf] %vm172, 0
      %199 = vst.msk [vmem:[#allocation2 + $0x64] sm:$0xf] %vm172, 0
      %200 = vst.msk [vmem:[#allocation2 + $0x68] sm:$0x1] %vm175, 0
      %201 = vst.msk [vmem:[#allocation2 + $0x6c] sm:$0xf] %vm172, 0
      %202 = vst.msk [vmem:[#allocation2 + $0x70] sm:$0xf] %vm172, 0
      %203 = vst.msk [vmem:[#allocation2 + $0x74] sm:$0x1] %vm175, 0
      %204 = vst.msk [vmem:[#allocation2 + $0x78] sm:$0xf] %vm172, 0
      %205 = vst.msk [vmem:[#allocation2 + $0x7c] sm:$0xf] %vm172, 0
      %206 = vst.msk [vmem:[#allocation2 + $0x80] sm:$0x1] %vm175, 0
      %207 = vst.msk [vmem:[#allocation2 + $0x84] sm:$0xf] %vm172, 0
      %208 = vst.msk [vmem:[#allocation2 + $0x88] sm:$0xf] %vm172, 0
      %209 = vst.msk [vmem:[#allocation2 + $0x8c] sm:$0x1] %vm175, 0
      %210 = vst.msk [vmem:[#allocation2 + $0x90] sm:$0xf] %vm172, 0
      %211 = vst.msk [vmem:[#allocation2 + $0x94] sm:$0xf] %vm172, 0
      %212 = vst.msk [vmem:[#allocation2 + $0x98] sm:$0x1] %vm175, 0
      %213 = vst.msk [vmem:[#allocation2 + $0x9c] sm:$0xf] %vm172, 0
      %214 = vst.msk [vmem:[#allocation2 + $0xa0] sm:$0xf] %vm172, 0
      %215 = vst.msk [vmem:[#allocation2 + $0xa4] sm:$0x1] %vm175, 0
      %216 = vst.msk [vmem:[#allocation2 + $0xa8] sm:$0xf] %vm172, 0
      %217 = vst.msk [vmem:[#allocation2 + $0xac] sm:$0xf] %vm172, 0
      %218 = vst.msk [vmem:[#allocation2 + $0xb0] sm:$0x1] %vm175, 0
      %219 = vst.msk [vmem:[#allocation2 + $0xb4] sm:$0xf] %vm172, 0
      %220 = vst.msk [vmem:[#allocation2 + $0xb8] sm:$0xf] %vm172, 0
      %221 = vst.msk [vmem:[#allocation2 + $0xbc] sm:$0x1] %vm175, 0
      %222 = vst.msk [vmem:[#allocation2 + $0xc0] sm:$0xf] %vm172, 0
      %223 = vst.msk [vmem:[#allocation2 + $0xc4] sm:$0xf] %vm172, 0
      %224 = vst.msk [vmem:[#allocation2 + $0xc8] sm:$0x1] %vm175, 0
      %225 = vst.msk [vmem:[#allocation2 + $0xcc] sm:$0xf] %vm172, 0
      %226 = vst.msk [vmem:[#allocation2 + $0xd0] sm:$0xf] %vm172, 0
      %227 = vst.msk [vmem:[#allocation2 + $0xd4] sm:$0x1] %vm175, 0
      %v228 = vld [vmem:[%s165] sm:$0xf]
      %v229 = vld [vmem:[%s165 + $0x4] sm:$0xf]
      %v230 = vld [vmem:[%s165 + $0x8] sm:$0xf]
      %v231 = vld [vmem:[%s165 + $0xc] sm:$0xf]
      %v232 = vld [vmem:[%s165 + $0x10] sm:$0xf]
      %v233 = vld [vmem:[%s165 + $0x14] sm:$0xf]
      %v234 = vld [vmem:[%s165 + $0x18] sm:$0xf]
      %v235 = vld [vmem:[%s165 + $0x1c] sm:$0xf]
      %v236 = vld [vmem:[%s165 + $0x20] sm:$0xf]
      %v237 = vld [vmem:[%s165 + $0x24] sm:$0xf]
      %v238 = vld [vmem:[%s165 + $0x28] sm:$0xf]
      %v239 = vld [vmem:[%s165 + $0x2c] sm:$0xf]
      %v240 = vld [vmem:[%s165 + $0x30] sm:$0xf]
      %v241 = vld [vmem:[%s165 + $0x34] sm:$0xf]
      %v242 = vld [vmem:[%s165 + $0x38] sm:$0xf]
      %v243 = vld [vmem:[%s165 + $0x3c] sm:$0xf]
      %v244 = vld [vmem:[%s165 + $0x40] sm:$0xf]
      %v245 = vld [vmem:[%s165 + $0x44] sm:$0xf]
      %v246 = vld [vmem:[%s165 + $0x48] sm:$0xf]
      %v247 = vld [vmem:[%s165 + $0x4c] sm:$0xf]
      %v248 = vld [vmem:[%s165 + $0x50] sm:$0xf]
      %v249 = vld [vmem:[%s165 + $0x54] sm:$0xf]
      %v250 = vld [vmem:[%s165 + $0x58] sm:$0xf]
      %v251 = vld [vmem:[%s165 + $0x5c] sm:$0xf]
      %v252 = vld [vmem:[%s165 + $0x60] sm:$0xf]
      %v253 = vld [vmem:[%s165 + $0x64] sm:$0xf]
      %v254 = vld [vmem:[%s165 + $0x68] sm:$0xf]
      %v255 = vld [vmem:[%s165 + $0x6c] sm:$0xf]
      %v256 = vld [vmem:[%s165 + $0x70] sm:$0xf]
      %v257 = vld [vmem:[%s165 + $0x74] sm:$0xf]
      %v258 = vld [vmem:[%s165 + $0x78] sm:$0xf]
      %v259 = vld [vmem:[%s165 + $0x7c] sm:$0xf]
      %vm260 = vsmask.f32 256
      %vm261 = vsmask.f32 4368
      %vm262 = vmor %vm260, %vm261
      %v264 = vshrl.u32 %v228, 16
      %v266 = vrot.slane %v264, 7
      %v267 = vshll.u32 %v228, 16
      %v269 = vor.u32 %v266, %v267
      %v270 = vrot.slane %v266, 4
      %v272 = vshrl.u32 %v229, 16
      %v274 = vrot.slane %v272, 7
      %v275 = vshll.u32 %v229, 16
      %v277 = vor.u32 %v274, %v275
      %v278 = vsel %vm262, %v270, %v277
      %v279 = vrot.slane %v274, 4
      %v281 = vshrl.u32 %v230, 16
      %v283 = vrot.slane %v281, 7
      %v284 = vshll.u32 %v230, 16
      %v286 = vor.u32 %v283, %v284
      %v287 = vrot.slane %v283, 4
      %v289 = vshrl.u32 %v231, 16
      %v291 = vrot.slane %v289, 7
      %v292 = vshll.u32 %v231, 16
      %v294 = vor.u32 %v291, %v292
      %v295 = vsel %vm262, %v287, %v294
      %v296 = vrot.slane %v291, 4
      %v298 = vshrl.u32 %v232, 16
      %v300 = vrot.slane %v298, 7
      %v301 = vshll.u32 %v232, 16
      %v303 = vor.u32 %v300, %v301
      %v304 = vrot.slane %v300, 4
      %v306 = vshrl.u32 %v233, 16
      %v308 = vrot.slane %v306, 7
      %v309 = vshll.u32 %v233, 16
      %v311 = vor.u32 %v308, %v309
      %v312 = vsel %vm262, %v304, %v311
      %v313 = vrot.slane %v308, 4
      %v315 = vshrl.u32 %v234, 16
      %v317 = vrot.slane %v315, 7
      %v318 = vshll.u32 %v234, 16
      %v320 = vor.u32 %v317, %v318
      %v321 = vrot.slane %v317, 4
      %v323 = vshrl.u32 %v235, 16
      %v325 = vrot.slane %v323, 7
      %v326 = vshll.u32 %v235, 16
      %v328 = vor.u32 %v325, %v326
      %v329 = vsel %vm262, %v321, %v328
      %v330 = vrot.slane %v325, 4
      %v332 = vshrl.u32 %v236, 16
      %v334 = vrot.slane %v332, 7
      %v335 = vshll.u32 %v236, 16
      %v337 = vor.u32 %v334, %v335
      %v338 = vrot.slane %v334, 4
      %v340 = vshrl.u32 %v237, 16
      %v342 = vrot.slane %v340, 7
      %v343 = vshll.u32 %v237, 16
      %v345 = vor.u32 %v342, %v343
      %v346 = vsel %vm262, %v338, %v345
      %v347 = vrot.slane %v342, 4
      %v349 = vshrl.u32 %v238, 16
      %v351 = vrot.slane %v349, 7
      %v352 = vshll.u32 %v238, 16
      %v354 = vor.u32 %v351, %v352
      %v355 = vrot.slane %v351, 4
      %v357 = vshrl.u32 %v239, 16
      %v359 = vrot.slane %v357, 7
      %v360 = vshll.u32 %v239, 16
      %v362 = vor.u32 %v359, %v360
      %v363 = vsel %vm262, %v355, %v362
      %v364 = vrot.slane %v359, 4
      %v366 = vshrl.u32 %v240, 16
      %v368 = vrot.slane %v366, 7
      %v369 = vshll.u32 %v240, 16
      %v371 = vor.u32 %v368, %v369
      %v372 = vrot.slane %v368, 4
      %v374 = vshrl.u32 %v241, 16
      %v376 = vrot.slane %v374, 7
      %v377 = vshll.u32 %v241, 16
      %v379 = vor.u32 %v376, %v377
      %v380 = vsel %vm262, %v372, %v379
      %v381 = vrot.slane %v376, 4
      %v383 = vshrl.u32 %v242, 16
      %v385 = vrot.slane %v383, 7
      %v386 = vshll.u32 %v242, 16
      %v388 = vor.u32 %v385, %v386
      %v389 = vrot.slane %v385, 4
      %v391 = vshrl.u32 %v243, 16
      %v393 = vrot.slane %v391, 7
      %v394 = vshll.u32 %v243, 16
      %v396 = vor.u32 %v393, %v394
      %v397 = vsel %vm262, %v389, %v396
      %v398 = vrot.slane %v393, 4
      %v400 = vshrl.u32 %v244, 16
      %v402 = vrot.slane %v400, 7
      %v403 = vshll.u32 %v244, 16
      %v405 = vor.u32 %v402, %v403
      %v406 = vrot.slane %v402, 4
      %v408 = vshrl.u32 %v245, 16
      %v410 = vrot.slane %v408, 7
      %v411 = vshll.u32 %v245, 16
      %v413 = vor.u32 %v410, %v411
      %v414 = vsel %vm262, %v406, %v413
      %v415 = vrot.slane %v410, 4
      %v417 = vshrl.u32 %v246, 16
      %v419 = vrot.slane %v417, 7
      %v420 = vshll.u32 %v246, 16
      %v422 = vor.u32 %v419, %v420
      %v423 = vrot.slane %v419, 4
      %v425 = vshrl.u32 %v247, 16
      %v427 = vrot.slane %v425, 7
      %v428 = vshll.u32 %v247, 16
      %v430 = vor.u32 %v427, %v428
      %v431 = vsel %vm262, %v423, %v430
      %v432 = vrot.slane %v427, 4
      %v434 = vshrl.u32 %v248, 16
      %v436 = vrot.slane %v434, 7
      %v437 = vshll.u32 %v248, 16
      %v439 = vor.u32 %v436, %v437
      %v440 = vrot.slane %v436, 4
      %v442 = vshrl.u32 %v249, 16
      %v444 = vrot.slane %v442, 7
      %v445 = vshll.u32 %v249, 16
      %v447 = vor.u32 %v444, %v445
      %v448 = vsel %vm262, %v440, %v447
      %v449 = vrot.slane %v444, 4
      %v451 = vshrl.u32 %v250, 16
      %v453 = vrot.slane %v451, 7
      %v454 = vshll.u32 %v250, 16
      %v456 = vor.u32 %v453, %v454
      %v457 = vrot.slane %v453, 4
      %v459 = vshrl.u32 %v251, 16
      %v461 = vrot.slane %v459, 7
      %v462 = vshll.u32 %v251, 16
      %v464 = vor.u32 %v461, %v462
      %v465 = vsel %vm262, %v457, %v464
      %v466 = vrot.slane %v461, 4
      %v468 = vshrl.u32 %v252, 16
      %v470 = vrot.slane %v468, 7
      %v471 = vshll.u32 %v252, 16
      %v473 = vor.u32 %v470, %v471
      %v474 = vrot.slane %v470, 4
      %v476 = vshrl.u32 %v253, 16
      %v478 = vrot.slane %v476, 7
      %v479 = vshll.u32 %v253, 16
      %v481 = vor.u32 %v478, %v479
      %v482 = vsel %vm262, %v474, %v481
      %v483 = vrot.slane %v478, 4
      %v485 = vshrl.u32 %v254, 16
      %v487 = vrot.slane %v485, 7
      %v488 = vshll.u32 %v254, 16
      %v490 = vor.u32 %v487, %v488
      %v491 = vrot.slane %v487, 4
      %v493 = vshrl.u32 %v255, 16
      %v495 = vrot.slane %v493, 7
      %v496 = vshll.u32 %v255, 16
      %v498 = vor.u32 %v495, %v496
      %v499 = vsel %vm262, %v491, %v498
      %v500 = vrot.slane %v495, 4
      %v502 = vshrl.u32 %v256, 16
      %v504 = vrot.slane %v502, 7
      %v505 = vshll.u32 %v256, 16
      %v507 = vor.u32 %v504, %v505
      %v508 = vrot.slane %v504, 4
      %v510 = vshrl.u32 %v257, 16
      %v512 = vrot.slane %v510, 7
      %v513 = vshll.u32 %v257, 16
      %v515 = vor.u32 %v512, %v513
      %v516 = vsel %vm262, %v508, %v515
      %v517 = vrot.slane %v512, 4
      %v519 = vshrl.u32 %v258, 16
      %v521 = vrot.slane %v519, 7
      %v522 = vshll.u32 %v258, 16
      %v524 = vor.u32 %v521, %v522
      %v525 = vrot.slane %v521, 4
      %v527 = vshrl.u32 %v259, 16
      %v529 = vrot.slane %v527, 7
      %v530 = vshll.u32 %v259, 16
      %v532 = vor.u32 %v529, %v530
      %v533 = vsel %vm262, %v525, %v532
      %v534 = vrot.slane %v529, 4
      %s583 = scalar_lea.vmem [#allocation2], 12
      %vm584 = vcmask 60416
      %vm585 = vsmask.f32 7938
      %vm586 = vmand %vm584, %vm585
      %v587 = vld [vmem:[%s583] sm:$0xf]
      %v588 = vsel %vm586, %v269, %v587
      %589 = vst [vmem:[%s583] sm:$0xf] %v588
      %590 = vst.msk [vmem:[%s583 + $0x4] sm:$0xf] %vm172, %v278
      %vm591 = vcmask 57344
      %vm592 = vmand %vm591, %vm260
      %v593 = vld [vmem:[%s583 + $0x8] sm:$0x1]
      %v594 = vsel %vm592, %v279, %v593
      %595 = vst [vmem:[%s583 + $0x8] sm:$0x1] %v594
      %v596 = vld [vmem:[%s583 + $0xc] sm:$0xf]
      %v597 = vsel %vm586, %v286, %v596
      %598 = vst [vmem:[%s583 + $0xc] sm:$0xf] %v597
      %599 = vst.msk [vmem:[%s583 + $0x10] sm:$0xf] %vm172, %v295
      %v600 = vld [vmem:[%s583 + $0x14] sm:$0x1]
      %v601 = vsel %vm592, %v296, %v600
      %602 = vst [vmem:[%s583 + $0x14] sm:$0x1] %v601
      %v603 = vld [vmem:[%s583 + $0x18] sm:$0xf]
      %v604 = vsel %vm586, %v303, %v603
      %605 = vst [vmem:[%s583 + $0x18] sm:$0xf] %v604
      %606 = vst.msk [vmem:[%s583 + $0x1c] sm:$0xf] %vm172, %v312
      %v607 = vld [vmem:[%s583 + $0x20] sm:$0x1]
      %v608 = vsel %vm592, %v313, %v607
      %609 = vst [vmem:[%s583 + $0x20] sm:$0x1] %v608
      %v610 = vld [vmem:[%s583 + $0x24] sm:$0xf]
      %v611 = vsel %vm586, %v320, %v610
      %612 = vst [vmem:[%s583 + $0x24] sm:$0xf] %v611
      %613 = vst.msk [vmem:[%s583 + $0x28] sm:$0xf] %vm172, %v329
      %v614 = vld [vmem:[%s583 + $0x2c] sm:$0x1]
      %v615 = vsel %vm592, %v330, %v614
      %616 = vst [vmem:[%s583 + $0x2c] sm:$0x1] %v615
      %v617 = vld [vmem:[%s583 + $0x30] sm:$0xf]
      %v618 = vsel %vm586, %v337, %v617
      %619 = vst [vmem:[%s583 + $0x30] sm:$0xf] %v618
      %620 = vst.msk [vmem:[%s583 + $0x34] sm:$0xf] %vm172, %v346
      %v621 = vld [vmem:[%s583 + $0x38] sm:$0x1]
      %v622 = vsel %vm592, %v347, %v621
      %623 = vst [vmem:[%s583 + $0x38] sm:$0x1] %v622
      %v624 = vld [vmem:[%s583 + $0x3c] sm:$0xf]
      %v625 = vsel %vm586, %v354, %v624
      %626 = vst [vmem:[%s583 + $0x3c] sm:$0xf] %v625
      %627 = vst.msk [vmem:[%s583 + $0x40] sm:$0xf] %vm172, %v363
      %v628 = vld [vmem:[%s583 + $0x44] sm:$0x1]
      %v629 = vsel %vm592, %v364, %v628
      %630 = vst [vmem:[%s583 + $0x44] sm:$0x1] %v629
      %v631 = vld [vmem:[%s583 + $0x48] sm:$0xf]
      %v632 = vsel %vm586, %v371, %v631
      %633 = vst [vmem:[%s583 + $0x48] sm:$0xf] %v632
      %634 = vst.msk [vmem:[%s583 + $0x4c] sm:$0xf] %vm172, %v380
      %v635 = vld [vmem:[%s583 + $0x50] sm:$0x1]
      %v636 = vsel %vm592, %v381, %v635
      %637 = vst [vmem:[%s583 + $0x50] sm:$0x1] %v636
      %v638 = vld [vmem:[%s583 + $0x54] sm:$0xf]
      %v639 = vsel %vm586, %v388, %v638
      %640 = vst [vmem:[%s583 + $0x54] sm:$0xf] %v639
      %641 = vst.msk [vmem:[%s583 + $0x58] sm:$0xf] %vm172, %v397
      %v642 = vld [vmem:[%s583 + $0x5c] sm:$0x1]
      %v643 = vsel %vm592, %v398, %v642
      %644 = vst [vmem:[%s583 + $0x5c] sm:$0x1] %v643
      %v645 = vld [vmem:[%s583 + $0x60] sm:$0xf]
      %v646 = vsel %vm586, %v405, %v645
      %647 = vst [vmem:[%s583 + $0x60] sm:$0xf] %v646
      %648 = vst.msk [vmem:[%s583 + $0x64] sm:$0xf] %vm172, %v414
      %v649 = vld [vmem:[%s583 + $0x68] sm:$0x1]
      %v650 = vsel %vm592, %v415, %v649
      %651 = vst [vmem:[%s583 + $0x68] sm:$0x1] %v650
      %v652 = vld [vmem:[%s583 + $0x6c] sm:$0xf]
      %v653 = vsel %vm586, %v422, %v652
      %654 = vst [vmem:[%s583 + $0x6c] sm:$0xf] %v653
      %655 = vst.msk [vmem:[%s583 + $0x70] sm:$0xf] %vm172, %v431
      %v656 = vld [vmem:[%s583 + $0x74] sm:$0x1]
      %v657 = vsel %vm592, %v432, %v656
      %658 = vst [vmem:[%s583 + $0x74] sm:$0x1] %v657
      %v659 = vld [vmem:[%s583 + $0x78] sm:$0xf]
      %v660 = vsel %vm586, %v439, %v659
      %661 = vst [vmem:[%s583 + $0x78] sm:$0xf] %v660
      %662 = vst.msk [vmem:[%s583 + $0x7c] sm:$0xf] %vm172, %v448
      %v663 = vld [vmem:[%s583 + $0x80] sm:$0x1]
      %v664 = vsel %vm592, %v449, %v663
      %665 = vst [vmem:[%s583 + $0x80] sm:$0x1] %v664
      %v666 = vld [vmem:[%s583 + $0x84] sm:$0xf]
      %v667 = vsel %vm586, %v456, %v666
      %668 = vst [vmem:[%s583 + $0x84] sm:$0xf] %v667
      %669 = vst.msk [vmem:[%s583 + $0x88] sm:$0xf] %vm172, %v465
      %v670 = vld [vmem:[%s583 + $0x8c] sm:$0x1]
      %v671 = vsel %vm592, %v466, %v670
      %672 = vst [vmem:[%s583 + $0x8c] sm:$0x1] %v671
      %v673 = vld [vmem:[%s583 + $0x90] sm:$0xf]
      %v674 = vsel %vm586, %v473, %v673
      %675 = vst [vmem:[%s583 + $0x90] sm:$0xf] %v674
      %676 = vst.msk [vmem:[%s583 + $0x94] sm:$0xf] %vm172, %v482
      %v677 = vld [vmem:[%s583 + $0x98] sm:$0x1]
      %v678 = vsel %vm592, %v483, %v677
      %679 = vst [vmem:[%s583 + $0x98] sm:$0x1] %v678
      %v680 = vld [vmem:[%s583 + $0x9c] sm:$0xf]
      %v681 = vsel %vm586, %v490, %v680
      %682 = vst [vmem:[%s583 + $0x9c] sm:$0xf] %v681
      %683 = vst.msk [vmem:[%s583 + $0xa0] sm:$0xf] %vm172, %v499
      %v684 = vld [vmem:[%s583 + $0xa4] sm:$0x1]
      %v685 = vsel %vm592, %v500, %v684
      %686 = vst [vmem:[%s583 + $0xa4] sm:$0x1] %v685
      %v687 = vld [vmem:[%s583 + $0xa8] sm:$0xf]
      %v688 = vsel %vm586, %v507, %v687
      %689 = vst [vmem:[%s583 + $0xa8] sm:$0xf] %v688
      %690 = vst.msk [vmem:[%s583 + $0xac] sm:$0xf] %vm172, %v516
      %v691 = vld [vmem:[%s583 + $0xb0] sm:$0x1]
      %v692 = vsel %vm592, %v517, %v691
      %693 = vst [vmem:[%s583 + $0xb0] sm:$0x1] %v692
      %v694 = vld [vmem:[%s583 + $0xb4] sm:$0xf]
      %v695 = vsel %vm586, %v524, %v694
      %696 = vst [vmem:[%s583 + $0xb4] sm:$0xf] %v695
      %697 = vst.msk [vmem:[%s583 + $0xb8] sm:$0xf] %vm172, %v533
      %v698 = vld [vmem:[%s583 + $0xbc] sm:$0x1]
      %v699 = vsel %vm592, %v534, %v698
      %700 = vst [vmem:[%s583 + $0xbc] sm:$0x1] %v699
      %vm701 = vcmask 64512
      %702 = vst.msk [vmem:[#allocation3] sm:$0xff] %vm701, 0.0
      %703 = vst.msk [vmem:[#allocation3 + $0x8] sm:$0xff] %vm701, 0.0
      %704 = vst.msk [vmem:[#allocation3 + $0x10] sm:$0xff] %vm701, 0.0
      %705 = vst.msk [vmem:[#allocation3 + $0x18] sm:$0xff] %vm701, 0.0
      %706 = vst.msk [vmem:[#allocation3 + $0x20] sm:$0xff] %vm701, 0.0
      %707 = vst.msk [vmem:[#allocation3 + $0x28] sm:$0xff] %vm701, 0.0
      %708 = vst.msk [vmem:[#allocation3 + $0x30] sm:$0xff] %vm701, 0.0
      %709 = vst.msk [vmem:[#allocation3 + $0x38] sm:$0xff] %vm701, 0.0
      %710 = vst.msk [vmem:[#allocation3 + $0x40] sm:$0xff] %vm701, 0.0
      %711 = vst.msk [vmem:[#allocation3 + $0x48] sm:$0xff] %vm701, 0.0
      %712 = vst.msk [vmem:[#allocation3 + $0x50] sm:$0xff] %vm701, 0.0
      %713 = vst.msk [vmem:[#allocation3 + $0x58] sm:$0xff] %vm701, 0.0
      %714 = vst.msk [vmem:[#allocation3 + $0x60] sm:$0xff] %vm701, 0.0
      %715 = vst.msk [vmem:[#allocation3 + $0x68] sm:$0xff] %vm701, 0.0
      %716 = vst.msk [vmem:[#allocation3 + $0x70] sm:$0xff] %vm701, 0.0
      %717 = vst.msk [vmem:[#allocation3 + $0x78] sm:$0xff] %vm701, 0.0
      %718 = vst.msk [vmem:[#allocation3 + $0x80] sm:$0xff] %vm701, 0.0
      %719 = vst.msk [vmem:[#allocation3 + $0x88] sm:$0xff] %vm701, 0.0
      %720 = vst.msk [vmem:[#allocation3 + $0x90] sm:$0xff] %vm701, 0.0
      %721 = vst.msk [vmem:[#allocation3 + $0x98] sm:$0xff] %vm701, 0.0
      %722 = vst.msk [vmem:[#allocation3 + $0xa0] sm:$0xff] %vm701, 0.0
      %723 = vst.msk [vmem:[#allocation3 + $0xa8] sm:$0xff] %vm701, 0.0
      %724 = vst.msk [vmem:[#allocation3 + $0xb0] sm:$0xff] %vm701, 0.0
      %725 = vst.msk [vmem:[#allocation3 + $0xb8] sm:$0xff] %vm701, 0.0
      %726 = vst.msk [vmem:[#allocation3 + $0xc0] sm:$0xff] %vm701, 0.0
      %727 = vst.msk [vmem:[#allocation3 + $0xc8] sm:$0xff] %vm701, 0.0
      %728 = vst.msk [vmem:[#allocation3 + $0xd0] sm:$0xff] %vm701, 0.0
      %729 = vst.msk [vmem:[#allocation3 + $0xd8] sm:$0xff] %vm701, 0.0
      %730 = vst.msk [vmem:[#allocation3 + $0xe0] sm:$0xff] %vm701, 0.0
      %731 = vst.msk [vmem:[#allocation3 + $0xe8] sm:$0xff] %vm701, 0.0
      %732 = vst.msk [vmem:[#allocation3 + $0xf0] sm:$0xff] %vm701, 0.0
      %733 = vst.msk [vmem:[#allocation3 + $0xf8] sm:$0xff] %vm701, 0.0
      %v734 = vld [vmem:[#allocation2] sm:$0xf]
      %v735 = vld [vmem:[#allocation2 + $0x4] sm:$0xf]
      %v736 = vld [vmem:[#allocation2 + $0xc] sm:$0xf]
      %v737 = vld [vmem:[#allocation2 + $0x10] sm:$0xf]
      %v738 = vld [vmem:[#allocation2 + $0x18] sm:$0xf]
      %v739 = vld [vmem:[#allocation2 + $0x1c] sm:$0xf]
      %v740 = vld [vmem:[#allocation2 + $0x24] sm:$0xf]
      %v741 = vld [vmem:[#allocation2 + $0x28] sm:$0xf]
      %v742 = vld [vmem:[#allocation2 + $0x30] sm:$0xf]
      %v743 = vld [vmem:[#allocation2 + $0x34] sm:$0xf]
      %v744 = vld [vmem:[#allocation2 + $0x3c] sm:$0xf]
      %v745 = vld [vmem:[#allocation2 + $0x40] sm:$0xf]
      %v746 = vld [vmem:[#allocation2 + $0x48] sm:$0xf]
      %v747 = vld [vmem:[#allocation2 + $0x4c] sm:$0xf]
      %v748 = vld [vmem:[#allocation2 + $0x54] sm:$0xf]
      %v749 = vld [vmem:[#allocation2 + $0x58] sm:$0xf]
      %v750 = vld [vmem:[#allocation2 + $0x60] sm:$0xf]
      %v751 = vld [vmem:[#allocation2 + $0x64] sm:$0xf]
      %v752 = vld [vmem:[#allocation2 + $0x6c] sm:$0xf]
      %v753 = vld [vmem:[#allocation2 + $0x70] sm:$0xf]
      %v754 = vld [vmem:[#allocation2 + $0x78] sm:$0xf]
      %v755 = vld [vmem:[#allocation2 + $0x7c] sm:$0xf]
      %v756 = vld [vmem:[#allocation2 + $0x84] sm:$0xf]
      %v757 = vld [vmem:[#allocation2 + $0x88] sm:$0xf]
      %v758 = vld [vmem:[#allocation2 + $0x90] sm:$0xf]
      %v759 = vld [vmem:[#allocation2 + $0x94] sm:$0xf]
      %v760 = vld [vmem:[#allocation2 + $0x9c] sm:$0xf]
      %v761 = vld [vmem:[#allocation2 + $0xa0] sm:$0xf]
      %v762 = vld [vmem:[#allocation2 + $0xa8] sm:$0xf]
      %v763 = vld [vmem:[#allocation2 + $0xac] sm:$0xf]
      %v764 = vld [vmem:[#allocation2 + $0xb4] sm:$0xf]
      %v765 = vld [vmem:[#allocation2 + $0xb8] sm:$0xf]
      %v766 = vld [vmem:[#allocation3] sm:$0xff]
      %v767 = vld [vmem:[#allocation3 + $0x8] sm:$0xff]
      %v768 = vld [vmem:[#allocation3 + $0x10] sm:$0xff]
      %v769 = vld [vmem:[#allocation3 + $0x18] sm:$0xff]
      %v770 = vld [vmem:[#allocation3 + $0x20] sm:$0xff]
      %v771 = vld [vmem:[#allocation3 + $0x28] sm:$0xff]
      %v772 = vld [vmem:[#allocation3 + $0x30] sm:$0xff]
      %v773 = vld [vmem:[#allocation3 + $0x38] sm:$0xff]
      %v774 = vld [vmem:[#allocation3 + $0x40] sm:$0xff]
      %v775 = vld [vmem:[#allocation3 + $0x48] sm:$0xff]
      %v776 = vld [vmem:[#allocation3 + $0x50] sm:$0xff]
      %v777 = vld [vmem:[#allocation3 + $0x58] sm:$0xff]
      %v778 = vld [vmem:[#allocation3 + $0x60] sm:$0xff]
      %v779 = vld [vmem:[#allocation3 + $0x68] sm:$0xff]
      %v780 = vld [vmem:[#allocation3 + $0x70] sm:$0xff]
      %v781 = vld [vmem:[#allocation3 + $0x78] sm:$0xff]
      %v782 = vld [vmem:[#allocation3 + $0x80] sm:$0xff]
      %v783 = vld [vmem:[#allocation3 + $0x88] sm:$0xff]
      %v784 = vld [vmem:[#allocation3 + $0x90] sm:$0xff]
      %v785 = vld [vmem:[#allocation3 + $0x98] sm:$0xff]
      %v786 = vld [vmem:[#allocation3 + $0xa0] sm:$0xff]
      %v787 = vld [vmem:[#allocation3 + $0xa8] sm:$0xff]
      %v788 = vld [vmem:[#allocation3 + $0xb0] sm:$0xff]
      %v789 = vld [vmem:[#allocation3 + $0xb8] sm:$0xff]
      %v790 = vld [vmem:[#allocation3 + $0xc0] sm:$0xff]
      %v791 = vld [vmem:[#allocation3 + $0xc8] sm:$0xff]
      %v792 = vld [vmem:[#allocation3 + $0xd0] sm:$0xff]
      %v793 = vld [vmem:[#allocation3 + $0xd8] sm:$0xff]
      %v794 = vld [vmem:[#allocation3 + $0xe0] sm:$0xff]
      %v795 = vld [vmem:[#allocation3 + $0xe8] sm:$0xff]
      %v796 = vld [vmem:[#allocation3 + $0xf0] sm:$0xff]
      %v797 = vld [vmem:[#allocation3 + $0xf8] sm:$0xff]
      %v798 = vld [vmem:[%s1] sm:$0xf]
      %v831 = vunpack.c.l.b16 %v734
      %v832 = vunpack.c.l.b16 %v735
      %v833 = vunpack.c.l.b16 %v736
      %v834 = vunpack.c.l.b16 %v737
      %v835 = vunpack.c.l.b16 %v738
      %v836 = vunpack.c.l.b16 %v739
      %v837 = vunpack.c.l.b16 %v740
      %v838 = vunpack.c.l.b16 %v741
      %v839 = vunpack.c.l.b16 %v742
      %v840 = vunpack.c.l.b16 %v743
      %v841 = vunpack.c.l.b16 %v744
      %v842 = vunpack.c.l.b16 %v745
      %v843 = vunpack.c.l.b16 %v746
      %v844 = vunpack.c.l.b16 %v747
      %v845 = vunpack.c.l.b16 %v748
      %v846 = vunpack.c.l.b16 %v749
      %v847 = vunpack.c.l.b16 %v750
      %v848 = vunpack.c.l.b16 %v751
      %v849 = vunpack.c.l.b16 %v752
      %v850 = vunpack.c.l.b16 %v753
      %v851 = vunpack.c.l.b16 %v754
      %v852 = vunpack.c.l.b16 %v755
      %v853 = vunpack.c.l.b16 %v756
      %v854 = vunpack.c.l.b16 %v757
      %v855 = vunpack.c.l.b16 %v758
      %v856 = vunpack.c.l.b16 %v759
      %v857 = vunpack.c.l.b16 %v760
      %v858 = vunpack.c.l.b16 %v761
      %v859 = vunpack.c.l.b16 %v762
      %v860 = vunpack.c.l.b16 %v763
      %v861 = vunpack.c.l.b16 %v764
      %v862 = vunpack.c.l.b16 %v765
      %v863 = vpack.c.b16 %v832, %v831
      %v864 = vpack.c.b16 %v834, %v833
      %v865 = vpack.c.b16 %v836, %v835
      %v866 = vpack.c.b16 %v838, %v837
      %v867 = vpack.c.b16 %v840, %v839
      %v868 = vpack.c.b16 %v842, %v841
      %v869 = vpack.c.b16 %v844, %v843
      %v870 = vpack.c.b16 %v846, %v845
      %v871 = vpack.c.b16 %v848, %v847
      %v872 = vpack.c.b16 %v850, %v849
      %v873 = vpack.c.b16 %v852, %v851
      %v874 = vpack.c.b16 %v854, %v853
      %v875 = vpack.c.b16 %v856, %v855
      %v876 = vpack.c.b16 %v858, %v857
      %v877 = vpack.c.b16 %v860, %v859
      %v878 = vpack.c.b16 %v862, %v861
      %v880 = vsel %vm701, %v863, 0
      %v883 = vsel %vm701, %v864, 0
      %v886 = vsel %vm701, %v865, 0
      %v889 = vsel %vm701, %v866, 0
      %v892 = vsel %vm701, %v867, 0
      %v895 = vsel %vm701, %v868, 0
      %v898 = vsel %vm701, %v869, 0
      %v901 = vsel %vm701, %v870, 0
      %v904 = vsel %vm701, %v871, 0
      %v907 = vsel %vm701, %v872, 0
      %v910 = vsel %vm701, %v873, 0
      %v913 = vsel %vm701, %v874, 0
      %v916 = vsel %vm701, %v875, 0
      %v919 = vsel %vm701, %v876, 0
      %v922 = vsel %vm701, %v877, 0
      %v925 = vsel %vm701, %v878, 0
      %vm927 = vcmask 1043456
      %v929 = vsel %vm927, %v798, 0
      %931 = vmatprep.subr.bf16.mxu0 0
      %932 = vmatpush1.bf16.msra.mxu0 0
      %933 = vmatprep.subr.bf16.mxu0 0
      %934 = vmatpush1.bf16.msra.mxu0 0
      %935 = vmatprep.subr.bf16.mxu0 0
      %936 = vmatpush1.bf16.msra.mxu0 0
      %937 = vmatprep.subr.bf16.mxu0 0
      %938 = vmatpush1.bf16.msra.mxu0 0
      %939 = vmatprep.subr.bf16.mxu0 0
      %940 = vmatpush1.bf16.msra.mxu0 0
      %941 = vmatprep.subr.bf16.mxu0 0
      %942 = vmatpush1.bf16.msra.mxu0 0
      %943 = vmatprep.subr.bf16.mxu0 0
      %944 = vmatpush1.bf16.msra.mxu0 0
      %945 = vmatprep.subr.bf16.mxu0 0
      %946 = vmatpush1.bf16.msra.mxu0 %v929
      %947 = vmatprep.subr.bf16.mxu0 0
      %948 = vmatpush2.bf16.msra.mxu0 0
      %949 = vmatprep.subr.bf16.mxu0 0
      %950 = vmatpush2.bf16.msra.mxu0 0
      %951 = vmatprep.subr.bf16.mxu0 0
      %952 = vmatpush2.bf16.msra.mxu0 0
      %953 = vmatprep.subr.bf16.mxu0 0
      %954 = vmatpush2.bf16.msra.mxu0 0
      %955 = vmatprep.subr.bf16.mxu0 0
      %956 = vmatpush2.bf16.msra.mxu0 0
      %957 = vmatprep.subr.bf16.mxu0 0
      %958 = vmatpush2.bf16.msra.mxu0 0
      %959 = vmatprep.subr.bf16.mxu0 0
      %960 = vmatpush2.bf16.msra.mxu0 0
      %961 = vmatprep.subr.bf16.mxu0 0
      %962 = vmatpush2.bf16.msra.mxu0 0
      %963 = vmatprep.mubr.bf16.mxu0 0
      %964 = vmatmul.mubr.bf16.gmra.mxu0 %v880
      %v965 = vpop.f32.mrf.mxu0
      %v966 = vadd.f32 0.0, %v965
      %v967 = vpop.f32.mrf.mxu0
      %v968 = vpop.f32.mrf.mxu0
      %v969 = vadd.f32 0.0, %v968
      %v970 = vpop.f32.mrf.mxu0
      %971 = vmatprep.mubr.bf16.mxu0 0
      %972 = vmatmul.mubr.bf16.gmra.mxu0 %v883
      %v973 = vpop.f32.mrf.mxu0
      %v974 = vadd.f32 0.0, %v973
      %v975 = vpop.f32.mrf.mxu0
      %v976 = vpop.f32.mrf.mxu0
      %v977 = vadd.f32 0.0, %v976
      %v978 = vpop.f32.mrf.mxu0
      %979 = vmatprep.mubr.bf16.mxu0 0
      %980 = vmatmul.mubr.bf16.gmra.mxu0 %v886
      %v981 = vpop.f32.mrf.mxu0
      %v982 = vadd.f32 0.0, %v981
      %v983 = vpop.f32.mrf.mxu0
      %v984 = vpop.f32.mrf.mxu0
      %v985 = vadd.f32 0.0, %v984
      %v986 = vpop.f32.mrf.mxu0
      %987 = vmatprep.mubr.bf16.mxu0 0
      %988 = vmatmul.mubr.bf16.gmra.mxu0 %v889
      %v989 = vpop.f32.mrf.mxu0
      %v990 = vadd.f32 0.0, %v989
      %v991 = vpop.f32.mrf.mxu0
      %v992 = vpop.f32.mrf.mxu0
      %v993 = vadd.f32 0.0, %v992
      %v994 = vpop.f32.mrf.mxu0
      %995 = vmatprep.mubr.bf16.mxu0 0
      %996 = vmatmul.mubr.bf16.gmra.mxu0 %v892
      %v997 = vpop.f32.mrf.mxu0
      %v998 = vadd.f32 0.0, %v997
      %v999 = vpop.f32.mrf.mxu0
      %v1000 = vpop.f32.mrf.mxu0
      %v1001 = vadd.f32 0.0, %v1000
      %v1002 = vpop.f32.mrf.mxu0
      %1003 = vmatprep.mubr.bf16.mxu0 0
      %1004 = vmatmul.mubr.bf16.gmra.mxu0 %v895
      %v1005 = vpop.f32.mrf.mxu0
      %v1006 = vadd.f32 0.0, %v1005
      %v1007 = vpop.f32.mrf.mxu0
      %v1008 = vpop.f32.mrf.mxu0
      %v1009 = vadd.f32 0.0, %v1008
      %v1010 = vpop.f32.mrf.mxu0
      %1011 = vmatprep.mubr.bf16.mxu0 0
      %1012 = vmatmul.mubr.bf16.gmra.mxu0 %v898
      %v1013 = vpop.f32.mrf.mxu0
      %v1014 = vadd.f32 0.0, %v1013
      %v1015 = vpop.f32.mrf.mxu0
      %v1016 = vpop.f32.mrf.mxu0
      %v1017 = vadd.f32 0.0, %v1016
      %v1018 = vpop.f32.mrf.mxu0
      %1019 = vmatprep.mubr.bf16.mxu0 0
      %1020 = vmatmul.mubr.bf16.gmra.mxu0 %v901
      %v1021 = vpop.f32.mrf.mxu0
      %v1022 = vadd.f32 0.0, %v1021
      %v1023 = vpop.f32.mrf.mxu0
      %v1024 = vpop.f32.mrf.mxu0
      %v1025 = vadd.f32 0.0, %v1024
      %v1026 = vpop.f32.mrf.mxu0
      %1027 = vmatprep.mubr.bf16.mxu0 0
      %1028 = vmatmul.mubr.bf16.gmra.mxu0 %v904
      %v1029 = vpop.f32.mrf.mxu0
      %v1030 = vadd.f32 0.0, %v1029
      %v1031 = vpop.f32.mrf.mxu0
      %v1032 = vpop.f32.mrf.mxu0
      %v1033 = vadd.f32 0.0, %v1032
      %v1034 = vpop.f32.mrf.mxu0
      %1035 = vmatprep.mubr.bf16.mxu0 0
      %1036 = vmatmul.mubr.bf16.gmra.mxu0 %v907
      %v1037 = vpop.f32.mrf.mxu0
      %v1038 = vadd.f32 0.0, %v1037
      %v1039 = vpop.f32.mrf.mxu0
      %v1040 = vpop.f32.mrf.mxu0
      %v1041 = vadd.f32 0.0, %v1040
      %v1042 = vpop.f32.mrf.mxu0
      %1043 = vmatprep.mubr.bf16.mxu0 0
      %1044 = vmatmul.mubr.bf16.gmra.mxu0 %v910
      %v1045 = vpop.f32.mrf.mxu0
      %v1046 = vadd.f32 0.0, %v1045
      %v1047 = vpop.f32.mrf.mxu0
      %v1048 = vpop.f32.mrf.mxu0
      %v1049 = vadd.f32 0.0, %v1048
      %v1050 = vpop.f32.mrf.mxu0
      %1051 = vmatprep.mubr.bf16.mxu0 0
      %1052 = vmatmul.mubr.bf16.gmra.mxu0 %v913
      %v1053 = vpop.f32.mrf.mxu0
      %v1054 = vadd.f32 0.0, %v1053
      %v1055 = vpop.f32.mrf.mxu0
      %v1056 = vpop.f32.mrf.mxu0
      %v1057 = vadd.f32 0.0, %v1056
      %v1058 = vpop.f32.mrf.mxu0
      %1059 = vmatprep.mubr.bf16.mxu0 0
      %1060 = vmatmul.mubr.bf16.gmra.mxu0 %v916
      %v1061 = vpop.f32.mrf.mxu0
      %v1062 = vadd.f32 0.0, %v1061
      %v1063 = vpop.f32.mrf.mxu0
      %v1064 = vpop.f32.mrf.mxu0
      %v1065 = vadd.f32 0.0, %v1064
      %v1066 = vpop.f32.mrf.mxu0
      %1067 = vmatprep.mubr.bf16.mxu0 0
      %1068 = vmatmul.mubr.bf16.gmra.mxu0 %v919
      %v1069 = vpop.f32.mrf.mxu0
      %v1070 = vadd.f32 0.0, %v1069
      %v1071 = vpop.f32.mrf.mxu0
      %v1072 = vpop.f32.mrf.mxu0
      %v1073 = vadd.f32 0.0, %v1072
      %v1074 = vpop.f32.mrf.mxu0
      %1075 = vmatprep.mubr.bf16.mxu0 0
      %1076 = vmatmul.mubr.bf16.gmra.mxu0 %v922
      %v1077 = vpop.f32.mrf.mxu0
      %v1078 = vadd.f32 0.0, %v1077
      %v1079 = vpop.f32.mrf.mxu0
      %v1080 = vpop.f32.mrf.mxu0
      %v1081 = vadd.f32 0.0, %v1080
      %v1082 = vpop.f32.mrf.mxu0
      %1083 = vmatprep.mubr.bf16.mxu0 0
      %1084 = vmatmul.mubr.bf16.gmra.mxu0 %v925
      %v1085 = vpop.f32.mrf.mxu0
      %v1086 = vadd.f32 0.0, %v1085
      %v1087 = vpop.f32.mrf.mxu0
      %v1088 = vpop.f32.mrf.mxu0
      %v1089 = vadd.f32 0.0, %v1088
      %v1090 = vpop.f32.mrf.mxu0
      %1091 = vdwg.mxu0
      %v1092 = vadd.f32 %v766, %v966
      %v1093 = vadd.f32 %v767, %v969
      %v1094 = vadd.f32 %v768, %v974
      %v1095 = vadd.f32 %v769, %v977
      %v1096 = vadd.f32 %v770, %v982
      %v1097 = vadd.f32 %v771, %v985
      %v1098 = vadd.f32 %v772, %v990
      %v1099 = vadd.f32 %v773, %v993
      %v1100 = vadd.f32 %v774, %v998
      %v1101 = vadd.f32 %v775, %v1001
      %v1102 = vadd.f32 %v776, %v1006
      %v1103 = vadd.f32 %v777, %v1009
      %v1104 = vadd.f32 %v778, %v1014
      %v1105 = vadd.f32 %v779, %v1017
      %v1106 = vadd.f32 %v780, %v1022
      %v1107 = vadd.f32 %v781, %v1025
      %v1108 = vadd.f32 %v782, %v1030
      %v1109 = vadd.f32 %v783, %v1033
      %v1110 = vadd.f32 %v784, %v1038
      %v1111 = vadd.f32 %v785, %v1041
      %v1112 = vadd.f32 %v786, %v1046
      %v1113 = vadd.f32 %v787, %v1049
      %v1114 = vadd.f32 %v788, %v1054
      %v1115 = vadd.f32 %v789, %v1057
      %v1116 = vadd.f32 %v790, %v1062
      %v1117 = vadd.f32 %v791, %v1065
      %v1118 = vadd.f32 %v792, %v1070
      %v1119 = vadd.f32 %v793, %v1073
      %v1120 = vadd.f32 %v794, %v1078
      %v1121 = vadd.f32 %v795, %v1081
      %v1122 = vadd.f32 %v796, %v1086
      %v1123 = vadd.f32 %v797, %v1089
      %1124 = vst.msk [vmem:[#allocation3] sm:$0xff] %vm701, %v1092
      %1125 = vst.msk [vmem:[#allocation3 + $0x8] sm:$0xff] %vm701, %v1093
      %1126 = vst.msk [vmem:[#allocation3 + $0x10] sm:$0xff] %vm701, %v1094
      %1127 = vst.msk [vmem:[#allocation3 + $0x18] sm:$0xff] %vm701, %v1095
      %1128 = vst.msk [vmem:[#allocation3 + $0x20] sm:$0xff] %vm701, %v1096
      %1129 = vst.msk [vmem:[#allocation3 + $0x28] sm:$0xff] %vm701, %v1097
      %1130 = vst.msk [vmem:[#allocation3 + $0x30] sm:$0xff] %vm701, %v1098
      %1131 = vst.msk [vmem:[#allocation3 + $0x38] sm:$0xff] %vm701, %v1099
      %1132 = vst.msk [vmem:[#allocation3 + $0x40] sm:$0xff] %vm701, %v1100
      %1133 = vst.msk [vmem:[#allocation3 + $0x48] sm:$0xff] %vm701, %v1101
      %1134 = vst.msk [vmem:[#allocation3 + $0x50] sm:$0xff] %vm701, %v1102
      %1135 = vst.msk [vmem:[#allocation3 + $0x58] sm:$0xff] %vm701, %v1103
      %1136 = vst.msk [vmem:[#allocation3 + $0x60] sm:$0xff] %vm701, %v1104
      %1137 = vst.msk [vmem:[#allocation3 + $0x68] sm:$0xff] %vm701, %v1105
      %1138 = vst.msk [vmem:[#allocation3 + $0x70] sm:$0xff] %vm701, %v1106
      %1139 = vst.msk [vmem:[#allocation3 + $0x78] sm:$0xff] %vm701, %v1107
      %1140 = vst.msk [vmem:[#allocation3 + $0x80] sm:$0xff] %vm701, %v1108
      %1141 = vst.msk [vmem:[#allocation3 + $0x88] sm:$0xff] %vm701, %v1109
      %1142 = vst.msk [vmem:[#allocation3 + $0x90] sm:$0xff] %vm701, %v1110
      %1143 = vst.msk [vmem:[#allocation3 + $0x98] sm:$0xff] %vm701, %v1111
      %1144 = vst.msk [vmem:[#allocation3 + $0xa0] sm:$0xff] %vm701, %v1112
      %1145 = vst.msk [vmem:[#allocation3 + $0xa8] sm:$0xff] %vm701, %v1113
      %1146 = vst.msk [vmem:[#allocation3 + $0xb0] sm:$0xff] %vm701, %v1114
      %1147 = vst.msk [vmem:[#allocation3 + $0xb8] sm:$0xff] %vm701, %v1115
      %1148 = vst.msk [vmem:[#allocation3 + $0xc0] sm:$0xff] %vm701, %v1116
      %1149 = vst.msk [vmem:[#allocation3 + $0xc8] sm:$0xff] %vm701, %v1117
      %1150 = vst.msk [vmem:[#allocation3 + $0xd0] sm:$0xff] %vm701, %v1118
      %1151 = vst.msk [vmem:[#allocation3 + $0xd8] sm:$0xff] %vm701, %v1119
      %1152 = vst.msk [vmem:[#allocation3 + $0xe0] sm:$0xff] %vm701, %v1120
      %1153 = vst.msk [vmem:[#allocation3 + $0xe8] sm:$0xff] %vm701, %v1121
      %1154 = vst.msk [vmem:[#allocation3 + $0xf0] sm:$0xff] %vm701, %v1122
      %1155 = vst.msk [vmem:[#allocation3 + $0xf8] sm:$0xff] %vm701, %v1123
      %v1156 = vld [vmem:[#allocation2] sm:$0xf]
      %v1157 = vld [vmem:[#allocation2 + $0x4] sm:$0xf]
      %v1158 = vld [vmem:[#allocation2 + $0x8] sm:$0x1]
      %v1159 = vld [vmem:[#allocation2 + $0xc] sm:$0xf]
      %v1160 = vld [vmem:[#allocation2 + $0x10] sm:$0xf]
      %v1161 = vld [vmem:[#allocation2 + $0x14] sm:$0x1]
      %v1162 = vld [vmem:[#allocation2 + $0x18] sm:$0xf]
      %v1163 = vld [vmem:[#allocation2 + $0x1c] sm:$0xf]
      %v1164 = vld [vmem:[#allocation2 + $0x20] sm:$0x1]
      %v1165 = vld [vmem:[#allocation2 + $0x24] sm:$0xf]
      %v1166 = vld [vmem:[#allocation2 + $0x28] sm:$0xf]
      %v1167 = vld [vmem:[#allocation2 + $0x2c] sm:$0x1]
      %v1168 = vld [vmem:[#allocation2 + $0x30] sm:$0xf]
      %v1169 = vld [vmem:[#allocation2 + $0x34] sm:$0xf]
      %v1170 = vld [vmem:[#allocation2 + $0x38] sm:$0x1]
      %v1171 = vld [vmem:[#allocation2 + $0x3c] sm:$0xf]
      %v1172 = vld [vmem:[#allocation2 + $0x40] sm:$0xf]
      %v1173 = vld [vmem:[#allocation2 + $0x44] sm:$0x1]
      %v1174 = vld [vmem:[#allocation2 + $0x48] sm:$0xf]
      %v1175 = vld [vmem:[#allocation2 + $0x4c] sm:$0xf]
      %v1176 = vld [vmem:[#allocation2 + $0x50] sm:$0x1]
      %v1177 = vld [vmem:[#allocation2 + $0x54] sm:$0xf]
      %v1178 = vld [vmem:[#allocation2 + $0x58] sm:$0xf]
      %v1179 = vld [vmem:[#allocation2 + $0x5c] sm:$0x1]
      %v1180 = vld [vmem:[#allocation2 + $0x60] sm:$0xf]
      %v1181 = vld [vmem:[#allocation2 + $0x64] sm:$0xf]
      %v1182 = vld [vmem:[#allocation2 + $0x68] sm:$0x1]
      %v1183 = vld [vmem:[#allocation2 + $0x6c] sm:$0xf]
      %v1184 = vld [vmem:[#allocation2 + $0x70] sm:$0xf]
      %v1185 = vld [vmem:[#allocation2 + $0x74] sm:$0x1]
      %v1186 = vld [vmem:[#allocation2 + $0x78] sm:$0xf]
      %v1187 = vld [vmem:[#allocation2 + $0x7c] sm:$0xf]
      %v1188 = vld [vmem:[#allocation2 + $0x80] sm:$0x1]
      %v1189 = vld [vmem:[#allocation2 + $0x84] sm:$0xf]
      %v1190 = vld [vmem:[#allocation2 + $0x88] sm:$0xf]
      %v1191 = vld [vmem:[#allocation2 + $0x8c] sm:$0x1]
      %v1192 = vld [vmem:[#allocation2 + $0x90] sm:$0xf]
      %v1193 = vld [vmem:[#allocation2 + $0x94] sm:$0xf]
      %v1194 = vld [vmem:[#allocation2 + $0x98] sm:$0x1]
      %v1195 = vld [vmem:[#allocation2 + $0x9c] sm:$0xf]
      %v1196 = vld [vmem:[#allocation2 + $0xa0] sm:$0xf]
      %v1197 = vld [vmem:[#allocation2 + $0xa4] sm:$0x1]
      %v1198 = vld [vmem:[#allocation2 + $0xa8] sm:$0xf]
      %v1199 = vld [vmem:[#allocation2 + $0xac] sm:$0xf]
      %v1200 = vld [vmem:[#allocation2 + $0xb0] sm:$0x1]
      %v1201 = vld [vmem:[#allocation2 + $0xb4] sm:$0xf]
      %v1202 = vld [vmem:[#allocation2 + $0xb8] sm:$0xf]
      %v1203 = vld [vmem:[#allocation2 + $0xbc] sm:$0x1]
      %vm1204 = vsmask.f32 3328
      %vm1205 = vsmask.f32 7440
      %vm1206 = vmor %vm1204, %vm1205
      %v1208 = vshrl.u32 %v1156, 16
      %v1210 = vrot.slane %v1208, 4
      %v1211 = vshll.u32 %v1156, 16
      %v1213 = vrot.slane %v1211, 5
      %v1214 = vor.u32 %v1210, %v1213
      %v1215 = vrot.slane %v1214, 4
      %v1217 = vshll.u32 %v1157, 16
      %v1219 = vrot.slane %v1217, 5
      %v1220 = vsel %vm1206, %v1215, %v1219
      %v1221 = vshrl.u32 %v1157, 16
      %v1223 = vrot.slane %v1221, 4
      %v1224 = vor.u32 %v1223, %v1219
      %v1225 = vrot.slane %v1224, 4
      %v1227 = vshll.u32 %v1158, 16
      %v1229 = vrot.slane %v1227, 5
      %v1230 = vsel %vm1206, %v1225, %v1229
      %v1232 = vshrl.u32 %v1159, 16
      %v1234 = vrot.slane %v1232, 4
      %v1235 = vshll.u32 %v1159, 16
      %v1237 = vrot.slane %v1235, 5
      %v1238 = vor.u32 %v1234, %v1237
      %v1239 = vrot.slane %v1238, 4
      %v1241 = vshll.u32 %v1160, 16
      %v1243 = vrot.slane %v1241, 5
      %v1244 = vsel %vm1206, %v1239, %v1243
      %v1245 = vshrl.u32 %v1160, 16
      %v1247 = vrot.slane %v1245, 4
      %v1248 = vor.u32 %v1247, %v1243
      %v1249 = vrot.slane %v1248, 4
      %v1251 = vshll.u32 %v1161, 16
      %v1253 = vrot.slane %v1251, 5
      %v1254 = vsel %vm1206, %v1249, %v1253
      %v1256 = vshrl.u32 %v1162, 16
      %v1258 = vrot.slane %v1256, 4
      %v1259 = vshll.u32 %v1162, 16
      %v1261 = vrot.slane %v1259, 5
      %v1262 = vor.u32 %v1258, %v1261
      %v1263 = vrot.slane %v1262, 4
      %v1265 = vshll.u32 %v1163, 16
      %v1267 = vrot.slane %v1265, 5
      %v1268 = vsel %vm1206, %v1263, %v1267
      %v1269 = vshrl.u32 %v1163, 16
      %v1271 = vrot.slane %v1269, 4
      %v1272 = vor.u32 %v1271, %v1267
      %v1273 = vrot.slane %v1272, 4
      %v1275 = vshll.u32 %v1164, 16
      %v1277 = vrot.slane %v1275, 5
      %v1278 = vsel %vm1206, %v1273, %v1277
      %v1280 = vshrl.u32 %v1165, 16
      %v1282 = vrot.slane %v1280, 4
      %v1283 = vshll.u32 %v1165, 16
      %v1285 = vrot.slane %v1283, 5
      %v1286 = vor.u32 %v1282, %v1285
      %v1287 = vrot.slane %v1286, 4
      %v1289 = vshll.u32 %v1166, 16
      %v1291 = vrot.slane %v1289, 5
      %v1292 = vsel %vm1206, %v1287, %v1291
      %v1293 = vshrl.u32 %v1166, 16
      %v1295 = vrot.slane %v1293, 4
      %v1296 = vor.u32 %v1295, %v1291
      %v1297 = vrot.slane %v1296, 4
      %v1299 = vshll.u32 %v1167, 16
      %v1301 = vrot.slane %v1299, 5
      %v1302 = vsel %vm1206, %v1297, %v1301
      %v1304 = vshrl.u32 %v1168, 16
      %v1306 = vrot.slane %v1304, 4
      %v1307 = vshll.u32 %v1168, 16
      %v1309 = vrot.slane %v1307, 5
      %v1310 = vor.u32 %v1306, %v1309
      %v1311 = vrot.slane %v1310, 4
      %v1313 = vshll.u32 %v1169, 16
      %v1315 = vrot.slane %v1313, 5
      %v1316 = vsel %vm1206, %v1311, %v1315
      %v1317 = vshrl.u32 %v1169, 16
      %v1319 = vrot.slane %v1317, 4
      %v1320 = vor.u32 %v1319, %v1315
      %v1321 = vrot.slane %v1320, 4
      %v1323 = vshll.u32 %v1170, 16
      %v1325 = vrot.slane %v1323, 5
      %v1326 = vsel %vm1206, %v1321, %v1325
      %v1328 = vshrl.u32 %v1171, 16
      %v1330 = vrot.slane %v1328, 4
      %v1331 = vshll.u32 %v1171, 16
      %v1333 = vrot.slane %v1331, 5
      %v1334 = vor.u32 %v1330, %v1333
      %v1335 = vrot.slane %v1334, 4
      %v1337 = vshll.u32 %v1172, 16
      %v1339 = vrot.slane %v1337, 5
      %v1340 = vsel %vm1206, %v1335, %v1339
      %v1341 = vshrl.u32 %v1172, 16
      %v1343 = vrot.slane %v1341, 4
      %v1344 = vor.u32 %v1343, %v1339
      %v1345 = vrot.slane %v1344, 4
      %v1347 = vshll.u32 %v1173, 16
      %v1349 = vrot.slane %v1347, 5
      %v1350 = vsel %vm1206, %v1345, %v1349
      %v1352 = vshrl.u32 %v1174, 16
      %v1354 = vrot.slane %v1352, 4
      %v1355 = vshll.u32 %v1174, 16
      %v1357 = vrot.slane %v1355, 5
      %v1358 = vor.u32 %v1354, %v1357
      %v1359 = vrot.slane %v1358, 4
      %v1361 = vshll.u32 %v1175, 16
      %v1363 = vrot.slane %v1361, 5
      %v1364 = vsel %vm1206, %v1359, %v1363
      %v1365 = vshrl.u32 %v1175, 16
      %v1367 = vrot.slane %v1365, 4
      %v1368 = vor.u32 %v1367, %v1363
      %v1369 = vrot.slane %v1368, 4
      %v1371 = vshll.u32 %v1176, 16
      %v1373 = vrot.slane %v1371, 5
      %v1374 = vsel %vm1206, %v1369, %v1373
      %v1376 = vshrl.u32 %v1177, 16
      %v1378 = vrot.slane %v1376, 4
      %v1379 = vshll.u32 %v1177, 16
      %v1381 = vrot.slane %v1379, 5
      %v1382 = vor.u32 %v1378, %v1381
      %v1383 = vrot.slane %v1382, 4
      %v1385 = vshll.u32 %v1178, 16
      %v1387 = vrot.slane %v1385, 5
      %v1388 = vsel %vm1206, %v1383, %v1387
      %v1389 = vshrl.u32 %v1178, 16
      %v1391 = vrot.slane %v1389, 4
      %v1392 = vor.u32 %v1391, %v1387
      %v1393 = vrot.slane %v1392, 4
      %v1395 = vshll.u32 %v1179, 16
      %v1397 = vrot.slane %v1395, 5
      %v1398 = vsel %vm1206, %v1393, %v1397
      %v1400 = vshrl.u32 %v1180, 16
      %v1402 = vrot.slane %v1400, 4
      %v1403 = vshll.u32 %v1180, 16
      %v1405 = vrot.slane %v1403, 5
      %v1406 = vor.u32 %v1402, %v1405
      %v1407 = vrot.slane %v1406, 4
      %v1409 = vshll.u32 %v1181, 16
      %v1411 = vrot.slane %v1409, 5
      %v1412 = vsel %vm1206, %v1407, %v1411
      %v1413 = vshrl.u32 %v1181, 16
      %v1415 = vrot.slane %v1413, 4
      %v1416 = vor.u32 %v1415, %v1411
      %v1417 = vrot.slane %v1416, 4
      %v1419 = vshll.u32 %v1182, 16
      %v1421 = vrot.slane %v1419, 5
      %v1422 = vsel %vm1206, %v1417, %v1421
      %v1424 = vshrl.u32 %v1183, 16
      %v1426 = vrot.slane %v1424, 4
      %v1427 = vshll.u32 %v1183, 16
      %v1429 = vrot.slane %v1427, 5
      %v1430 = vor.u32 %v1426, %v1429
      %v1431 = vrot.slane %v1430, 4
      %v1433 = vshll.u32 %v1184, 16
      %v1435 = vrot.slane %v1433, 5
      %v1436 = vsel %vm1206, %v1431, %v1435
      %v1437 = vshrl.u32 %v1184, 16
      %v1439 = vrot.slane %v1437, 4
      %v1440 = vor.u32 %v1439, %v1435
      %v1441 = vrot.slane %v1440, 4
      %v1443 = vshll.u32 %v1185, 16
      %v1445 = vrot.slane %v1443, 5
      %v1446 = vsel %vm1206, %v1441, %v1445
      %v1448 = vshrl.u32 %v1186, 16
      %v1450 = vrot.slane %v1448, 4
      %v1451 = vshll.u32 %v1186, 16
      %v1453 = vrot.slane %v1451, 5
      %v1454 = vor.u32 %v1450, %v1453
      %v1455 = vrot.slane %v1454, 4
      %v1457 = vshll.u32 %v1187, 16
      %v1459 = vrot.slane %v1457, 5
      %v1460 = vsel %vm1206, %v1455, %v1459
      %v1461 = vshrl.u32 %v1187, 16
      %v1463 = vrot.slane %v1461, 4
      %v1464 = vor.u32 %v1463, %v1459
      %v1465 = vrot.slane %v1464, 4
      %v1467 = vshll.u32 %v1188, 16
      %v1469 = vrot.slane %v1467, 5
      %v1470 = vsel %vm1206, %v1465, %v1469
      %v1472 = vshrl.u32 %v1189, 16
      %v1474 = vrot.slane %v1472, 4
      %v1475 = vshll.u32 %v1189, 16
      %v1477 = vrot.slane %v1475, 5
      %v1478 = vor.u32 %v1474, %v1477
      %v1479 = vrot.slane %v1478, 4
      %v1481 = vshll.u32 %v1190, 16
      %v1483 = vrot.slane %v1481, 5
      %v1484 = vsel %vm1206, %v1479, %v1483
      %v1485 = vshrl.u32 %v1190, 16
      %v1487 = vrot.slane %v1485, 4
      %v1488 = vor.u32 %v1487, %v1483
      %v1489 = vrot.slane %v1488, 4
      %v1491 = vshll.u32 %v1191, 16
      %v1493 = vrot.slane %v1491, 5
      %v1494 = vsel %vm1206, %v1489, %v1493
      %v1496 = vshrl.u32 %v1192, 16
      %v1498 = vrot.slane %v1496, 4
      %v1499 = vshll.u32 %v1192, 16
      %v1501 = vrot.slane %v1499, 5
      %v1502 = vor.u32 %v1498, %v1501
      %v1503 = vrot.slane %v1502, 4
      %v1505 = vshll.u32 %v1193, 16
      %v1507 = vrot.slane %v1505, 5
      %v1508 = vsel %vm1206, %v1503, %v1507
      %v1509 = vshrl.u32 %v1193, 16
      %v1511 = vrot.slane %v1509, 4
      %v1512 = vor.u32 %v1511, %v1507
      %v1513 = vrot.slane %v1512, 4
      %v1515 = vshll.u32 %v1194, 16
      %v1517 = vrot.slane %v1515, 5
      %v1518 = vsel %vm1206, %v1513, %v1517
      %v1520 = vshrl.u32 %v1195, 16
      %v1522 = vrot.slane %v1520, 4
      %v1523 = vshll.u32 %v1195, 16
      %v1525 = vrot.slane %v1523, 5
      %v1526 = vor.u32 %v1522, %v1525
      %v1527 = vrot.slane %v1526, 4
      %v1529 = vshll.u32 %v1196, 16
      %v1531 = vrot.slane %v1529, 5
      %v1532 = vsel %vm1206, %v1527, %v1531
      %v1533 = vshrl.u32 %v1196, 16
      %v1535 = vrot.slane %v1533, 4
      %v1536 = vor.u32 %v1535, %v1531
      %v1537 = vrot.slane %v1536, 4
      %v1539 = vshll.u32 %v1197, 16
      %v1541 = vrot.slane %v1539, 5
      %v1542 = vsel %vm1206, %v1537, %v1541
      %v1544 = vshrl.u32 %v1198, 16
      %v1546 = vrot.slane %v1544, 4
      %v1547 = vshll.u32 %v1198, 16
      %v1549 = vrot.slane %v1547, 5
      %v1550 = vor.u32 %v1546, %v1549
      %v1551 = vrot.slane %v1550, 4
      %v1553 = vshll.u32 %v1199, 16
      %v1555 = vrot.slane %v1553, 5
      %v1556 = vsel %vm1206, %v1551, %v1555
      %v1557 = vshrl.u32 %v1199, 16
      %v1559 = vrot.slane %v1557, 4
      %v1560 = vor.u32 %v1559, %v1555
      %v1561 = vrot.slane %v1560, 4
      %v1563 = vshll.u32 %v1200, 16
      %v1565 = vrot.slane %v1563, 5
      %v1566 = vsel %vm1206, %v1561, %v1565
      %v1568 = vshrl.u32 %v1201, 16
      %v1570 = vrot.slane %v1568, 4
      %v1571 = vshll.u32 %v1201, 16
      %v1573 = vrot.slane %v1571, 5
      %v1574 = vor.u32 %v1570, %v1573
      %v1575 = vrot.slane %v1574, 4
      %v1577 = vshll.u32 %v1202, 16
      %v1579 = vrot.slane %v1577, 5
      %v1580 = vsel %vm1206, %v1575, %v1579
      %v1581 = vshrl.u32 %v1202, 16
      %v1583 = vrot.slane %v1581, 4
      %v1584 = vor.u32 %v1583, %v1579
      %v1585 = vrot.slane %v1584, 4
      %v1587 = vshll.u32 %v1203, 16
      %v1589 = vrot.slane %v1587, 5
      %v1590 = vsel %vm1206, %v1585, %v1589
      %v1591 = vld [vmem:[#allocation3] sm:$0xff]
      %v1592 = vld [vmem:[#allocation3 + $0x8] sm:$0xff]
      %v1593 = vld [vmem:[#allocation3 + $0x10] sm:$0xff]
      %v1594 = vld [vmem:[#allocation3 + $0x18] sm:$0xff]
      %v1595 = vld [vmem:[#allocation3 + $0x20] sm:$0xff]
      %v1596 = vld [vmem:[#allocation3 + $0x28] sm:$0xff]
      %v1597 = vld [vmem:[#allocation3 + $0x30] sm:$0xff]
      %v1598 = vld [vmem:[#allocation3 + $0x38] sm:$0xff]
      %v1599 = vld [vmem:[#allocation3 + $0x40] sm:$0xff]
      %v1600 = vld [vmem:[#allocation3 + $0x48] sm:$0xff]
      %v1601 = vld [vmem:[#allocation3 + $0x50] sm:$0xff]
      %v1602 = vld [vmem:[#allocation3 + $0x58] sm:$0xff]
      %v1603 = vld [vmem:[#allocation3 + $0x60] sm:$0xff]
      %v1604 = vld [vmem:[#allocation3 + $0x68] sm:$0xff]
      %v1605 = vld [vmem:[#allocation3 + $0x70] sm:$0xff]
      %v1606 = vld [vmem:[#allocation3 + $0x78] sm:$0xff]
      %v1607 = vld [vmem:[#allocation3 + $0x80] sm:$0xff]
      %v1608 = vld [vmem:[#allocation3 + $0x88] sm:$0xff]
      %v1609 = vld [vmem:[#allocation3 + $0x90] sm:$0xff]
      %v1610 = vld [vmem:[#allocation3 + $0x98] sm:$0xff]
      %v1611 = vld [vmem:[#allocation3 + $0xa0] sm:$0xff]
      %v1612 = vld [vmem:[#allocation3 + $0xa8] sm:$0xff]
      %v1613 = vld [vmem:[#allocation3 + $0xb0] sm:$0xff]
      %v1614 = vld [vmem:[#allocation3 + $0xb8] sm:$0xff]
      %v1615 = vld [vmem:[#allocation3 + $0xc0] sm:$0xff]
      %v1616 = vld [vmem:[#allocation3 + $0xc8] sm:$0xff]
      %v1617 = vld [vmem:[#allocation3 + $0xd0] sm:$0xff]
      %v1618 = vld [vmem:[#allocation3 + $0xd8] sm:$0xff]
      %v1619 = vld [vmem:[#allocation3 + $0xe0] sm:$0xff]
      %v1620 = vld [vmem:[#allocation3 + $0xe8] sm:$0xff]
      %v1621 = vld [vmem:[#allocation3 + $0xf0] sm:$0xff]
      %v1622 = vld [vmem:[#allocation3 + $0xf8] sm:$0xff]
      %s1623 = scalar_lea.vmem %s1, 4
      %v1624 = vld [vmem:[%s1623] sm:$0xf]
      %v1625 = vunpack.c.l.b16 %v1220
      %v1626 = vunpack.c.l.b16 %v1230
      %v1627 = vunpack.c.l.b16 %v1244
      %v1628 = vunpack.c.l.b16 %v1254
      %v1629 = vunpack.c.l.b16 %v1268
      %v1630 = vunpack.c.l.b16 %v1278
      %v1631 = vunpack.c.l.b16 %v1292
      %v1632 = vunpack.c.l.b16 %v1302
      %v1633 = vunpack.c.l.b16 %v1316
      %v1634 = vunpack.c.l.b16 %v1326
      %v1635 = vunpack.c.l.b16 %v1340
      %v1636 = vunpack.c.l.b16 %v1350
      %v1637 = vunpack.c.l.b16 %v1364
      %v1638 = vunpack.c.l.b16 %v1374
      %v1639 = vunpack.c.l.b16 %v1388
      %v1640 = vunpack.c.l.b16 %v1398
      %v1641 = vunpack.c.l.b16 %v1412
      %v1642 = vunpack.c.l.b16 %v1422
      %v1643 = vunpack.c.l.b16 %v1436
      %v1644 = vunpack.c.l.b16 %v1446
      %v1645 = vunpack.c.l.b16 %v1460
      %v1646 = vunpack.c.l.b16 %v1470
      %v1647 = vunpack.c.l.b16 %v1484
      %v1648 = vunpack.c.l.b16 %v1494
      %v1649 = vunpack.c.l.b16 %v1508
      %v1650 = vunpack.c.l.b16 %v1518
      %v1651 = vunpack.c.l.b16 %v1532
      %v1652 = vunpack.c.l.b16 %v1542
      %v1653 = vunpack.c.l.b16 %v1556
      %v1654 = vunpack.c.l.b16 %v1566
      %v1655 = vunpack.c.l.b16 %v1580
      %v1656 = vunpack.c.l.b16 %v1590
      %v1657 = vpack.c.b16 %v1626, %v1625
      %v1658 = vpack.c.b16 %v1628, %v1627
      %v1659 = vpack.c.b16 %v1630, %v1629
      %v1660 = vpack.c.b16 %v1632, %v1631
      %v1661 = vpack.c.b16 %v1634, %v1633
      %v1662 = vpack.c.b16 %v1636, %v1635
      %v1663 = vpack.c.b16 %v1638, %v1637
      %v1664 = vpack.c.b16 %v1640, %v1639
      %v1665 = vpack.c.b16 %v1642, %v1641
      %v1666 = vpack.c.b16 %v1644, %v1643
      %v1667 = vpack.c.b16 %v1646, %v1645
      %v1668 = vpack.c.b16 %v1648, %v1647
      %v1669 = vpack.c.b16 %v1650, %v1649
      %v1670 = vpack.c.b16 %v1652, %v1651
      %v1671 = vpack.c.b16 %v1654, %v1653
      %v1672 = vpack.c.b16 %v1656, %v1655
      %v1674 = vsel %vm701, %v1657, 0
      %v1677 = vsel %vm701, %v1658, 0
      %v1680 = vsel %vm701, %v1659, 0
      %v1683 = vsel %vm701, %v1660, 0
      %v1686 = vsel %vm701, %v1661, 0
      %v1689 = vsel %vm701, %v1662, 0
      %v1692 = vsel %vm701, %v1663, 0
      %v1695 = vsel %vm701, %v1664, 0
      %v1698 = vsel %vm701, %v1665, 0
      %v1701 = vsel %vm701, %v1666, 0
      %v1704 = vsel %vm701, %v1667, 0
      %v1707 = vsel %vm701, %v1668, 0
      %v1710 = vsel %vm701, %v1669, 0
      %v1713 = vsel %vm701, %v1670, 0
      %v1716 = vsel %vm701, %v1671, 0
      %v1719 = vsel %vm701, %v1672, 0
      %v1722 = vsel %vm927, %v1624, 0
      %1724 = vmatprep.subr.bf16.mxu0 0
      %1725 = vmatpush1.bf16.msra.mxu0 0
      %1726 = vmatprep.subr.bf16.mxu0 0
      %1727 = vmatpush1.bf16.msra.mxu0 0
      %1728 = vmatprep.subr.bf16.mxu0 0
      %1729 = vmatpush1.bf16.msra.mxu0 0
      %1730 = vmatprep.subr.bf16.mxu0 0
      %1731 = vmatpush1.bf16.msra.mxu0 0
      %1732 = vmatprep.subr.bf16.mxu0 0
      %1733 = vmatpush1.bf16.msra.mxu0 0
      %1734 = vmatprep.subr.bf16.mxu0 0
      %1735 = vmatpush1.bf16.msra.mxu0 0
      %1736 = vmatprep.subr.bf16.mxu0 0
      %1737 = vmatpush1.bf16.msra.mxu0 0
      %1738 = vmatprep.subr.bf16.mxu0 0
      %1739 = vmatpush1.bf16.msra.mxu0 %v1722
      %1740 = vmatprep.subr.bf16.mxu0 0
      %1741 = vmatpush2.bf16.msra.mxu0 0
      %1742 = vmatprep.subr.bf16.mxu0 0
      %1743 = vmatpush2.bf16.msra.mxu0 0
      %1744 = vmatprep.subr.bf16.mxu0 0
      %1745 = vmatpush2.bf16.msra.mxu0 0
      %1746 = vmatprep.subr.bf16.mxu0 0
      %1747 = vmatpush2.bf16.msra.mxu0 0
      %1748 = vmatprep.subr.bf16.mxu0 0
      %1749 = vmatpush2.bf16.msra.mxu0 0
      %1750 = vmatprep.subr.bf16.mxu0 0
      %1751 = vmatpush2.bf16.msra.mxu0 0
      %1752 = vmatprep.subr.bf16.mxu0 0
      %1753 = vmatpush2.bf16.msra.mxu0 0
      %1754 = vmatprep.subr.bf16.mxu0 0
      %1755 = vmatpush2.bf16.msra.mxu0 0
      %1756 = vmatprep.mubr.bf16.mxu0 0
      %1757 = vmatmul.mubr.bf16.gmra.mxu0 %v1674
      %v1758 = vpop.f32.mrf.mxu0
      %v1759 = vadd.f32 0.0, %v1758
      %v1760 = vpop.f32.mrf.mxu0
      %v1761 = vpop.f32.mrf.mxu0
      %v1762 = vadd.f32 0.0, %v1761
      %v1763 = vpop.f32.mrf.mxu0
      %1764 = vmatprep.mubr.bf16.mxu0 0
      %1765 = vmatmul.mubr.bf16.gmra.mxu0 %v1677
      %v1766 = vpop.f32.mrf.mxu0
      %v1767 = vadd.f32 0.0, %v1766
      %v1768 = vpop.f32.mrf.mxu0
      %v1769 = vpop.f32.mrf.mxu0
      %v1770 = vadd.f32 0.0, %v1769
      %v1771 = vpop.f32.mrf.mxu0
      %1772 = vmatprep.mubr.bf16.mxu0 0
      %1773 = vmatmul.mubr.bf16.gmra.mxu0 %v1680
      %v1774 = vpop.f32.mrf.mxu0
      %v1775 = vadd.f32 0.0, %v1774
      %v1776 = vpop.f32.mrf.mxu0
      %v1777 = vpop.f32.mrf.mxu0
      %v1778 = vadd.f32 0.0, %v1777
      %v1779 = vpop.f32.mrf.mxu0
      %1780 = vmatprep.mubr.bf16.mxu0 0
      %1781 = vmatmul.mubr.bf16.gmra.mxu0 %v1683
      %v1782 = vpop.f32.mrf.mxu0
      %v1783 = vadd.f32 0.0, %v1782
      %v1784 = vpop.f32.mrf.mxu0
      %v1785 = vpop.f32.mrf.mxu0
      %v1786 = vadd.f32 0.0, %v1785
      %v1787 = vpop.f32.mrf.mxu0
      %1788 = vmatprep.mubr.bf16.mxu0 0
      %1789 = vmatmul.mubr.bf16.gmra.mxu0 %v1686
      %v1790 = vpop.f32.mrf.mxu0
      %v1791 = vadd.f32 0.0, %v1790
      %v1792 = vpop.f32.mrf.mxu0
      %v1793 = vpop.f32.mrf.mxu0
      %v1794 = vadd.f32 0.0, %v1793
      %v1795 = vpop.f32.mrf.mxu0
      %1796 = vmatprep.mubr.bf16.mxu0 0
      %1797 = vmatmul.mubr.bf16.gmra.mxu0 %v1689
      %v1798 = vpop.f32.mrf.mxu0
      %v1799 = vadd.f32 0.0, %v1798
      %v1800 = vpop.f32.mrf.mxu0
      %v1801 = vpop.f32.mrf.mxu0
      %v1802 = vadd.f32 0.0, %v1801
      %v1803 = vpop.f32.mrf.mxu0
      %1804 = vmatprep.mubr.bf16.mxu0 0
      %1805 = vmatmul.mubr.bf16.gmra.mxu0 %v1692
      %v1806 = vpop.f32.mrf.mxu0
      %v1807 = vadd.f32 0.0, %v1806
      %v1808 = vpop.f32.mrf.mxu0
      %v1809 = vpop.f32.mrf.mxu0
      %v1810 = vadd.f32 0.0, %v1809
      %v1811 = vpop.f32.mrf.mxu0
      %1812 = vmatprep.mubr.bf16.mxu0 0
      %1813 = vmatmul.mubr.bf16.gmra.mxu0 %v1695
      %v1814 = vpop.f32.mrf.mxu0
      %v1815 = vadd.f32 0.0, %v1814
      %v1816 = vpop.f32.mrf.mxu0
      %v1817 = vpop.f32.mrf.mxu0
      %v1818 = vadd.f32 0.0, %v1817
      %v1819 = vpop.f32.mrf.mxu0
      %1820 = vmatprep.mubr.bf16.mxu0 0
      %1821 = vmatmul.mubr.bf16.gmra.mxu0 %v1698
      %v1822 = vpop.f32.mrf.mxu0
      %v1823 = vadd.f32 0.0, %v1822
      %v1824 = vpop.f32.mrf.mxu0
      %v1825 = vpop.f32.mrf.mxu0
      %v1826 = vadd.f32 0.0, %v1825
      %v1827 = vpop.f32.mrf.mxu0
      %1828 = vmatprep.mubr.bf16.mxu0 0
      %1829 = vmatmul.mubr.bf16.gmra.mxu0 %v1701
      %v1830 = vpop.f32.mrf.mxu0
      %v1831 = vadd.f32 0.0, %v1830
      %v1832 = vpop.f32.mrf.mxu0
      %v1833 = vpop.f32.mrf.mxu0
      %v1834 = vadd.f32 0.0, %v1833
      %v1835 = vpop.f32.mrf.mxu0
      %1836 = vmatprep.mubr.bf16.mxu0 0
      %1837 = vmatmul.mubr.bf16.gmra.mxu0 %v1704
      %v1838 = vpop.f32.mrf.mxu0
      %v1839 = vadd.f32 0.0, %v1838
      %v1840 = vpop.f32.mrf.mxu0
      %v1841 = vpop.f32.mrf.mxu0
      %v1842 = vadd.f32 0.0, %v1841
      %v1843 = vpop.f32.mrf.mxu0
      %1844 = vmatprep.mubr.bf16.mxu0 0
      %1845 = vmatmul.mubr.bf16.gmra.mxu0 %v1707
      %v1846 = vpop.f32.mrf.mxu0
      %v1847 = vadd.f32 0.0, %v1846
      %v1848 = vpop.f32.mrf.mxu0
      %v1849 = vpop.f32.mrf.mxu0
      %v1850 = vadd.f32 0.0, %v1849
      %v1851 = vpop.f32.mrf.mxu0
      %1852 = vmatprep.mubr.bf16.mxu0 0
      %1853 = vmatmul.mubr.bf16.gmra.mxu0 %v1710
      %v1854 = vpop.f32.mrf.mxu0
      %v1855 = vadd.f32 0.0, %v1854
      %v1856 = vpop.f32.mrf.mxu0
      %v1857 = vpop.f32.mrf.mxu0
      %v1858 = vadd.f32 0.0, %v1857
      %v1859 = vpop.f32.mrf.mxu0
      %1860 = vmatprep.mubr.bf16.mxu0 0
      %1861 = vmatmul.mubr.bf16.gmra.mxu0 %v1713
      %v1862 = vpop.f32.mrf.mxu0
      %v1863 = vadd.f32 0.0, %v1862
      %v1864 = vpop.f32.mrf.mxu0
      %v1865 = vpop.f32.mrf.mxu0
      %v1866 = vadd.f32 0.0, %v1865
      %v1867 = vpop.f32.mrf.mxu0
      %1868 = vmatprep.mubr.bf16.mxu0 0
      %1869 = vmatmul.mubr.bf16.gmra.mxu0 %v1716
      %v1870 = vpop.f32.mrf.mxu0
      %v1871 = vadd.f32 0.0, %v1870
      %v1872 = vpop.f32.mrf.mxu0
      %v1873 = vpop.f32.mrf.mxu0
      %v1874 = vadd.f32 0.0, %v1873
      %v1875 = vpop.f32.mrf.mxu0
      %1876 = vmatprep.mubr.bf16.mxu0 0
      %1877 = vmatmul.mubr.bf16.gmra.mxu0 %v1719
      %v1878 = vpop.f32.mrf.mxu0
      %v1879 = vadd.f32 0.0, %v1878
      %v1880 = vpop.f32.mrf.mxu0
      %v1881 = vpop.f32.mrf.mxu0
      %v1882 = vadd.f32 0.0, %v1881
      %v1883 = vpop.f32.mrf.mxu0
      %1884 = vdwg.mxu0
      %v1885 = vadd.f32 %v1591, %v1759
      %v1886 = vadd.f32 %v1592, %v1762
      %v1887 = vadd.f32 %v1593, %v1767
      %v1888 = vadd.f32 %v1594, %v1770
      %v1889 = vadd.f32 %v1595, %v1775
      %v1890 = vadd.f32 %v1596, %v1778
      %v1891 = vadd.f32 %v1597, %v1783
      %v1892 = vadd.f32 %v1598, %v1786
      %v1893 = vadd.f32 %v1599, %v1791
      %v1894 = vadd.f32 %v1600, %v1794
      %v1895 = vadd.f32 %v1601, %v1799
      %v1896 = vadd.f32 %v1602, %v1802
      %v1897 = vadd.f32 %v1603, %v1807
      %v1898 = vadd.f32 %v1604, %v1810
      %v1899 = vadd.f32 %v1605, %v1815
      %v1900 = vadd.f32 %v1606, %v1818
      %v1901 = vadd.f32 %v1607, %v1823
      %v1902 = vadd.f32 %v1608, %v1826
      %v1903 = vadd.f32 %v1609, %v1831
      %v1904 = vadd.f32 %v1610, %v1834
      %v1905 = vadd.f32 %v1611, %v1839
      %v1906 = vadd.f32 %v1612, %v1842
      %v1907 = vadd.f32 %v1613, %v1847
      %v1908 = vadd.f32 %v1614, %v1850
      %v1909 = vadd.f32 %v1615, %v1855
      %v1910 = vadd.f32 %v1616, %v1858
      %v1911 = vadd.f32 %v1617, %v1863
      %v1912 = vadd.f32 %v1618, %v1866
      %v1913 = vadd.f32 %v1619, %v1871
      %v1914 = vadd.f32 %v1620, %v1874
      %v1915 = vadd.f32 %v1621, %v1879
      %v1916 = vadd.f32 %v1622, %v1882
      %1917 = vst.msk [vmem:[#allocation3] sm:$0xff] %vm701, %v1885
      %1918 = vst.msk [vmem:[#allocation3 + $0x8] sm:$0xff] %vm701, %v1886
      %1919 = vst.msk [vmem:[#allocation3 + $0x10] sm:$0xff] %vm701, %v1887
      %1920 = vst.msk [vmem:[#allocation3 + $0x18] sm:$0xff] %vm701, %v1888
      %1921 = vst.msk [vmem:[#allocation3 + $0x20] sm:$0xff] %vm701, %v1889
      %1922 = vst.msk [vmem:[#allocation3 + $0x28] sm:$0xff] %vm701, %v1890
      %1923 = vst.msk [vmem:[#allocation3 + $0x30] sm:$0xff] %vm701, %v1891
      %1924 = vst.msk [vmem:[#allocation3 + $0x38] sm:$0xff] %vm701, %v1892
      %1925 = vst.msk [vmem:[#allocation3 + $0x40] sm:$0xff] %vm701, %v1893
      %1926 = vst.msk [vmem:[#allocation3 + $0x48] sm:$0xff] %vm701, %v1894
      %1927 = vst.msk [vmem:[#allocation3 + $0x50] sm:$0xff] %vm701, %v1895
      %1928 = vst.msk [vmem:[#allocation3 + $0x58] sm:$0xff] %vm701, %v1896
      %1929 = vst.msk [vmem:[#allocation3 + $0x60] sm:$0xff] %vm701, %v1897
      %1930 = vst.msk [vmem:[#allocation3 + $0x68] sm:$0xff] %vm701, %v1898
      %1931 = vst.msk [vmem:[#allocation3 + $0x70] sm:$0xff] %vm701, %v1899
      %1932 = vst.msk [vmem:[#allocation3 + $0x78] sm:$0xff] %vm701, %v1900
      %1933 = vst.msk [vmem:[#allocation3 + $0x80] sm:$0xff] %vm701, %v1901
      %1934 = vst.msk [vmem:[#allocation3 + $0x88] sm:$0xff] %vm701, %v1902
      %1935 = vst.msk [vmem:[#allocation3 + $0x90] sm:$0xff] %vm701, %v1903
      %1936 = vst.msk [vmem:[#allocation3 + $0x98] sm:$0xff] %vm701, %v1904
      %1937 = vst.msk [vmem:[#allocation3 + $0xa0] sm:$0xff] %vm701, %v1905
      %1938 = vst.msk [vmem:[#allocation3 + $0xa8] sm:$0xff] %vm701, %v1906
      %1939 = vst.msk [vmem:[#allocation3 + $0xb0] sm:$0xff] %vm701, %v1907
      %1940 = vst.msk [vmem:[#allocation3 + $0xb8] sm:$0xff] %vm701, %v1908
      %1941 = vst.msk [vmem:[#allocation3 + $0xc0] sm:$0xff] %vm701, %v1909
      %1942 = vst.msk [vmem:[#allocation3 + $0xc8] sm:$0xff] %vm701, %v1910
      %1943 = vst.msk [vmem:[#allocation3 + $0xd0] sm:$0xff] %vm701, %v1911
      %1944 = vst.msk [vmem:[#allocation3 + $0xd8] sm:$0xff] %vm701, %v1912
      %1945 = vst.msk [vmem:[#allocation3 + $0xe0] sm:$0xff] %vm701, %v1913
      %1946 = vst.msk [vmem:[#allocation3 + $0xe8] sm:$0xff] %vm701, %v1914
      %1947 = vst.msk [vmem:[#allocation3 + $0xf0] sm:$0xff] %vm701, %v1915
      %1948 = vst.msk [vmem:[#allocation3 + $0xf8] sm:$0xff] %vm701, %v1916
      %v1949 = vld [vmem:[#allocation2] sm:$0xe]
      %v1950 = vld [vmem:[#allocation2 + $0x4] sm:$0xf]
      %v1951 = vld [vmem:[#allocation2 + $0x8] sm:$0x1]
      %v1952 = vld [vmem:[#allocation2 + $0xc] sm:$0xe]
      %v1953 = vld [vmem:[#allocation2 + $0x10] sm:$0xf]
      %v1954 = vld [vmem:[#allocation2 + $0x14] sm:$0x1]
      %v1955 = vld [vmem:[#allocation2 + $0x18] sm:$0xe]
      %v1956 = vld [vmem:[#allocation2 + $0x1c] sm:$0xf]
      %v1957 = vld [vmem:[#allocation2 + $0x20] sm:$0x1]
      %v1958 = vld [vmem:[#allocation2 + $0x24] sm:$0xe]
      %v1959 = vld [vmem:[#allocation2 + $0x28] sm:$0xf]
      %v1960 = vld [vmem:[#allocation2 + $0x2c] sm:$0x1]
      %v1961 = vld [vmem:[#allocation2 + $0x30] sm:$0xe]
      %v1962 = vld [vmem:[#allocation2 + $0x34] sm:$0xf]
      %v1963 = vld [vmem:[#allocation2 + $0x38] sm:$0x1]
      %v1964 = vld [vmem:[#allocation2 + $0x3c] sm:$0xe]
      %v1965 = vld [vmem:[#allocation2 + $0x40] sm:$0xf]
      %v1966 = vld [vmem:[#allocation2 + $0x44] sm:$0x1]
      %v1967 = vld [vmem:[#allocation2 + $0x48] sm:$0xe]
      %v1968 = vld [vmem:[#allocation2 + $0x4c] sm:$0xf]
      %v1969 = vld [vmem:[#allocation2 + $0x50] sm:$0x1]
      %v1970 = vld [vmem:[#allocation2 + $0x54] sm:$0xe]
      %v1971 = vld [vmem:[#allocation2 + $0x58] sm:$0xf]
      %v1972 = vld [vmem:[#allocation2 + $0x5c] sm:$0x1]
      %v1973 = vld [vmem:[#allocation2 + $0x60] sm:$0xe]
      %v1974 = vld [vmem:[#allocation2 + $0x64] sm:$0xf]
      %v1975 = vld [vmem:[#allocation2 + $0x68] sm:$0x1]
      %v1976 = vld [vmem:[#allocation2 + $0x6c] sm:$0xe]
      %v1977 = vld [vmem:[#allocation2 + $0x70] sm:$0xf]
      %v1978 = vld [vmem:[#allocation2 + $0x74] sm:$0x1]
      %v1979 = vld [vmem:[#allocation2 + $0x78] sm:$0xe]
      %v1980 = vld [vmem:[#allocation2 + $0x7c] sm:$0xf]
      %v1981 = vld [vmem:[#allocation2 + $0x80] sm:$0x1]
      %v1982 = vld [vmem:[#allocation2 + $0x84] sm:$0xe]
      %v1983 = vld [vmem:[#allocation2 + $0x88] sm:$0xf]
      %v1984 = vld [vmem:[#allocation2 + $0x8c] sm:$0x1]
      %v1985 = vld [vmem:[#allocation2 + $0x90] sm:$0xe]
      %v1986 = vld [vmem:[#allocation2 + $0x94] sm:$0xf]
      %v1987 = vld [vmem:[#allocation2 + $0x98] sm:$0x1]
      %v1988 = vld [vmem:[#allocation2 + $0x9c] sm:$0xe]
      %v1989 = vld [vmem:[#allocation2 + $0xa0] sm:$0xf]
      %v1990 = vld [vmem:[#allocation2 + $0xa4] sm:$0x1]
      %v1991 = vld [vmem:[#allocation2 + $0xa8] sm:$0xe]
      %v1992 = vld [vmem:[#allocation2 + $0xac] sm:$0xf]
      %v1993 = vld [vmem:[#allocation2 + $0xb0] sm:$0x1]
      %v1994 = vld [vmem:[#allocation2 + $0xb4] sm:$0xe]
      %v1995 = vld [vmem:[#allocation2 + $0xb8] sm:$0xf]
      %v1996 = vld [vmem:[#allocation2 + $0xbc] sm:$0x1]
      %vm2045 = vcmask 1042432
      %vm2046 = vcmask 1046532
      %vm2047 = vmor %vm2045, %vm2046
      %v2048 = vrot.slane %v1949, 5
      %v2049 = vrot.slane %v2048, 4
      %v2050 = vrot.slane %v1950, 5
      %v2051 = vsel %vm2047, %v2049, %v2050
      %v2052 = vrot.slane %v2050, 4
      %v2053 = vrot.slane %v1951, 5
      %v2054 = vsel %vm2047, %v2052, %v2053
      %v2055 = vrot.slane %v1952, 5
      %v2056 = vrot.slane %v2055, 4
      %v2057 = vrot.slane %v1953, 5
      %v2058 = vsel %vm2047, %v2056, %v2057
      %v2059 = vrot.slane %v2057, 4
      %v2060 = vrot.slane %v1954, 5
      %v2061 = vsel %vm2047, %v2059, %v2060
      %v2062 = vrot.slane %v1955, 5
      %v2063 = vrot.slane %v2062, 4
      %v2064 = vrot.slane %v1956, 5
      %v2065 = vsel %vm2047, %v2063, %v2064
      %v2066 = vrot.slane %v2064, 4
      %v2067 = vrot.slane %v1957, 5
      %v2068 = vsel %vm2047, %v2066, %v2067
      %v2069 = vrot.slane %v1958, 5
      %v2070 = vrot.slane %v2069, 4
      %v2071 = vrot.slane %v1959, 5
      %v2072 = vsel %vm2047, %v2070, %v2071
      %v2073 = vrot.slane %v2071, 4
      %v2074 = vrot.slane %v1960, 5
      %v2075 = vsel %vm2047, %v2073, %v2074
      %v2076 = vrot.slane %v1961, 5
      %v2077 = vrot.slane %v2076, 4
      %v2078 = vrot.slane %v1962, 5
      %v2079 = vsel %vm2047, %v2077, %v2078
      %v2080 = vrot.slane %v2078, 4
      %v2081 = vrot.slane %v1963, 5
      %v2082 = vsel %vm2047, %v2080, %v2081
      %v2083 = vrot.slane %v1964, 5
      %v2084 = vrot.slane %v2083, 4
      %v2085 = vrot.slane %v1965, 5
      %v2086 = vsel %vm2047, %v2084, %v2085
      %v2087 = vrot.slane %v2085, 4
      %v2088 = vrot.slane %v1966, 5
      %v2089 = vsel %vm2047, %v2087, %v2088
      %v2090 = vrot.slane %v1967, 5
      %v2091 = vrot.slane %v2090, 4
      %v2092 = vrot.slane %v1968, 5
      %v2093 = vsel %vm2047, %v2091, %v2092
      %v2094 = vrot.slane %v2092, 4
      %v2095 = vrot.slane %v1969, 5
      %v2096 = vsel %vm2047, %v2094, %v2095
      %v2097 = vrot.slane %v1970, 5
      %v2098 = vrot.slane %v2097, 4
      %v2099 = vrot.slane %v1971, 5
      %v2100 = vsel %vm2047, %v2098, %v2099
      %v2101 = vrot.slane %v2099, 4
      %v2102 = vrot.slane %v1972, 5
      %v2103 = vsel %vm2047, %v2101, %v2102
      %v2104 = vrot.slane %v1973, 5
      %v2105 = vrot.slane %v2104, 4
      %v2106 = vrot.slane %v1974, 5
      %v2107 = vsel %vm2047, %v2105, %v2106
      %v2108 = vrot.slane %v2106, 4
      %v2109 = vrot.slane %v1975, 5
      %v2110 = vsel %vm2047, %v2108, %v2109
      %v2111 = vrot.slane %v1976, 5
      %v2112 = vrot.slane %v2111, 4
      %v2113 = vrot.slane %v1977, 5
      %v2114 = vsel %vm2047, %v2112, %v2113
      %v2115 = vrot.slane %v2113, 4
      %v2116 = vrot.slane %v1978, 5
      %v2117 = vsel %vm2047, %v2115, %v2116
      %v2118 = vrot.slane %v1979, 5
      %v2119 = vrot.slane %v2118, 4
      %v2120 = vrot.slane %v1980, 5
      %v2121 = vsel %vm2047, %v2119, %v2120
      %v2122 = vrot.slane %v2120, 4
      %v2123 = vrot.slane %v1981, 5
      %v2124 = vsel %vm2047, %v2122, %v2123
      %v2125 = vrot.slane %v1982, 5
      %v2126 = vrot.slane %v2125, 4
      %v2127 = vrot.slane %v1983, 5
      %v2128 = vsel %vm2047, %v2126, %v2127
      %v2129 = vrot.slane %v2127, 4
      %v2130 = vrot.slane %v1984, 5
      %v2131 = vsel %vm2047, %v2129, %v2130
      %v2132 = vrot.slane %v1985, 5
      %v2133 = vrot.slane %v2132, 4
      %v2134 = vrot.slane %v1986, 5
      %v2135 = vsel %vm2047, %v2133, %v2134
      %v2136 = vrot.slane %v2134, 4
      %v2137 = vrot.slane %v1987, 5
      %v2138 = vsel %vm2047, %v2136, %v2137
      %v2139 = vrot.slane %v1988, 5
      %v2140 = vrot.slane %v2139, 4
      %v2141 = vrot.slane %v1989, 5
      %v2142 = vsel %vm2047, %v2140, %v2141
      %v2143 = vrot.slane %v2141, 4
      %v2144 = vrot.slane %v1990, 5
      %v2145 = vsel %vm2047, %v2143, %v2144
      %v2146 = vrot.slane %v1991, 5
      %v2147 = vrot.slane %v2146, 4
      %v2148 = vrot.slane %v1992, 5
      %v2149 = vsel %vm2047, %v2147, %v2148
      %v2150 = vrot.slane %v2148, 4
      %v2151 = vrot.slane %v1993, 5
      %v2152 = vsel %vm2047, %v2150, %v2151
      %v2153 = vrot.slane %v1994, 5
      %v2154 = vrot.slane %v2153, 4
      %v2155 = vrot.slane %v1995, 5
      %v2156 = vsel %vm2047, %v2154, %v2155
      %v2157 = vrot.slane %v2155, 4
      %v2158 = vrot.slane %v1996, 5
      %v2159 = vsel %vm2047, %v2157, %v2158
      %v2160 = vld [vmem:[#allocation3] sm:$0xff]
      %v2161 = vld [vmem:[#allocation3 + $0x8] sm:$0xff]
      %v2162 = vld [vmem:[#allocation3 + $0x10] sm:$0xff]
      %v2163 = vld [vmem:[#allocation3 + $0x18] sm:$0xff]
      %v2164 = vld [vmem:[#allocation3 + $0x20] sm:$0xff]
      %v2165 = vld [vmem:[#allocation3 + $0x28] sm:$0xff]
      %v2166 = vld [vmem:[#allocation3 + $0x30] sm:$0xff]
      %v2167 = vld [vmem:[#allocation3 + $0x38] sm:$0xff]
      %v2168 = vld [vmem:[#allocation3 + $0x40] sm:$0xff]
      %v2169 = vld [vmem:[#allocation3 + $0x48] sm:$0xff]
      %v2170 = vld [vmem:[#allocation3 + $0x50] sm:$0xff]
      %v2171 = vld [vmem:[#allocation3 + $0x58] sm:$0xff]
      %v2172 = vld [vmem:[#allocation3 + $0x60] sm:$0xff]
      %v2173 = vld [vmem:[#allocation3 + $0x68] sm:$0xff]
      %v2174 = vld [vmem:[#allocation3 + $0x70] sm:$0xff]
      %v2175 = vld [vmem:[#allocation3 + $0x78] sm:$0xff]
      %v2176 = vld [vmem:[#allocation3 + $0x80] sm:$0xff]
      %v2177 = vld [vmem:[#allocation3 + $0x88] sm:$0xff]
      %v2178 = vld [vmem:[#allocation3 + $0x90] sm:$0xff]
      %v2179 = vld [vmem:[#allocation3 + $0x98] sm:$0xff]
      %v2180 = vld [vmem:[#allocation3 + $0xa0] sm:$0xff]
      %v2181 = vld [vmem:[#allocation3 + $0xa8] sm:$0xff]
      %v2182 = vld [vmem:[#allocation3 + $0xb0] sm:$0xff]
      %v2183 = vld [vmem:[#allocation3 + $0xb8] sm:$0xff]
      %v2184 = vld [vmem:[#allocation3 + $0xc0] sm:$0xff]
      %v2185 = vld [vmem:[#allocation3 + $0xc8] sm:$0xff]
      %v2186 = vld [vmem:[#allocation3 + $0xd0] sm:$0xff]
      %v2187 = vld [vmem:[#allocation3 + $0xd8] sm:$0xff]
      %v2188 = vld [vmem:[#allocation3 + $0xe0] sm:$0xff]
      %v2189 = vld [vmem:[#allocation3 + $0xe8] sm:$0xff]
      %v2190 = vld [vmem:[#allocation3 + $0xf0] sm:$0xff]
      %v2191 = vld [vmem:[#allocation3 + $0xf8] sm:$0xff]
      %s2192 = scalar_lea.vmem %s1, 8
      %v2193 = vld [vmem:[%s2192] sm:$0xf]
      %v2194 = vunpack.c.l.b16 %v2051
      %v2195 = vunpack.c.l.b16 %v2054
      %v2196 = vunpack.c.l.b16 %v2058
      %v2197 = vunpack.c.l.b16 %v2061
      %v2198 = vunpack.c.l.b16 %v2065
      %v2199 = vunpack.c.l.b16 %v2068
      %v2200 = vunpack.c.l.b16 %v2072
      %v2201 = vunpack.c.l.b16 %v2075
      %v2202 = vunpack.c.l.b16 %v2079
      %v2203 = vunpack.c.l.b16 %v2082
      %v2204 = vunpack.c.l.b16 %v2086
      %v2205 = vunpack.c.l.b16 %v2089
      %v2206 = vunpack.c.l.b16 %v2093
      %v2207 = vunpack.c.l.b16 %v2096
      %v2208 = vunpack.c.l.b16 %v2100
      %v2209 = vunpack.c.l.b16 %v2103
      %v2210 = vunpack.c.l.b16 %v2107
      %v2211 = vunpack.c.l.b16 %v2110
      %v2212 = vunpack.c.l.b16 %v2114
      %v2213 = vunpack.c.l.b16 %v2117
      %v2214 = vunpack.c.l.b16 %v2121
      %v2215 = vunpack.c.l.b16 %v2124
      %v2216 = vunpack.c.l.b16 %v2128
      %v2217 = vunpack.c.l.b16 %v2131
      %v2218 = vunpack.c.l.b16 %v2135
      %v2219 = vunpack.c.l.b16 %v2138
      %v2220 = vunpack.c.l.b16 %v2142
      %v2221 = vunpack.c.l.b16 %v2145
      %v2222 = vunpack.c.l.b16 %v2149
      %v2223 = vunpack.c.l.b16 %v2152
      %v2224 = vunpack.c.l.b16 %v2156
      %v2225 = vunpack.c.l.b16 %v2159
      %v2226 = vpack.c.b16 %v2195, %v2194
      %v2227 = vpack.c.b16 %v2197, %v2196
      %v2228 = vpack.c.b16 %v2199, %v2198
      %v2229 = vpack.c.b16 %v2201, %v2200
      %v2230 = vpack.c.b16 %v2203, %v2202
      %v2231 = vpack.c.b16 %v2205, %v2204
      %v2232 = vpack.c.b16 %v2207, %v2206
      %v2233 = vpack.c.b16 %v2209, %v2208
      %v2234 = vpack.c.b16 %v2211, %v2210
      %v2235 = vpack.c.b16 %v2213, %v2212
      %v2236 = vpack.c.b16 %v2215, %v2214
      %v2237 = vpack.c.b16 %v2217, %v2216
      %v2238 = vpack.c.b16 %v2219, %v2218
      %v2239 = vpack.c.b16 %v2221, %v2220
      %v2240 = vpack.c.b16 %v2223, %v2222
      %v2241 = vpack.c.b16 %v2225, %v2224
      %v2243 = vsel %vm701, %v2226, 0
      %v2246 = vsel %vm701, %v2227, 0
      %v2249 = vsel %vm701, %v2228, 0
      %v2252 = vsel %vm701, %v2229, 0
      %v2255 = vsel %vm701, %v2230, 0
      %v2258 = vsel %vm701, %v2231, 0
      %v2261 = vsel %vm701, %v2232, 0
      %v2264 = vsel %vm701, %v2233, 0
      %v2267 = vsel %vm701, %v2234, 0
      %v2270 = vsel %vm701, %v2235, 0
      %v2273 = vsel %vm701, %v2236, 0
      %v2276 = vsel %vm701, %v2237, 0
      %v2279 = vsel %vm701, %v2238, 0
      %v2282 = vsel %vm701, %v2239, 0
      %v2285 = vsel %vm701, %v2240, 0
      %v2288 = vsel %vm701, %v2241, 0
      %v2291 = vsel %vm927, %v2193, 0
      %2293 = vmatprep.subr.bf16.mxu0 0
      %2294 = vmatpush1.bf16.msra.mxu0 0
      %2295 = vmatprep.subr.bf16.mxu0 0
      %2296 = vmatpush1.bf16.msra.mxu0 0
      %2297 = vmatprep.subr.bf16.mxu0 0
      %2298 = vmatpush1.bf16.msra.mxu0 0
      %2299 = vmatprep.subr.bf16.mxu0 0
      %2300 = vmatpush1.bf16.msra.mxu0 0
      %2301 = vmatprep.subr.bf16.mxu0 0
      %2302 = vmatpush1.bf16.msra.mxu0 0
      %2303 = vmatprep.subr.bf16.mxu0 0
      %2304 = vmatpush1.bf16.msra.mxu0 0
      %2305 = vmatprep.subr.bf16.mxu0 0
      %2306 = vmatpush1.bf16.msra.mxu0 0
      %2307 = vmatprep.subr.bf16.mxu0 0
      %2308 = vmatpush1.bf16.msra.mxu0 %v2291
      %2309 = vmatprep.subr.bf16.mxu0 0
      %2310 = vmatpush2.bf16.msra.mxu0 0
      %2311 = vmatprep.subr.bf16.mxu0 0
      %2312 = vmatpush2.bf16.msra.mxu0 0
      %2313 = vmatprep.subr.bf16.mxu0 0
      %2314 = vmatpush2.bf16.msra.mxu0 0
      %2315 = vmatprep.subr.bf16.mxu0 0
      %2316 = vmatpush2.bf16.msra.mxu0 0
      %2317 = vmatprep.subr.bf16.mxu0 0
      %2318 = vmatpush2.bf16.msra.mxu0 0
      %2319 = vmatprep.subr.bf16.mxu0 0
      %2320 = vmatpush2.bf16.msra.mxu0 0
      %2321 = vmatprep.subr.bf16.mxu0 0
      %2322 = vmatpush2.bf16.msra.mxu0 0
      %2323 = vmatprep.subr.bf16.mxu0 0
      %2324 = vmatpush2.bf16.msra.mxu0 0
      %2325 = vmatprep.mubr.bf16.mxu0 0
      %2326 = vmatmul.mubr.bf16.gmra.mxu0 %v2243
      %v2327 = vpop.f32.mrf.mxu0
      %v2328 = vadd.f32 0.0, %v2327
      %v2329 = vpop.f32.mrf.mxu0
      %v2330 = vpop.f32.mrf.mxu0
      %v2331 = vadd.f32 0.0, %v2330
      %v2332 = vpop.f32.mrf.mxu0
      %2333 = vmatprep.mubr.bf16.mxu0 0
      %2334 = vmatmul.mubr.bf16.gmra.mxu0 %v2246
      %v2335 = vpop.f32.mrf.mxu0
      %v2336 = vadd.f32 0.0, %v2335
      %v2337 = vpop.f32.mrf.mxu0
      %v2338 = vpop.f32.mrf.mxu0
      %v2339 = vadd.f32 0.0, %v2338
      %v2340 = vpop.f32.mrf.mxu0
      %2341 = vmatprep.mubr.bf16.mxu0 0
      %2342 = vmatmul.mubr.bf16.gmra.mxu0 %v2249
      %v2343 = vpop.f32.mrf.mxu0
      %v2344 = vadd.f32 0.0, %v2343
      %v2345 = vpop.f32.mrf.mxu0
      %v2346 = vpop.f32.mrf.mxu0
      %v2347 = vadd.f32 0.0, %v2346
      %v2348 = vpop.f32.mrf.mxu0
      %2349 = vmatprep.mubr.bf16.mxu0 0
      %2350 = vmatmul.mubr.bf16.gmra.mxu0 %v2252
      %v2351 = vpop.f32.mrf.mxu0
      %v2352 = vadd.f32 0.0, %v2351
      %v2353 = vpop.f32.mrf.mxu0
      %v2354 = vpop.f32.mrf.mxu0
      %v2355 = vadd.f32 0.0, %v2354
      %v2356 = vpop.f32.mrf.mxu0
      %2357 = vmatprep.mubr.bf16.mxu0 0
      %2358 = vmatmul.mubr.bf16.gmra.mxu0 %v2255
      %v2359 = vpop.f32.mrf.mxu0
      %v2360 = vadd.f32 0.0, %v2359
      %v2361 = vpop.f32.mrf.mxu0
      %v2362 = vpop.f32.mrf.mxu0
      %v2363 = vadd.f32 0.0, %v2362
      %v2364 = vpop.f32.mrf.mxu0
      %2365 = vmatprep.mubr.bf16.mxu0 0
      %2366 = vmatmul.mubr.bf16.gmra.mxu0 %v2258
      %v2367 = vpop.f32.mrf.mxu0
      %v2368 = vadd.f32 0.0, %v2367
      %v2369 = vpop.f32.mrf.mxu0
      %v2370 = vpop.f32.mrf.mxu0
      %v2371 = vadd.f32 0.0, %v2370
      %v2372 = vpop.f32.mrf.mxu0
      %2373 = vmatprep.mubr.bf16.mxu0 0
      %2374 = vmatmul.mubr.bf16.gmra.mxu0 %v2261
      %v2375 = vpop.f32.mrf.mxu0
      %v2376 = vadd.f32 0.0, %v2375
      %v2377 = vpop.f32.mrf.mxu0
      %v2378 = vpop.f32.mrf.mxu0
      %v2379 = vadd.f32 0.0, %v2378
      %v2380 = vpop.f32.mrf.mxu0
      %2381 = vmatprep.mubr.bf16.mxu0 0
      %2382 = vmatmul.mubr.bf16.gmra.mxu0 %v2264
      %v2383 = vpop.f32.mrf.mxu0
      %v2384 = vadd.f32 0.0, %v2383
      %v2385 = vpop.f32.mrf.mxu0
      %v2386 = vpop.f32.mrf.mxu0
      %v2387 = vadd.f32 0.0, %v2386
      %v2388 = vpop.f32.mrf.mxu0
      %2389 = vmatprep.mubr.bf16.mxu0 0
      %2390 = vmatmul.mubr.bf16.gmra.mxu0 %v2267
      %v2391 = vpop.f32.mrf.mxu0
      %v2392 = vadd.f32 0.0, %v2391
      %v2393 = vpop.f32.mrf.mxu0
      %v2394 = vpop.f32.mrf.mxu0
      %v2395 = vadd.f32 0.0, %v2394
      %v2396 = vpop.f32.mrf.mxu0
      %2397 = vmatprep.mubr.bf16.mxu0 0
      %2398 = vmatmul.mubr.bf16.gmra.mxu0 %v2270
      %v2399 = vpop.f32.mrf.mxu0
      %v2400 = vadd.f32 0.0, %v2399
      %v2401 = vpop.f32.mrf.mxu0
      %v2402 = vpop.f32.mrf.mxu0
      %v2403 = vadd.f32 0.0, %v2402
      %v2404 = vpop.f32.mrf.mxu0
      %2405 = vmatprep.mubr.bf16.mxu0 0
      %2406 = vmatmul.mubr.bf16.gmra.mxu0 %v2273
      %v2407 = vpop.f32.mrf.mxu0
      %v2408 = vadd.f32 0.0, %v2407
      %v2409 = vpop.f32.mrf.mxu0
      %v2410 = vpop.f32.mrf.mxu0
      %v2411 = vadd.f32 0.0, %v2410
      %v2412 = vpop.f32.mrf.mxu0
      %2413 = vmatprep.mubr.bf16.mxu0 0
      %2414 = vmatmul.mubr.bf16.gmra.mxu0 %v2276
      %v2415 = vpop.f32.mrf.mxu0
      %v2416 = vadd.f32 0.0, %v2415
      %v2417 = vpop.f32.mrf.mxu0
      %v2418 = vpop.f32.mrf.mxu0
      %v2419 = vadd.f32 0.0, %v2418
      %v2420 = vpop.f32.mrf.mxu0
      %2421 = vmatprep.mubr.bf16.mxu0 0
      %2422 = vmatmul.mubr.bf16.gmra.mxu0 %v2279
      %v2423 = vpop.f32.mrf.mxu0
      %v2424 = vadd.f32 0.0, %v2423
      %v2425 = vpop.f32.mrf.mxu0
      %v2426 = vpop.f32.mrf.mxu0
      %v2427 = vadd.f32 0.0, %v2426
      %v2428 = vpop.f32.mrf.mxu0
      %2429 = vmatprep.mubr.bf16.mxu0 0
      %2430 = vmatmul.mubr.bf16.gmra.mxu0 %v2282
      %v2431 = vpop.f32.mrf.mxu0
      %v2432 = vadd.f32 0.0, %v2431
      %v2433 = vpop.f32.mrf.mxu0
      %v2434 = vpop.f32.mrf.mxu0
      %v2435 = vadd.f32 0.0, %v2434
      %v2436 = vpop.f32.mrf.mxu0
      %2437 = vmatprep.mubr.bf16.mxu0 0
      %2438 = vmatmul.mubr.bf16.gmra.mxu0 %v2285
      %v2439 = vpop.f32.mrf.mxu0
      %v2440 = vadd.f32 0.0, %v2439
      %v2441 = vpop.f32.mrf.mxu0
      %v2442 = vpop.f32.mrf.mxu0
      %v2443 = vadd.f32 0.0, %v2442
      %v2444 = vpop.f32.mrf.mxu0
      %2445 = vmatprep.mubr.bf16.mxu0 0
      %2446 = vmatmul.mubr.bf16.gmra.mxu0 %v2288
      %v2447 = vpop.f32.mrf.mxu0
      %v2448 = vadd.f32 0.0, %v2447
      %v2449 = vpop.f32.mrf.mxu0
      %v2450 = vpop.f32.mrf.mxu0
      %v2451 = vadd.f32 0.0, %v2450
      %v2452 = vpop.f32.mrf.mxu0
      %2453 = vdwg.mxu0
      %v2454 = vadd.f32 %v2160, %v2328
      %v2455 = vadd.f32 %v2161, %v2331
      %v2456 = vadd.f32 %v2162, %v2336
      %v2457 = vadd.f32 %v2163, %v2339
      %v2458 = vadd.f32 %v2164, %v2344
      %v2459 = vadd.f32 %v2165, %v2347
      %v2460 = vadd.f32 %v2166, %v2352
      %v2461 = vadd.f32 %v2167, %v2355
      %v2462 = vadd.f32 %v2168, %v2360
      %v2463 = vadd.f32 %v2169, %v2363
      %v2464 = vadd.f32 %v2170, %v2368
      %v2465 = vadd.f32 %v2171, %v2371
      %v2466 = vadd.f32 %v2172, %v2376
      %v2467 = vadd.f32 %v2173, %v2379
      %v2468 = vadd.f32 %v2174, %v2384
      %v2469 = vadd.f32 %v2175, %v2387
      %v2470 = vadd.f32 %v2176, %v2392
      %v2471 = vadd.f32 %v2177, %v2395
      %v2472 = vadd.f32 %v2178, %v2400
      %v2473 = vadd.f32 %v2179, %v2403
      %v2474 = vadd.f32 %v2180, %v2408
      %v2475 = vadd.f32 %v2181, %v2411
      %v2476 = vadd.f32 %v2182, %v2416
      %v2477 = vadd.f32 %v2183, %v2419
      %v2478 = vadd.f32 %v2184, %v2424
      %v2479 = vadd.f32 %v2185, %v2427
      %v2480 = vadd.f32 %v2186, %v2432
      %v2481 = vadd.f32 %v2187, %v2435
      %v2482 = vadd.f32 %v2188, %v2440
      %v2483 = vadd.f32 %v2189, %v2443
      %v2484 = vadd.f32 %v2190, %v2448
      %v2485 = vadd.f32 %v2191, %v2451
      %2486 = vst.msk [vmem:[#allocation3] sm:$0xff] %vm701, %v2454
      %2487 = vst.msk [vmem:[#allocation3 + $0x8] sm:$0xff] %vm701, %v2455
      %2488 = vst.msk [vmem:[#allocation3 + $0x10] sm:$0xff] %vm701, %v2456
      %2489 = vst.msk [vmem:[#allocation3 + $0x18] sm:$0xff] %vm701, %v2457
      %2490 = vst.msk [vmem:[#allocation3 + $0x20] sm:$0xff] %vm701, %v2458
      %2491 = vst.msk [vmem:[#allocation3 + $0x28] sm:$0xff] %vm701, %v2459
      %2492 = vst.msk [vmem:[#allocation3 + $0x30] sm:$0xff] %vm701, %v2460
      %2493 = vst.msk [vmem:[#allocation3 + $0x38] sm:$0xff] %vm701, %v2461
      %2494 = vst.msk [vmem:[#allocation3 + $0x40] sm:$0xff] %vm701, %v2462
      %2495 = vst.msk [vmem:[#allocation3 + $0x48] sm:$0xff] %vm701, %v2463
      %2496 = vst.msk [vmem:[#allocation3 + $0x50] sm:$0xff] %vm701, %v2464
      %2497 = vst.msk [vmem:[#allocation3 + $0x58] sm:$0xff] %vm701, %v2465
      %2498 = vst.msk [vmem:[#allocation3 + $0x60] sm:$0xff] %vm701, %v2466
      %2499 = vst.msk [vmem:[#allocation3 + $0x68] sm:$0xff] %vm701, %v2467
      %2500 = vst.msk [vmem:[#allocation3 + $0x70] sm:$0xff] %vm701, %v2468
      %2501 = vst.msk [vmem:[#allocation3 + $0x78] sm:$0xff] %vm701, %v2469
      %2502 = vst.msk [vmem:[#allocation3 + $0x80] sm:$0xff] %vm701, %v2470
      %2503 = vst.msk [vmem:[#allocation3 + $0x88] sm:$0xff] %vm701, %v2471
      %2504 = vst.msk [vmem:[#allocation3 + $0x90] sm:$0xff] %vm701, %v2472
      %2505 = vst.msk [vmem:[#allocation3 + $0x98] sm:$0xff] %vm701, %v2473
      %2506 = vst.msk [vmem:[#allocation3 + $0xa0] sm:$0xff] %vm701, %v2474
      %2507 = vst.msk [vmem:[#allocation3 + $0xa8] sm:$0xff] %vm701, %v2475
      %2508 = vst.msk [vmem:[#allocation3 + $0xb0] sm:$0xff] %vm701, %v2476
      %2509 = vst.msk [vmem:[#allocation3 + $0xb8] sm:$0xff] %vm701, %v2477
      %2510 = vst.msk [vmem:[#allocation3 + $0xc0] sm:$0xff] %vm701, %v2478
      %2511 = vst.msk [vmem:[#allocation3 + $0xc8] sm:$0xff] %vm701, %v2479
      %2512 = vst.msk [vmem:[#allocation3 + $0xd0] sm:$0xff] %vm701, %v2480
      %2513 = vst.msk [vmem:[#allocation3 + $0xd8] sm:$0xff] %vm701, %v2481
      %2514 = vst.msk [vmem:[#allocation3 + $0xe0] sm:$0xff] %vm701, %v2482
      %2515 = vst.msk [vmem:[#allocation3 + $0xe8] sm:$0xff] %vm701, %v2483
      %2516 = vst.msk [vmem:[#allocation3 + $0xf0] sm:$0xff] %vm701, %v2484
      %2517 = vst.msk [vmem:[#allocation3 + $0xf8] sm:$0xff] %vm701, %v2485
      %v2518 = vld [vmem:[%s583] sm:$0xf]
      %v2519 = vld [vmem:[%s583 + $0x4] sm:$0xf]
      %v2520 = vld [vmem:[%s583 + $0xc] sm:$0xf]
      %v2521 = vld [vmem:[%s583 + $0x10] sm:$0xf]
      %v2522 = vld [vmem:[%s583 + $0x18] sm:$0xf]
      %v2523 = vld [vmem:[%s583 + $0x1c] sm:$0xf]
      %v2524 = vld [vmem:[%s583 + $0x24] sm:$0xf]
      %v2525 = vld [vmem:[%s583 + $0x28] sm:$0xf]
      %v2526 = vld [vmem:[%s583 + $0x30] sm:$0xf]
      %v2527 = vld [vmem:[%s583 + $0x34] sm:$0xf]
      %v2528 = vld [vmem:[%s583 + $0x3c] sm:$0xf]
      %v2529 = vld [vmem:[%s583 + $0x40] sm:$0xf]
      %v2530 = vld [vmem:[%s583 + $0x48] sm:$0xf]
      %v2531 = vld [vmem:[%s583 + $0x4c] sm:$0xf]
      %v2532 = vld [vmem:[%s583 + $0x54] sm:$0xf]
      %v2533 = vld [vmem:[%s583 + $0x58] sm:$0xf]
      %v2534 = vld [vmem:[%s583 + $0x60] sm:$0xf]
      %v2535 = vld [vmem:[%s583 + $0x64] sm:$0xf]
      %v2536 = vld [vmem:[%s583 + $0x6c] sm:$0xf]
      %v2537 = vld [vmem:[%s583 + $0x70] sm:$0xf]
      %v2538 = vld [vmem:[%s583 + $0x78] sm:$0xf]
      %v2539 = vld [vmem:[%s583 + $0x7c] sm:$0xf]
      %v2540 = vld [vmem:[%s583 + $0x84] sm:$0xf]
      %v2541 = vld [vmem:[%s583 + $0x88] sm:$0xf]
      %v2542 = vld [vmem:[%s583 + $0x90] sm:$0xf]
      %v2543 = vld [vmem:[%s583 + $0x94] sm:$0xf]
      %v2544 = vld [vmem:[%s583 + $0x9c] sm:$0xf]
      %v2545 = vld [vmem:[%s583 + $0xa0] sm:$0xf]
      %v2546 = vld [vmem:[%s583 + $0xa8] sm:$0xf]
      %v2547 = vld [vmem:[%s583 + $0xac] sm:$0xf]
      %v2548 = vld [vmem:[%s583 + $0xb4] sm:$0xf]
      %v2549 = vld [vmem:[%s583 + $0xb8] sm:$0xf]
      %v2550 = vld [vmem:[#allocation3] sm:$0xff]
      %v2551 = vld [vmem:[#allocation3 + $0x8] sm:$0xff]
      %v2552 = vld [vmem:[#allocation3 + $0x10] sm:$0xff]
      %v2553 = vld [vmem:[#allocation3 + $0x18] sm:$0xff]
      %v2554 = vld [vmem:[#allocation3 + $0x20] sm:$0xff]
      %v2555 = vld [vmem:[#allocation3 + $0x28] sm:$0xff]
      %v2556 = vld [vmem:[#allocation3 + $0x30] sm:$0xff]
      %v2557 = vld [vmem:[#allocation3 + $0x38] sm:$0xff]
      %v2558 = vld [vmem:[#allocation3 + $0x40] sm:$0xff]
      %v2559 = vld [vmem:[#allocation3 + $0x48] sm:$0xff]
      %v2560 = vld [vmem:[#allocation3 + $0x50] sm:$0xff]
      %v2561 = vld [vmem:[#allocation3 + $0x58] sm:$0xff]
      %v2562 = vld [vmem:[#allocation3 + $0x60] sm:$0xff]
      %v2563 = vld [vmem:[#allocation3 + $0x68] sm:$0xff]
      %v2564 = vld [vmem:[#allocation3 + $0x70] sm:$0xff]
      %v2565 = vld [vmem:[#allocation3 + $0x78] sm:$0xff]
      %v2566 = vld [vmem:[#allocation3 + $0x80] sm:$0xff]
      %v2567 = vld [vmem:[#allocation3 + $0x88] sm:$0xff]
      %v2568 = vld [vmem:[#allocation3 + $0x90] sm:$0xff]
      %v2569 = vld [vmem:[#allocation3 + $0x98] sm:$0xff]
      %v2570 = vld [vmem:[#allocation3 + $0xa0] sm:$0xff]
      %v2571 = vld [vmem:[#allocation3 + $0xa8] sm:$0xff]
      %v2572 = vld [vmem:[#allocation3 + $0xb0] sm:$0xff]
      %v2573 = vld [vmem:[#allocation3 + $0xb8] sm:$0xff]
      %v2574 = vld [vmem:[#allocation3 + $0xc0] sm:$0xff]
      %v2575 = vld [vmem:[#allocation3 + $0xc8] sm:$0xff]
      %v2576 = vld [vmem:[#allocation3 + $0xd0] sm:$0xff]
      %v2577 = vld [vmem:[#allocation3 + $0xd8] sm:$0xff]
      %v2578 = vld [vmem:[#allocation3 + $0xe0] sm:$0xff]
      %v2579 = vld [vmem:[#allocation3 + $0xe8] sm:$0xff]
      %v2580 = vld [vmem:[#allocation3 + $0xf0] sm:$0xff]
      %v2581 = vld [vmem:[#allocation3 + $0xf8] sm:$0xff]
      %s2582 = scalar_lea.vmem %s1, 12
      %v2583 = vld [vmem:[%s2582] sm:$0xf]
      %v2616 = vunpack.c.l.b16 %v2518
      %v2617 = vunpack.c.l.b16 %v2519
      %v2618 = vunpack.c.l.b16 %v2520
      %v2619 = vunpack.c.l.b16 %v2521
      %v2620 = vunpack.c.l.b16 %v2522
      %v2621 = vunpack.c.l.b16 %v2523
      %v2622 = vunpack.c.l.b16 %v2524
      %v2623 = vunpack.c.l.b16 %v2525
      %v2624 = vunpack.c.l.b16 %v2526
      %v2625 = vunpack.c.l.b16 %v2527
      %v2626 = vunpack.c.l.b16 %v2528
      %v2627 = vunpack.c.l.b16 %v2529
      %v2628 = vunpack.c.l.b16 %v2530
      %v2629 = vunpack.c.l.b16 %v2531
      %v2630 = vunpack.c.l.b16 %v2532
      %v2631 = vunpack.c.l.b16 %v2533
      %v2632 = vunpack.c.l.b16 %v2534
      %v2633 = vunpack.c.l.b16 %v2535
      %v2634 = vunpack.c.l.b16 %v2536
      %v2635 = vunpack.c.l.b16 %v2537
      %v2636 = vunpack.c.l.b16 %v2538
      %v2637 = vunpack.c.l.b16 %v2539
      %v2638 = vunpack.c.l.b16 %v2540
      %v2639 = vunpack.c.l.b16 %v2541
      %v2640 = vunpack.c.l.b16 %v2542
      %v2641 = vunpack.c.l.b16 %v2543
      %v2642 = vunpack.c.l.b16 %v2544
      %v2643 = vunpack.c.l.b16 %v2545
      %v2644 = vunpack.c.l.b16 %v2546
      %v2645 = vunpack.c.l.b16 %v2547
      %v2646 = vunpack.c.l.b16 %v2548
      %v2647 = vunpack.c.l.b16 %v2549
      %v2648 = vpack.c.b16 %v2617, %v2616
      %v2649 = vpack.c.b16 %v2619, %v2618
      %v2650 = vpack.c.b16 %v2621, %v2620
      %v2651 = vpack.c.b16 %v2623, %v2622
      %v2652 = vpack.c.b16 %v2625, %v2624
      %v2653 = vpack.c.b16 %v2627, %v2626
      %v2654 = vpack.c.b16 %v2629, %v2628
      %v2655 = vpack.c.b16 %v2631, %v2630
      %v2656 = vpack.c.b16 %v2633, %v2632
      %v2657 = vpack.c.b16 %v2635, %v2634
      %v2658 = vpack.c.b16 %v2637, %v2636
      %v2659 = vpack.c.b16 %v2639, %v2638
      %v2660 = vpack.c.b16 %v2641, %v2640
      %v2661 = vpack.c.b16 %v2643, %v2642
      %v2662 = vpack.c.b16 %v2645, %v2644
      %v2663 = vpack.c.b16 %v2647, %v2646
      %v2665 = vsel %vm701, %v2648, 0
      %v2668 = vsel %vm701, %v2649, 0
      %v2671 = vsel %vm701, %v2650, 0
      %v2674 = vsel %vm701, %v2651, 0
      %v2677 = vsel %vm701, %v2652, 0
      %v2680 = vsel %vm701, %v2653, 0
      %v2683 = vsel %vm701, %v2654, 0
      %v2686 = vsel %vm701, %v2655, 0
      %v2689 = vsel %vm701, %v2656, 0
      %v2692 = vsel %vm701, %v2657, 0
      %v2695 = vsel %vm701, %v2658, 0
      %v2698 = vsel %vm701, %v2659, 0
      %v2701 = vsel %vm701, %v2660, 0
      %v2704 = vsel %vm701, %v2661, 0
      %v2707 = vsel %vm701, %v2662, 0
      %v2710 = vsel %vm701, %v2663, 0
      %v2713 = vsel %vm927, %v2583, 0
      %2715 = vmatprep.subr.bf16.mxu0 0
      %2716 = vmatpush1.bf16.msra.mxu0 0
      %2717 = vmatprep.subr.bf16.mxu0 0
      %2718 = vmatpush1.bf16.msra.mxu0 0
      %2719 = vmatprep.subr.bf16.mxu0 0
      %2720 = vmatpush1.bf16.msra.mxu0 0
      %2721 = vmatprep.subr.bf16.mxu0 0
      %2722 = vmatpush1.bf16.msra.mxu0 0
      %2723 = vmatprep.subr.bf16.mxu0 0
      %2724 = vmatpush1.bf16.msra.mxu0 0
      %2725 = vmatprep.subr.bf16.mxu0 0
      %2726 = vmatpush1.bf16.msra.mxu0 0
      %2727 = vmatprep.subr.bf16.mxu0 0
      %2728 = vmatpush1.bf16.msra.mxu0 0
      %2729 = vmatprep.subr.bf16.mxu0 0
      %2730 = vmatpush1.bf16.msra.mxu0 %v2713
      %2731 = vmatprep.subr.bf16.mxu0 0
      %2732 = vmatpush2.bf16.msra.mxu0 0
      %2733 = vmatprep.subr.bf16.mxu0 0
      %2734 = vmatpush2.bf16.msra.mxu0 0
      %2735 = vmatprep.subr.bf16.mxu0 0
      %2736 = vmatpush2.bf16.msra.mxu0 0
      %2737 = vmatprep.subr.bf16.mxu0 0
      %2738 = vmatpush2.bf16.msra.mxu0 0
      %2739 = vmatprep.subr.bf16.mxu0 0
      %2740 = vmatpush2.bf16.msra.mxu0 0
      %2741 = vmatprep.subr.bf16.mxu0 0
      %2742 = vmatpush2.bf16.msra.mxu0 0
      %2743 = vmatprep.subr.bf16.mxu0 0
      %2744 = vmatpush2.bf16.msra.mxu0 0
      %2745 = vmatprep.subr.bf16.mxu0 0
      %2746 = vmatpush2.bf16.msra.mxu0 0
      %2747 = vmatprep.mubr.bf16.mxu0 0
      %2748 = vmatmul.mubr.bf16.gmra.mxu0 %v2665
      %v2749 = vpop.f32.mrf.mxu0
      %v2750 = vadd.f32 0.0, %v2749
      %v2751 = vpop.f32.mrf.mxu0
      %v2752 = vpop.f32.mrf.mxu0
      %v2753 = vadd.f32 0.0, %v2752
      %v2754 = vpop.f32.mrf.mxu0
      %2755 = vmatprep.mubr.bf16.mxu0 0
      %2756 = vmatmul.mubr.bf16.gmra.mxu0 %v2668
      %v2757 = vpop.f32.mrf.mxu0
      %v2758 = vadd.f32 0.0, %v2757
      %v2759 = vpop.f32.mrf.mxu0
      %v2760 = vpop.f32.mrf.mxu0
      %v2761 = vadd.f32 0.0, %v2760
      %v2762 = vpop.f32.mrf.mxu0
      %2763 = vmatprep.mubr.bf16.mxu0 0
      %2764 = vmatmul.mubr.bf16.gmra.mxu0 %v2671
      %v2765 = vpop.f32.mrf.mxu0
      %v2766 = vadd.f32 0.0, %v2765
      %v2767 = vpop.f32.mrf.mxu0
      %v2768 = vpop.f32.mrf.mxu0
      %v2769 = vadd.f32 0.0, %v2768
      %v2770 = vpop.f32.mrf.mxu0
      %2771 = vmatprep.mubr.bf16.mxu0 0
      %2772 = vmatmul.mubr.bf16.gmra.mxu0 %v2674
      %v2773 = vpop.f32.mrf.mxu0
      %v2774 = vadd.f32 0.0, %v2773
      %v2775 = vpop.f32.mrf.mxu0
      %v2776 = vpop.f32.mrf.mxu0
      %v2777 = vadd.f32 0.0, %v2776
      %v2778 = vpop.f32.mrf.mxu0
      %2779 = vmatprep.mubr.bf16.mxu0 0
      %2780 = vmatmul.mubr.bf16.gmra.mxu0 %v2677
      %v2781 = vpop.f32.mrf.mxu0
      %v2782 = vadd.f32 0.0, %v2781
      %v2783 = vpop.f32.mrf.mxu0
      %v2784 = vpop.f32.mrf.mxu0
      %v2785 = vadd.f32 0.0, %v2784
      %v2786 = vpop.f32.mrf.mxu0
      %2787 = vmatprep.mubr.bf16.mxu0 0
      %2788 = vmatmul.mubr.bf16.gmra.mxu0 %v2680
      %v2789 = vpop.f32.mrf.mxu0
      %v2790 = vadd.f32 0.0, %v2789
      %v2791 = vpop.f32.mrf.mxu0
      %v2792 = vpop.f32.mrf.mxu0
      %v2793 = vadd.f32 0.0, %v2792
      %v2794 = vpop.f32.mrf.mxu0
      %2795 = vmatprep.mubr.bf16.mxu0 0
      %2796 = vmatmul.mubr.bf16.gmra.mxu0 %v2683
      %v2797 = vpop.f32.mrf.mxu0
      %v2798 = vadd.f32 0.0, %v2797
      %v2799 = vpop.f32.mrf.mxu0
      %v2800 = vpop.f32.mrf.mxu0
      %v2801 = vadd.f32 0.0, %v2800
      %v2802 = vpop.f32.mrf.mxu0
      %2803 = vmatprep.mubr.bf16.mxu0 0
      %2804 = vmatmul.mubr.bf16.gmra.mxu0 %v2686
      %v2805 = vpop.f32.mrf.mxu0
      %v2806 = vadd.f32 0.0, %v2805
      %v2807 = vpop.f32.mrf.mxu0
      %v2808 = vpop.f32.mrf.mxu0
      %v2809 = vadd.f32 0.0, %v2808
      %v2810 = vpop.f32.mrf.mxu0
      %2811 = vmatprep.mubr.bf16.mxu0 0
      %2812 = vmatmul.mubr.bf16.gmra.mxu0 %v2689
      %v2813 = vpop.f32.mrf.mxu0
      %v2814 = vadd.f32 0.0, %v2813
      %v2815 = vpop.f32.mrf.mxu0
      %v2816 = vpop.f32.mrf.mxu0
      %v2817 = vadd.f32 0.0, %v2816
      %v2818 = vpop.f32.mrf.mxu0
      %2819 = vmatprep.mubr.bf16.mxu0 0
      %2820 = vmatmul.mubr.bf16.gmra.mxu0 %v2692
      %v2821 = vpop.f32.mrf.mxu0
      %v2822 = vadd.f32 0.0, %v2821
      %v2823 = vpop.f32.mrf.mxu0
      %v2824 = vpop.f32.mrf.mxu0
      %v2825 = vadd.f32 0.0, %v2824
      %v2826 = vpop.f32.mrf.mxu0
      %2827 = vmatprep.mubr.bf16.mxu0 0
      %2828 = vmatmul.mubr.bf16.gmra.mxu0 %v2695
      %v2829 = vpop.f32.mrf.mxu0
      %v2830 = vadd.f32 0.0, %v2829
      %v2831 = vpop.f32.mrf.mxu0
      %v2832 = vpop.f32.mrf.mxu0
      %v2833 = vadd.f32 0.0, %v2832
      %v2834 = vpop.f32.mrf.mxu0
      %2835 = vmatprep.mubr.bf16.mxu0 0
      %2836 = vmatmul.mubr.bf16.gmra.mxu0 %v2698
      %v2837 = vpop.f32.mrf.mxu0
      %v2838 = vadd.f32 0.0, %v2837
      %v2839 = vpop.f32.mrf.mxu0
      %v2840 = vpop.f32.mrf.mxu0
      %v2841 = vadd.f32 0.0, %v2840
      %v2842 = vpop.f32.mrf.mxu0
      %2843 = vmatprep.mubr.bf16.mxu0 0
      %2844 = vmatmul.mubr.bf16.gmra.mxu0 %v2701
      %v2845 = vpop.f32.mrf.mxu0
      %v2846 = vadd.f32 0.0, %v2845
      %v2847 = vpop.f32.mrf.mxu0
      %v2848 = vpop.f32.mrf.mxu0
      %v2849 = vadd.f32 0.0, %v2848
      %v2850 = vpop.f32.mrf.mxu0
      %2851 = vmatprep.mubr.bf16.mxu0 0
      %2852 = vmatmul.mubr.bf16.gmra.mxu0 %v2704
      %v2853 = vpop.f32.mrf.mxu0
      %v2854 = vadd.f32 0.0, %v2853
      %v2855 = vpop.f32.mrf.mxu0
      %v2856 = vpop.f32.mrf.mxu0
      %v2857 = vadd.f32 0.0, %v2856
      %v2858 = vpop.f32.mrf.mxu0
      %2859 = vmatprep.mubr.bf16.mxu0 0
      %2860 = vmatmul.mubr.bf16.gmra.mxu0 %v2707
      %v2861 = vpop.f32.mrf.mxu0
      %v2862 = vadd.f32 0.0, %v2861
      %v2863 = vpop.f32.mrf.mxu0
      %v2864 = vpop.f32.mrf.mxu0
      %v2865 = vadd.f32 0.0, %v2864
      %v2866 = vpop.f32.mrf.mxu0
      %2867 = vmatprep.mubr.bf16.mxu0 0
      %2868 = vmatmul.mubr.bf16.gmra.mxu0 %v2710
      %v2869 = vpop.f32.mrf.mxu0
      %v2870 = vadd.f32 0.0, %v2869
      %v2871 = vpop.f32.mrf.mxu0
      %v2872 = vpop.f32.mrf.mxu0
      %v2873 = vadd.f32 0.0, %v2872
      %v2874 = vpop.f32.mrf.mxu0
      %2875 = vdwg.mxu0
      %v2876 = vadd.f32 %v2550, %v2750
      %v2877 = vadd.f32 %v2551, %v2753
      %v2878 = vadd.f32 %v2552, %v2758
      %v2879 = vadd.f32 %v2553, %v2761
      %v2880 = vadd.f32 %v2554, %v2766
      %v2881 = vadd.f32 %v2555, %v2769
      %v2882 = vadd.f32 %v2556, %v2774
      %v2883 = vadd.f32 %v2557, %v2777
      %v2884 = vadd.f32 %v2558, %v2782
      %v2885 = vadd.f32 %v2559, %v2785
      %v2886 = vadd.f32 %v2560, %v2790
      %v2887 = vadd.f32 %v2561, %v2793
      %v2888 = vadd.f32 %v2562, %v2798
      %v2889 = vadd.f32 %v2563, %v2801
      %v2890 = vadd.f32 %v2564, %v2806
      %v2891 = vadd.f32 %v2565, %v2809
      %v2892 = vadd.f32 %v2566, %v2814
      %v2893 = vadd.f32 %v2567, %v2817
      %v2894 = vadd.f32 %v2568, %v2822
      %v2895 = vadd.f32 %v2569, %v2825
      %v2896 = vadd.f32 %v2570, %v2830
      %v2897 = vadd.f32 %v2571, %v2833
      %v2898 = vadd.f32 %v2572, %v2838
      %v2899 = vadd.f32 %v2573, %v2841
      %v2900 = vadd.f32 %v2574, %v2846
      %v2901 = vadd.f32 %v2575, %v2849
      %v2902 = vadd.f32 %v2576, %v2854
      %v2903 = vadd.f32 %v2577, %v2857
      %v2904 = vadd.f32 %v2578, %v2862
      %v2905 = vadd.f32 %v2579, %v2865
      %v2906 = vadd.f32 %v2580, %v2870
      %v2907 = vadd.f32 %v2581, %v2873
      %2908 = vst.msk [vmem:[#allocation3] sm:$0xff] %vm701, %v2876
      %2909 = vst.msk [vmem:[#allocation3 + $0x8] sm:$0xff] %vm701, %v2877
      %2910 = vst.msk [vmem:[#allocation3 + $0x10] sm:$0xff] %vm701, %v2878
      %2911 = vst.msk [vmem:[#allocation3 + $0x18] sm:$0xff] %vm701, %v2879
      %2912 = vst.msk [vmem:[#allocation3 + $0x20] sm:$0xff] %vm701, %v2880
      %2913 = vst.msk [vmem:[#allocation3 + $0x28] sm:$0xff] %vm701, %v2881
      %2914 = vst.msk [vmem:[#allocation3 + $0x30] sm:$0xff] %vm701, %v2882
      %2915 = vst.msk [vmem:[#allocation3 + $0x38] sm:$0xff] %vm701, %v2883
      %2916 = vst.msk [vmem:[#allocation3 + $0x40] sm:$0xff] %vm701, %v2884
      %2917 = vst.msk [vmem:[#allocation3 + $0x48] sm:$0xff] %vm701, %v2885
      %2918 = vst.msk [vmem:[#allocation3 + $0x50] sm:$0xff] %vm701, %v2886
      %2919 = vst.msk [vmem:[#allocation3 + $0x58] sm:$0xff] %vm701, %v2887
      %2920 = vst.msk [vmem:[#allocation3 + $0x60] sm:$0xff] %vm701, %v2888
      %2921 = vst.msk [vmem:[#allocation3 + $0x68] sm:$0xff] %vm701, %v2889
      %2922 = vst.msk [vmem:[#allocation3 + $0x70] sm:$0xff] %vm701, %v2890
      %2923 = vst.msk [vmem:[#allocation3 + $0x78] sm:$0xff] %vm701, %v2891
      %2924 = vst.msk [vmem:[#allocation3 + $0x80] sm:$0xff] %vm701, %v2892
      %2925 = vst.msk [vmem:[#allocation3 + $0x88] sm:$0xff] %vm701, %v2893
      %2926 = vst.msk [vmem:[#allocation3 + $0x90] sm:$0xff] %vm701, %v2894
      %2927 = vst.msk [vmem:[#allocation3 + $0x98] sm:$0xff] %vm701, %v2895
      %2928 = vst.msk [vmem:[#allocation3 + $0xa0] sm:$0xff] %vm701, %v2896
      %2929 = vst.msk [vmem:[#allocation3 + $0xa8] sm:$0xff] %vm701, %v2897
      %2930 = vst.msk [vmem:[#allocation3 + $0xb0] sm:$0xff] %vm701, %v2898
      %2931 = vst.msk [vmem:[#allocation3 + $0xb8] sm:$0xff] %vm701, %v2899
      %2932 = vst.msk [vmem:[#allocation3 + $0xc0] sm:$0xff] %vm701, %v2900
      %2933 = vst.msk [vmem:[#allocation3 + $0xc8] sm:$0xff] %vm701, %v2901
      %2934 = vst.msk [vmem:[#allocation3 + $0xd0] sm:$0xff] %vm701, %v2902
      %2935 = vst.msk [vmem:[#allocation3 + $0xd8] sm:$0xff] %vm701, %v2903
      %2936 = vst.msk [vmem:[#allocation3 + $0xe0] sm:$0xff] %vm701, %v2904
      %2937 = vst.msk [vmem:[#allocation3 + $0xe8] sm:$0xff] %vm701, %v2905
      %2938 = vst.msk [vmem:[#allocation3 + $0xf0] sm:$0xff] %vm701, %v2906
      %2939 = vst.msk [vmem:[#allocation3 + $0xf8] sm:$0xff] %vm701, %v2907
      %v2940 = vld [vmem:[%s583] sm:$0xf]
      %v2941 = vld [vmem:[%s583 + $0x4] sm:$0xf]
      %v2942 = vld [vmem:[%s583 + $0x8] sm:$0x1]
      %v2943 = vld [vmem:[%s583 + $0xc] sm:$0xf]
      %v2944 = vld [vmem:[%s583 + $0x10] sm:$0xf]
      %v2945 = vld [vmem:[%s583 + $0x14] sm:$0x1]
      %v2946 = vld [vmem:[%s583 + $0x18] sm:$0xf]
      %v2947 = vld [vmem:[%s583 + $0x1c] sm:$0xf]
      %v2948 = vld [vmem:[%s583 + $0x20] sm:$0x1]
      %v2949 = vld [vmem:[%s583 + $0x24] sm:$0xf]
      %v2950 = vld [vmem:[%s583 + $0x28] sm:$0xf]
      %v2951 = vld [vmem:[%s583 + $0x2c] sm:$0x1]
      %v2952 = vld [vmem:[%s583 + $0x30] sm:$0xf]
      %v2953 = vld [vmem:[%s583 + $0x34] sm:$0xf]
      %v2954 = vld [vmem:[%s583 + $0x38] sm:$0x1]
      %v2955 = vld [vmem:[%s583 + $0x3c] sm:$0xf]
      %v2956 = vld [vmem:[%s583 + $0x40] sm:$0xf]
      %v2957 = vld [vmem:[%s583 + $0x44] sm:$0x1]
      %v2958 = vld [vmem:[%s583 + $0x48] sm:$0xf]
      %v2959 = vld [vmem:[%s583 + $0x4c] sm:$0xf]
      %v2960 = vld [vmem:[%s583 + $0x50] sm:$0x1]
      %v2961 = vld [vmem:[%s583 + $0x54] sm:$0xf]
      %v2962 = vld [vmem:[%s583 + $0x58] sm:$0xf]
      %v2963 = vld [vmem:[%s583 + $0x5c] sm:$0x1]
      %v2964 = vld [vmem:[%s583 + $0x60] sm:$0xf]
      %v2965 = vld [vmem:[%s583 + $0x64] sm:$0xf]
      %v2966 = vld [vmem:[%s583 + $0x68] sm:$0x1]
      %v2967 = vld [vmem:[%s583 + $0x6c] sm:$0xf]
      %v2968 = vld [vmem:[%s583 + $0x70] sm:$0xf]
      %v2969 = vld [vmem:[%s583 + $0x74] sm:$0x1]
      %v2970 = vld [vmem:[%s583 + $0x78] sm:$0xf]
      %v2971 = vld [vmem:[%s583 + $0x7c] sm:$0xf]
      %v2972 = vld [vmem:[%s583 + $0x80] sm:$0x1]
      %v2973 = vld [vmem:[%s583 + $0x84] sm:$0xf]
      %v2974 = vld [vmem:[%s583 + $0x88] sm:$0xf]
      %v2975 = vld [vmem:[%s583 + $0x8c] sm:$0x1]
      %v2976 = vld [vmem:[%s583 + $0x90] sm:$0xf]
      %v2977 = vld [vmem:[%s583 + $0x94] sm:$0xf]
      %v2978 = vld [vmem:[%s583 + $0x98] sm:$0x1]
      %v2979 = vld [vmem:[%s583 + $0x9c] sm:$0xf]
      %v2980 = vld [vmem:[%s583 + $0xa0] sm:$0xf]
      %v2981 = vld [vmem:[%s583 + $0xa4] sm:$0x1]
      %v2982 = vld [vmem:[%s583 + $0xa8] sm:$0xf]
      %v2983 = vld [vmem:[%s583 + $0xac] sm:$0xf]
      %v2984 = vld [vmem:[%s583 + $0xb0] sm:$0x1]
      %v2985 = vld [vmem:[%s583 + $0xb4] sm:$0xf]
      %v2986 = vld [vmem:[%s583 + $0xb8] sm:$0xf]
      %v2987 = vld [vmem:[%s583 + $0xbc] sm:$0x1]
      %v2989 = vshrl.u32 %v2940, 16
      %v2991 = vrot.slane %v2989, 4
      %v2992 = vshll.u32 %v2940, 16
      %v2994 = vrot.slane %v2992, 5
      %v2995 = vor.u32 %v2991, %v2994
      %v2996 = vrot.slane %v2995, 4
      %v2998 = vshll.u32 %v2941, 16
      %v3000 = vrot.slane %v2998, 5
      %v3001 = vsel %vm1206, %v2996, %v3000
      %v3002 = vshrl.u32 %v2941, 16
      %v3004 = vrot.slane %v3002, 4
      %v3005 = vor.u32 %v3004, %v3000
      %v3006 = vrot.slane %v3005, 4
      %v3008 = vshll.u32 %v2942, 16
      %v3010 = vrot.slane %v3008, 5
      %v3011 = vsel %vm1206, %v3006, %v3010
      %v3013 = vshrl.u32 %v2943, 16
      %v3015 = vrot.slane %v3013, 4
      %v3016 = vshll.u32 %v2943, 16
      %v3018 = vrot.slane %v3016, 5
      %v3019 = vor.u32 %v3015, %v3018
      %v3020 = vrot.slane %v3019, 4
      %v3022 = vshll.u32 %v2944, 16
      %v3024 = vrot.slane %v3022, 5
      %v3025 = vsel %vm1206, %v3020, %v3024
      %v3026 = vshrl.u32 %v2944, 16
      %v3028 = vrot.slane %v3026, 4
      %v3029 = vor.u32 %v3028, %v3024
      %v3030 = vrot.slane %v3029, 4
      %v3032 = vshll.u32 %v2945, 16
      %v3034 = vrot.slane %v3032, 5
      %v3035 = vsel %vm1206, %v3030, %v3034
      %v3037 = vshrl.u32 %v2946, 16
      %v3039 = vrot.slane %v3037, 4
      %v3040 = vshll.u32 %v2946, 16
      %v3042 = vrot.slane %v3040, 5
      %v3043 = vor.u32 %v3039, %v3042
      %v3044 = vrot.slane %v3043, 4
      %v3046 = vshll.u32 %v2947, 16
      %v3048 = vrot.slane %v3046, 5
      %v3049 = vsel %vm1206, %v3044, %v3048
      %v3050 = vshrl.u32 %v2947, 16
      %v3052 = vrot.slane %v3050, 4
      %v3053 = vor.u32 %v3052, %v3048
      %v3054 = vrot.slane %v3053, 4
      %v3056 = vshll.u32 %v2948, 16
      %v3058 = vrot.slane %v3056, 5
      %v3059 = vsel %vm1206, %v3054, %v3058
      %v3061 = vshrl.u32 %v2949, 16
      %v3063 = vrot.slane %v3061, 4
      %v3064 = vshll.u32 %v2949, 16
      %v3066 = vrot.slane %v3064, 5
      %v3067 = vor.u32 %v3063, %v3066
      %v3068 = vrot.slane %v3067, 4
      %v3070 = vshll.u32 %v2950, 16
      %v3072 = vrot.slane %v3070, 5
      %v3073 = vsel %vm1206, %v3068, %v3072
      %v3074 = vshrl.u32 %v2950, 16
      %v3076 = vrot.slane %v3074, 4
      %v3077 = vor.u32 %v3076, %v3072
      %v3078 = vrot.slane %v3077, 4
      %v3080 = vshll.u32 %v2951, 16
      %v3082 = vrot.slane %v3080, 5
      %v3083 = vsel %vm1206, %v3078, %v3082
      %v3085 = vshrl.u32 %v2952, 16
      %v3087 = vrot.slane %v3085, 4
      %v3088 = vshll.u32 %v2952, 16
      %v3090 = vrot.slane %v3088, 5
      %v3091 = vor.u32 %v3087, %v3090
      %v3092 = vrot.slane %v3091, 4
      %v3094 = vshll.u32 %v2953, 16
      %v3096 = vrot.slane %v3094, 5
      %v3097 = vsel %vm1206, %v3092, %v3096
      %v3098 = vshrl.u32 %v2953, 16
      %v3100 = vrot.slane %v3098, 4
      %v3101 = vor.u32 %v3100, %v3096
      %v3102 = vrot.slane %v3101, 4
      %v3104 = vshll.u32 %v2954, 16
      %v3106 = vrot.slane %v3104, 5
      %v3107 = vsel %vm1206, %v3102, %v3106
      %v3109 = vshrl.u32 %v2955, 16
      %v3111 = vrot.slane %v3109, 4
      %v3112 = vshll.u32 %v2955, 16
      %v3114 = vrot.slane %v3112, 5
      %v3115 = vor.u32 %v3111, %v3114
      %v3116 = vrot.slane %v3115, 4
      %v3118 = vshll.u32 %v2956, 16
      %v3120 = vrot.slane %v3118, 5
      %v3121 = vsel %vm1206, %v3116, %v3120
      %v3122 = vshrl.u32 %v2956, 16
      %v3124 = vrot.slane %v3122, 4
      %v3125 = vor.u32 %v3124, %v3120
      %v3126 = vrot.slane %v3125, 4
      %v3128 = vshll.u32 %v2957, 16
      %v3130 = vrot.slane %v3128, 5
      %v3131 = vsel %vm1206, %v3126, %v3130
      %v3133 = vshrl.u32 %v2958, 16
      %v3135 = vrot.slane %v3133, 4
      %v3136 = vshll.u32 %v2958, 16
      %v3138 = vrot.slane %v3136, 5
      %v3139 = vor.u32 %v3135, %v3138
      %v3140 = vrot.slane %v3139, 4
      %v3142 = vshll.u32 %v2959, 16
      %v3144 = vrot.slane %v3142, 5
      %v3145 = vsel %vm1206, %v3140, %v3144
      %v3146 = vshrl.u32 %v2959, 16
      %v3148 = vrot.slane %v3146, 4
      %v3149 = vor.u32 %v3148, %v3144
      %v3150 = vrot.slane %v3149, 4
      %v3152 = vshll.u32 %v2960, 16
      %v3154 = vrot.slane %v3152, 5
      %v3155 = vsel %vm1206, %v3150, %v3154
      %v3157 = vshrl.u32 %v2961, 16
      %v3159 = vrot.slane %v3157, 4
      %v3160 = vshll.u32 %v2961, 16
      %v3162 = vrot.slane %v3160, 5
      %v3163 = vor.u32 %v3159, %v3162
      %v3164 = vrot.slane %v3163, 4
      %v3166 = vshll.u32 %v2962, 16
      %v3168 = vrot.slane %v3166, 5
      %v3169 = vsel %vm1206, %v3164, %v3168
      %v3170 = vshrl.u32 %v2962, 16
      %v3172 = vrot.slane %v3170, 4
      %v3173 = vor.u32 %v3172, %v3168
      %v3174 = vrot.slane %v3173, 4
      %v3176 = vshll.u32 %v2963, 16
      %v3178 = vrot.slane %v3176, 5
      %v3179 = vsel %vm1206, %v3174, %v3178
      %v3181 = vshrl.u32 %v2964, 16
      %v3183 = vrot.slane %v3181, 4
      %v3184 = vshll.u32 %v2964, 16
      %v3186 = vrot.slane %v3184, 5
      %v3187 = vor.u32 %v3183, %v3186
      %v3188 = vrot.slane %v3187, 4
      %v3190 = vshll.u32 %v2965, 16
      %v3192 = vrot.slane %v3190, 5
      %v3193 = vsel %vm1206, %v3188, %v3192
      %v3194 = vshrl.u32 %v2965, 16
      %v3196 = vrot.slane %v3194, 4
      %v3197 = vor.u32 %v3196, %v3192
      %v3198 = vrot.slane %v3197, 4
      %v3200 = vshll.u32 %v2966, 16
      %v3202 = vrot.slane %v3200, 5
      %v3203 = vsel %vm1206, %v3198, %v3202
      %v3205 = vshrl.u32 %v2967, 16
      %v3207 = vrot.slane %v3205, 4
      %v3208 = vshll.u32 %v2967, 16
      %v3210 = vrot.slane %v3208, 5
      %v3211 = vor.u32 %v3207, %v3210
      %v3212 = vrot.slane %v3211, 4
      %v3214 = vshll.u32 %v2968, 16
      %v3216 = vrot.slane %v3214, 5
      %v3217 = vsel %vm1206, %v3212, %v3216
      %v3218 = vshrl.u32 %v2968, 16
      %v3220 = vrot.slane %v3218, 4
      %v3221 = vor.u32 %v3220, %v3216
      %v3222 = vrot.slane %v3221, 4
      %v3224 = vshll.u32 %v2969, 16
      %v3226 = vrot.slane %v3224, 5
      %v3227 = vsel %vm1206, %v3222, %v3226
      %v3229 = vshrl.u32 %v2970, 16
      %v3231 = vrot.slane %v3229, 4
      %v3232 = vshll.u32 %v2970, 16
      %v3234 = vrot.slane %v3232, 5
      %v3235 = vor.u32 %v3231, %v3234
      %v3236 = vrot.slane %v3235, 4
      %v3238 = vshll.u32 %v2971, 16
      %v3240 = vrot.slane %v3238, 5
      %v3241 = vsel %vm1206, %v3236, %v3240
      %v3242 = vshrl.u32 %v2971, 16
      %v3244 = vrot.slane %v3242, 4
      %v3245 = vor.u32 %v3244, %v3240
      %v3246 = vrot.slane %v3245, 4
      %v3248 = vshll.u32 %v2972, 16
      %v3250 = vrot.slane %v3248, 5
      %v3251 = vsel %vm1206, %v3246, %v3250
      %v3253 = vshrl.u32 %v2973, 16
      %v3255 = vrot.slane %v3253, 4
      %v3256 = vshll.u32 %v2973, 16
      %v3258 = vrot.slane %v3256, 5
      %v3259 = vor.u32 %v3255, %v3258
      %v3260 = vrot.slane %v3259, 4
      %v3262 = vshll.u32 %v2974, 16
      %v3264 = vrot.slane %v3262, 5
      %v3265 = vsel %vm1206, %v3260, %v3264
      %v3266 = vshrl.u32 %v2974, 16
      %v3268 = vrot.slane %v3266, 4
      %v3269 = vor.u32 %v3268, %v3264
      %v3270 = vrot.slane %v3269, 4
      %v3272 = vshll.u32 %v2975, 16
      %v3274 = vrot.slane %v3272, 5
      %v3275 = vsel %vm1206, %v3270, %v3274
      %v3277 = vshrl.u32 %v2976, 16
      %v3279 = vrot.slane %v3277, 4
      %v3280 = vshll.u32 %v2976, 16
      %v3282 = vrot.slane %v3280, 5
      %v3283 = vor.u32 %v3279, %v3282
      %v3284 = vrot.slane %v3283, 4
      %v3286 = vshll.u32 %v2977, 16
      %v3288 = vrot.slane %v3286, 5
      %v3289 = vsel %vm1206, %v3284, %v3288
      %v3290 = vshrl.u32 %v2977, 16
      %v3292 = vrot.slane %v3290, 4
      %v3293 = vor.u32 %v3292, %v3288
      %v3294 = vrot.slane %v3293, 4
      %v3296 = vshll.u32 %v2978, 16
      %v3298 = vrot.slane %v3296, 5
      %v3299 = vsel %vm1206, %v3294, %v3298
      %v3301 = vshrl.u32 %v2979, 16
      %v3303 = vrot.slane %v3301, 4
      %v3304 = vshll.u32 %v2979, 16
      %v3306 = vrot.slane %v3304, 5
      %v3307 = vor.u32 %v3303, %v3306
      %v3308 = vrot.slane %v3307, 4
      %v3310 = vshll.u32 %v2980, 16
      %v3312 = vrot.slane %v3310, 5
      %v3313 = vsel %vm1206, %v3308, %v3312
      %v3314 = vshrl.u32 %v2980, 16
      %v3316 = vrot.slane %v3314, 4
      %v3317 = vor.u32 %v3316, %v3312
      %v3318 = vrot.slane %v3317, 4
      %v3320 = vshll.u32 %v2981, 16
      %v3322 = vrot.slane %v3320, 5
      %v3323 = vsel %vm1206, %v3318, %v3322
      %v3325 = vshrl.u32 %v2982, 16
      %v3327 = vrot.slane %v3325, 4
      %v3328 = vshll.u32 %v2982, 16
      %v3330 = vrot.slane %v3328, 5
      %v3331 = vor.u32 %v3327, %v3330
      %v3332 = vrot.slane %v3331, 4
      %v3334 = vshll.u32 %v2983, 16
      %v3336 = vrot.slane %v3334, 5
      %v3337 = vsel %vm1206, %v3332, %v3336
      %v3338 = vshrl.u32 %v2983, 16
      %v3340 = vrot.slane %v3338, 4
      %v3341 = vor.u32 %v3340, %v3336
      %v3342 = vrot.slane %v3341, 4
      %v3344 = vshll.u32 %v2984, 16
      %v3346 = vrot.slane %v3344, 5
      %v3347 = vsel %vm1206, %v3342, %v3346
      %v3349 = vshrl.u32 %v2985, 16
      %v3351 = vrot.slane %v3349, 4
      %v3352 = vshll.u32 %v2985, 16
      %v3354 = vrot.slane %v3352, 5
      %v3355 = vor.u32 %v3351, %v3354
      %v3356 = vrot.slane %v3355, 4
      %v3358 = vshll.u32 %v2986, 16
      %v3360 = vrot.slane %v3358, 5
      %v3361 = vsel %vm1206, %v3356, %v3360
      %v3362 = vshrl.u32 %v2986, 16
      %v3364 = vrot.slane %v3362, 4
      %v3365 = vor.u32 %v3364, %v3360
      %v3366 = vrot.slane %v3365, 4
      %v3368 = vshll.u32 %v2987, 16
      %v3370 = vrot.slane %v3368, 5
      %v3371 = vsel %vm1206, %v3366, %v3370
      %v3372 = vld [vmem:[#allocation3] sm:$0xff]
      %v3373 = vld [vmem:[#allocation3 + $0x8] sm:$0xff]
      %v3374 = vld [vmem:[#allocation3 + $0x10] sm:$0xff]
      %v3375 = vld [vmem:[#allocation3 + $0x18] sm:$0xff]
      %v3376 = vld [vmem:[#allocation3 + $0x20] sm:$0xff]
      %v3377 = vld [vmem:[#allocation3 + $0x28] sm:$0xff]
      %v3378 = vld [vmem:[#allocation3 + $0x30] sm:$0xff]
      %v3379 = vld [vmem:[#allocation3 + $0x38] sm:$0xff]
      %v3380 = vld [vmem:[#allocation3 + $0x40] sm:$0xff]
      %v3381 = vld [vmem:[#allocation3 + $0x48] sm:$0xff]
      %v3382 = vld [vmem:[#allocation3 + $0x50] sm:$0xff]
      %v3383 = vld [vmem:[#allocation3 + $0x58] sm:$0xff]
      %v3384 = vld [vmem:[#allocation3 + $0x60] sm:$0xff]
      %v3385 = vld [vmem:[#allocation3 + $0x68] sm:$0xff]
      %v3386 = vld [vmem:[#allocation3 + $0x70] sm:$0xff]
      %v3387 = vld [vmem:[#allocation3 + $0x78] sm:$0xff]
      %v3388 = vld [vmem:[#allocation3 + $0x80] sm:$0xff]
      %v3389 = vld [vmem:[#allocation3 + $0x88] sm:$0xff]
      %v3390 = vld [vmem:[#allocation3 + $0x90] sm:$0xff]
      %v3391 = vld [vmem:[#allocation3 + $0x98] sm:$0xff]
      %v3392 = vld [vmem:[#allocation3 + $0xa0] sm:$0xff]
      %v3393 = vld [vmem:[#allocation3 + $0xa8] sm:$0xff]
      %v3394 = vld [vmem:[#allocation3 + $0xb0] sm:$0xff]
      %v3395 = vld [vmem:[#allocation3 + $0xb8] sm:$0xff]
      %v3396 = vld [vmem:[#allocation3 + $0xc0] sm:$0xff]
      %v3397 = vld [vmem:[#allocation3 + $0xc8] sm:$0xff]
      %v3398 = vld [vmem:[#allocation3 + $0xd0] sm:$0xff]
      %v3399 = vld [vmem:[#allocation3 + $0xd8] sm:$0xff]
      %v3400 = vld [vmem:[#allocation3 + $0xe0] sm:$0xff]
      %v3401 = vld [vmem:[#allocation3 + $0xe8] sm:$0xff]
      %v3402 = vld [vmem:[#allocation3 + $0xf0] sm:$0xff]
      %v3403 = vld [vmem:[#allocation3 + $0xf8] sm:$0xff]
      %s3404 = scalar_lea.vmem %s1, 16
      %v3405 = vld [vmem:[%s3404] sm:$0xf]
      %v3406 = vunpack.c.l.b16 %v3001
      %v3407 = vunpack.c.l.b16 %v3011
      %v3408 = vunpack.c.l.b16 %v3025
      %v3409 = vunpack.c.l.b16 %v3035
      %v3410 = vunpack.c.l.b16 %v3049
      %v3411 = vunpack.c.l.b16 %v3059
      %v3412 = vunpack.c.l.b16 %v3073
      %v3413 = vunpack.c.l.b16 %v3083
      %v3414 = vunpack.c.l.b16 %v3097
      %v3415 = vunpack.c.l.b16 %v3107
      %v3416 = vunpack.c.l.b16 %v3121
      %v3417 = vunpack.c.l.b16 %v3131
      %v3418 = vunpack.c.l.b16 %v3145
      %v3419 = vunpack.c.l.b16 %v3155
      %v3420 = vunpack.c.l.b16 %v3169
      %v3421 = vunpack.c.l.b16 %v3179
      %v3422 = vunpack.c.l.b16 %v3193
      %v3423 = vunpack.c.l.b16 %v3203
      %v3424 = vunpack.c.l.b16 %v3217
      %v3425 = vunpack.c.l.b16 %v3227
      %v3426 = vunpack.c.l.b16 %v3241
      %v3427 = vunpack.c.l.b16 %v3251
      %v3428 = vunpack.c.l.b16 %v3265
      %v3429 = vunpack.c.l.b16 %v3275
      %v3430 = vunpack.c.l.b16 %v3289
      %v3431 = vunpack.c.l.b16 %v3299
      %v3432 = vunpack.c.l.b16 %v3313
      %v3433 = vunpack.c.l.b16 %v3323
      %v3434 = vunpack.c.l.b16 %v3337
      %v3435 = vunpack.c.l.b16 %v3347
      %v3436 = vunpack.c.l.b16 %v3361
      %v3437 = vunpack.c.l.b16 %v3371
      %v3438 = vpack.c.b16 %v3407, %v3406
      %v3439 = vpack.c.b16 %v3409, %v3408
      %v3440 = vpack.c.b16 %v3411, %v3410
      %v3441 = vpack.c.b16 %v3413, %v3412
      %v3442 = vpack.c.b16 %v3415, %v3414
      %v3443 = vpack.c.b16 %v3417, %v3416
      %v3444 = vpack.c.b16 %v3419, %v3418
      %v3445 = vpack.c.b16 %v3421, %v3420
      %v3446 = vpack.c.b16 %v3423, %v3422
      %v3447 = vpack.c.b16 %v3425, %v3424
      %v3448 = vpack.c.b16 %v3427, %v3426
      %v3449 = vpack.c.b16 %v3429, %v3428
      %v3450 = vpack.c.b16 %v3431, %v3430
      %v3451 = vpack.c.b16 %v3433, %v3432
      %v3452 = vpack.c.b16 %v3435, %v3434
      %v3453 = vpack.c.b16 %v3437, %v3436
      %v3455 = vsel %vm701, %v3438, 0
      %v3458 = vsel %vm701, %v3439, 0
      %v3461 = vsel %vm701, %v3440, 0
      %v3464 = vsel %vm701, %v3441, 0
      %v3467 = vsel %vm701, %v3442, 0
      %v3470 = vsel %vm701, %v3443, 0
      %v3473 = vsel %vm701, %v3444, 0
      %v3476 = vsel %vm701, %v3445, 0
      %v3479 = vsel %vm701, %v3446, 0
      %v3482 = vsel %vm701, %v3447, 0
      %v3485 = vsel %vm701, %v3448, 0
      %v3488 = vsel %vm701, %v3449, 0
      %v3491 = vsel %vm701, %v3450, 0
      %v3494 = vsel %vm701, %v3451, 0
      %v3497 = vsel %vm701, %v3452, 0
      %v3500 = vsel %vm701, %v3453, 0
      %v3503 = vsel %vm927, %v3405, 0
      %3505 = vmatprep.subr.bf16.mxu0 0
      %3506 = vmatpush1.bf16.msra.mxu0 0
      %3507 = vmatprep.subr.bf16.mxu0 0
      %3508 = vmatpush1.bf16.msra.mxu0 0
      %3509 = vmatprep.subr.bf16.mxu0 0
      %3510 = vmatpush1.bf16.msra.mxu0 0
      %3511 = vmatprep.subr.bf16.mxu0 0
      %3512 = vmatpush1.bf16.msra.mxu0 0
      %3513 = vmatprep.subr.bf16.mxu0 0
      %3514 = vmatpush1.bf16.msra.mxu0 0
      %3515 = vmatprep.subr.bf16.mxu0 0
      %3516 = vmatpush1.bf16.msra.mxu0 0
      %3517 = vmatprep.subr.bf16.mxu0 0
      %3518 = vmatpush1.bf16.msra.mxu0 0
      %3519 = vmatprep.subr.bf16.mxu0 0
      %3520 = vmatpush1.bf16.msra.mxu0 %v3503
      %3521 = vmatprep.subr.bf16.mxu0 0
      %3522 = vmatpush2.bf16.msra.mxu0 0
      %3523 = vmatprep.subr.bf16.mxu0 0
      %3524 = vmatpush2.bf16.msra.mxu0 0
      %3525 = vmatprep.subr.bf16.mxu0 0
      %3526 = vmatpush2.bf16.msra.mxu0 0
      %3527 = vmatprep.subr.bf16.mxu0 0
      %3528 = vmatpush2.bf16.msra.mxu0 0
      %3529 = vmatprep.subr.bf16.mxu0 0
      %3530 = vmatpush2.bf16.msra.mxu0 0
      %3531 = vmatprep.subr.bf16.mxu0 0
      %3532 = vmatpush2.bf16.msra.mxu0 0
      %3533 = vmatprep.subr.bf16.mxu0 0
      %3534 = vmatpush2.bf16.msra.mxu0 0
      %3535 = vmatprep.subr.bf16.mxu0 0
      %3536 = vmatpush2.bf16.msra.mxu0 0
      %3537 = vmatprep.mubr.bf16.mxu0 0
      %3538 = vmatmul.mubr.bf16.gmra.mxu0 %v3455
      %v3539 = vpop.f32.mrf.mxu0
      %v3540 = vadd.f32 0.0, %v3539
      %v3541 = vpop.f32.mrf.mxu0
      %v3542 = vpop.f32.mrf.mxu0
      %v3543 = vadd.f32 0.0, %v3542
      %v3544 = vpop.f32.mrf.mxu0
      %3545 = vmatprep.mubr.bf16.mxu0 0
      %3546 = vmatmul.mubr.bf16.gmra.mxu0 %v3458
      %v3547 = vpop.f32.mrf.mxu0
      %v3548 = vadd.f32 0.0, %v3547
      %v3549 = vpop.f32.mrf.mxu0
      %v3550 = vpop.f32.mrf.mxu0
      %v3551 = vadd.f32 0.0, %v3550
      %v3552 = vpop.f32.mrf.mxu0
      %3553 = vmatprep.mubr.bf16.mxu0 0
      %3554 = vmatmul.mubr.bf16.gmra.mxu0 %v3461
      %v3555 = vpop.f32.mrf.mxu0
      %v3556 = vadd.f32 0.0, %v3555
      %v3557 = vpop.f32.mrf.mxu0
      %v3558 = vpop.f32.mrf.mxu0
      %v3559 = vadd.f32 0.0, %v3558
      %v3560 = vpop.f32.mrf.mxu0
      %3561 = vmatprep.mubr.bf16.mxu0 0
      %3562 = vmatmul.mubr.bf16.gmra.mxu0 %v3464
      %v3563 = vpop.f32.mrf.mxu0
      %v3564 = vadd.f32 0.0, %v3563
      %v3565 = vpop.f32.mrf.mxu0
      %v3566 = vpop.f32.mrf.mxu0
      %v3567 = vadd.f32 0.0, %v3566
      %v3568 = vpop.f32.mrf.mxu0
      %3569 = vmatprep.mubr.bf16.mxu0 0
      %3570 = vmatmul.mubr.bf16.gmra.mxu0 %v3467
      %v3571 = vpop.f32.mrf.mxu0
      %v3572 = vadd.f32 0.0, %v3571
      %v3573 = vpop.f32.mrf.mxu0
      %v3574 = vpop.f32.mrf.mxu0
      %v3575 = vadd.f32 0.0, %v3574
      %v3576 = vpop.f32.mrf.mxu0
      %3577 = vmatprep.mubr.bf16.mxu0 0
      %3578 = vmatmul.mubr.bf16.gmra.mxu0 %v3470
      %v3579 = vpop.f32.mrf.mxu0
      %v3580 = vadd.f32 0.0, %v3579
      %v3581 = vpop.f32.mrf.mxu0
      %v3582 = vpop.f32.mrf.mxu0
      %v3583 = vadd.f32 0.0, %v3582
      %v3584 = vpop.f32.mrf.mxu0
      %3585 = vmatprep.mubr.bf16.mxu0 0
      %3586 = vmatmul.mubr.bf16.gmra.mxu0 %v3473
      %v3587 = vpop.f32.mrf.mxu0
      %v3588 = vadd.f32 0.0, %v3587
      %v3589 = vpop.f32.mrf.mxu0
      %v3590 = vpop.f32.mrf.mxu0
      %v3591 = vadd.f32 0.0, %v3590
      %v3592 = vpop.f32.mrf.mxu0
      %3593 = vmatprep.mubr.bf16.mxu0 0
      %3594 = vmatmul.mubr.bf16.gmra.mxu0 %v3476
      %v3595 = vpop.f32.mrf.mxu0
      %v3596 = vadd.f32 0.0, %v3595
      %v3597 = vpop.f32.mrf.mxu0
      %v3598 = vpop.f32.mrf.mxu0
      %v3599 = vadd.f32 0.0, %v3598
      %v3600 = vpop.f32.mrf.mxu0
      %3601 = vmatprep.mubr.bf16.mxu0 0
      %3602 = vmatmul.mubr.bf16.gmra.mxu0 %v3479
      %v3603 = vpop.f32.mrf.mxu0
      %v3604 = vadd.f32 0.0, %v3603
      %v3605 = vpop.f32.mrf.mxu0
      %v3606 = vpop.f32.mrf.mxu0
      %v3607 = vadd.f32 0.0, %v3606
      %v3608 = vpop.f32.mrf.mxu0
      %3609 = vmatprep.mubr.bf16.mxu0 0
      %3610 = vmatmul.mubr.bf16.gmra.mxu0 %v3482
      %v3611 = vpop.f32.mrf.mxu0
      %v3612 = vadd.f32 0.0, %v3611
      %v3613 = vpop.f32.mrf.mxu0
      %v3614 = vpop.f32.mrf.mxu0
      %v3615 = vadd.f32 0.0, %v3614
      %v3616 = vpop.f32.mrf.mxu0
      %3617 = vmatprep.mubr.bf16.mxu0 0
      %3618 = vmatmul.mubr.bf16.gmra.mxu0 %v3485
      %v3619 = vpop.f32.mrf.mxu0
      %v3620 = vadd.f32 0.0, %v3619
      %v3621 = vpop.f32.mrf.mxu0
      %v3622 = vpop.f32.mrf.mxu0
      %v3623 = vadd.f32 0.0, %v3622
      %v3624 = vpop.f32.mrf.mxu0
      %3625 = vmatprep.mubr.bf16.mxu0 0
      %3626 = vmatmul.mubr.bf16.gmra.mxu0 %v3488
      %v3627 = vpop.f32.mrf.mxu0
      %v3628 = vadd.f32 0.0, %v3627
      %v3629 = vpop.f32.mrf.mxu0
      %v3630 = vpop.f32.mrf.mxu0
      %v3631 = vadd.f32 0.0, %v3630
      %v3632 = vpop.f32.mrf.mxu0
      %3633 = vmatprep.mubr.bf16.mxu0 0
      %3634 = vmatmul.mubr.bf16.gmra.mxu0 %v3491
      %v3635 = vpop.f32.mrf.mxu0
      %v3636 = vadd.f32 0.0, %v3635
      %v3637 = vpop.f32.mrf.mxu0
      %v3638 = vpop.f32.mrf.mxu0
      %v3639 = vadd.f32 0.0, %v3638
      %v3640 = vpop.f32.mrf.mxu0
      %3641 = vmatprep.mubr.bf16.mxu0 0
      %3642 = vmatmul.mubr.bf16.gmra.mxu0 %v3494
      %v3643 = vpop.f32.mrf.mxu0
      %v3644 = vadd.f32 0.0, %v3643
      %v3645 = vpop.f32.mrf.mxu0
      %v3646 = vpop.f32.mrf.mxu0
      %v3647 = vadd.f32 0.0, %v3646
      %v3648 = vpop.f32.mrf.mxu0
      %3649 = vmatprep.mubr.bf16.mxu0 0
      %3650 = vmatmul.mubr.bf16.gmra.mxu0 %v3497
      %v3651 = vpop.f32.mrf.mxu0
      %v3652 = vadd.f32 0.0, %v3651
      %v3653 = vpop.f32.mrf.mxu0
      %v3654 = vpop.f32.mrf.mxu0
      %v3655 = vadd.f32 0.0, %v3654
      %v3656 = vpop.f32.mrf.mxu0
      %3657 = vmatprep.mubr.bf16.mxu0 0
      %3658 = vmatmul.mubr.bf16.gmra.mxu0 %v3500
      %v3659 = vpop.f32.mrf.mxu0
      %v3660 = vadd.f32 0.0, %v3659
      %v3661 = vpop.f32.mrf.mxu0
      %v3662 = vpop.f32.mrf.mxu0
      %v3663 = vadd.f32 0.0, %v3662
      %v3664 = vpop.f32.mrf.mxu0
      %3665 = vdwg.mxu0
      %v3666 = vadd.f32 %v3372, %v3540
      %v3667 = vadd.f32 %v3373, %v3543
      %v3668 = vadd.f32 %v3374, %v3548
      %v3669 = vadd.f32 %v3375, %v3551
      %v3670 = vadd.f32 %v3376, %v3556
      %v3671 = vadd.f32 %v3377, %v3559
      %v3672 = vadd.f32 %v3378, %v3564
      %v3673 = vadd.f32 %v3379, %v3567
      %v3674 = vadd.f32 %v3380, %v3572
      %v3675 = vadd.f32 %v3381, %v3575
      %v3676 = vadd.f32 %v3382, %v3580
      %v3677 = vadd.f32 %v3383, %v3583
      %v3678 = vadd.f32 %v3384, %v3588
      %v3679 = vadd.f32 %v3385, %v3591
      %v3680 = vadd.f32 %v3386, %v3596
      %v3681 = vadd.f32 %v3387, %v3599
      %v3682 = vadd.f32 %v3388, %v3604
      %v3683 = vadd.f32 %v3389, %v3607
      %v3684 = vadd.f32 %v3390, %v3612
      %v3685 = vadd.f32 %v3391, %v3615
      %v3686 = vadd.f32 %v3392, %v3620
      %v3687 = vadd.f32 %v3393, %v3623
      %v3688 = vadd.f32 %v3394, %v3628
      %v3689 = vadd.f32 %v3395, %v3631
      %v3690 = vadd.f32 %v3396, %v3636
      %v3691 = vadd.f32 %v3397, %v3639
      %v3692 = vadd.f32 %v3398, %v3644
      %v3693 = vadd.f32 %v3399, %v3647
      %v3694 = vadd.f32 %v3400, %v3652
      %v3695 = vadd.f32 %v3401, %v3655
      %v3696 = vadd.f32 %v3402, %v3660
      %v3697 = vadd.f32 %v3403, %v3663
      %3698 = vst.msk [vmem:[#allocation3] sm:$0xff] %vm701, %v3666
      %3699 = vst.msk [vmem:[#allocation3 + $0x8] sm:$0xff] %vm701, %v3667
      %3700 = vst.msk [vmem:[#allocation3 + $0x10] sm:$0xff] %vm701, %v3668
      %3701 = vst.msk [vmem:[#allocation3 + $0x18] sm:$0xff] %vm701, %v3669
      %3702 = vst.msk [vmem:[#allocation3 + $0x20] sm:$0xff] %vm701, %v3670
      %3703 = vst.msk [vmem:[#allocation3 + $0x28] sm:$0xff] %vm701, %v3671
      %3704 = vst.msk [vmem:[#allocation3 + $0x30] sm:$0xff] %vm701, %v3672
      %3705 = vst.msk [vmem:[#allocation3 + $0x38] sm:$0xff] %vm701, %v3673
      %3706 = vst.msk [vmem:[#allocation3 + $0x40] sm:$0xff] %vm701, %v3674
      %3707 = vst.msk [vmem:[#allocation3 + $0x48] sm:$0xff] %vm701, %v3675
      %3708 = vst.msk [vmem:[#allocation3 + $0x50] sm:$0xff] %vm701, %v3676
      %3709 = vst.msk [vmem:[#allocation3 + $0x58] sm:$0xff] %vm701, %v3677
      %3710 = vst.msk [vmem:[#allocation3 + $0x60] sm:$0xff] %vm701, %v3678
      %3711 = vst.msk [vmem:[#allocation3 + $0x68] sm:$0xff] %vm701, %v3679
      %3712 = vst.msk [vmem:[#allocation3 + $0x70] sm:$0xff] %vm701, %v3680
      %3713 = vst.msk [vmem:[#allocation3 + $0x78] sm:$0xff] %vm701, %v3681
      %3714 = vst.msk [vmem:[#allocation3 + $0x80] sm:$0xff] %vm701, %v3682
      %3715 = vst.msk [vmem:[#allocation3 + $0x88] sm:$0xff] %vm701, %v3683
      %3716 = vst.msk [vmem:[#allocation3 + $0x90] sm:$0xff] %vm701, %v3684
      %3717 = vst.msk [vmem:[#allocation3 + $0x98] sm:$0xff] %vm701, %v3685
      %3718 = vst.msk [vmem:[#allocation3 + $0xa0] sm:$0xff] %vm701, %v3686
      %3719 = vst.msk [vmem:[#allocation3 + $0xa8] sm:$0xff] %vm701, %v3687
      %3720 = vst.msk [vmem:[#allocation3 + $0xb0] sm:$0xff] %vm701, %v3688
      %3721 = vst.msk [vmem:[#allocation3 + $0xb8] sm:$0xff] %vm701, %v3689
      %3722 = vst.msk [vmem:[#allocation3 + $0xc0] sm:$0xff] %vm701, %v3690
      %3723 = vst.msk [vmem:[#allocation3 + $0xc8] sm:$0xff] %vm701, %v3691
      %3724 = vst.msk [vmem:[#allocation3 + $0xd0] sm:$0xff] %vm701, %v3692
      %3725 = vst.msk [vmem:[#allocation3 + $0xd8] sm:$0xff] %vm701, %v3693
      %3726 = vst.msk [vmem:[#allocation3 + $0xe0] sm:$0xff] %vm701, %v3694
      %3727 = vst.msk [vmem:[#allocation3 + $0xe8] sm:$0xff] %vm701, %v3695
      %3728 = vst.msk [vmem:[#allocation3 + $0xf0] sm:$0xff] %vm701, %v3696
      %3729 = vst.msk [vmem:[#allocation3 + $0xf8] sm:$0xff] %vm701, %v3697
      %v3730 = vld [vmem:[%s583] sm:$0xe]
      %v3731 = vld [vmem:[%s583 + $0x4] sm:$0xf]
      %v3732 = vld [vmem:[%s583 + $0x8] sm:$0x1]
      %v3733 = vld [vmem:[%s583 + $0xc] sm:$0xe]
      %v3734 = vld [vmem:[%s583 + $0x10] sm:$0xf]
      %v3735 = vld [vmem:[%s583 + $0x14] sm:$0x1]
      %v3736 = vld [vmem:[%s583 + $0x18] sm:$0xe]
      %v3737 = vld [vmem:[%s583 + $0x1c] sm:$0xf]
      %v3738 = vld [vmem:[%s583 + $0x20] sm:$0x1]
      %v3739 = vld [vmem:[%s583 + $0x24] sm:$0xe]
      %v3740 = vld [vmem:[%s583 + $0x28] sm:$0xf]
      %v3741 = vld [vmem:[%s583 + $0x2c] sm:$0x1]
      %v3742 = vld [vmem:[%s583 + $0x30] sm:$0xe]
      %v3743 = vld [vmem:[%s583 + $0x34] sm:$0xf]
      %v3744 = vld [vmem:[%s583 + $0x38] sm:$0x1]
      %v3745 = vld [vmem:[%s583 + $0x3c] sm:$0xe]
      %v3746 = vld [vmem:[%s583 + $0x40] sm:$0xf]
      %v3747 = vld [vmem:[%s583 + $0x44] sm:$0x1]
      %v3748 = vld [vmem:[%s583 + $0x48] sm:$0xe]
      %v3749 = vld [vmem:[%s583 + $0x4c] sm:$0xf]
      %v3750 = vld [vmem:[%s583 + $0x50] sm:$0x1]
      %v3751 = vld [vmem:[%s583 + $0x54] sm:$0xe]
      %v3752 = vld [vmem:[%s583 + $0x58] sm:$0xf]
      %v3753 = vld [vmem:[%s583 + $0x5c] sm:$0x1]
      %v3754 = vld [vmem:[%s583 + $0x60] sm:$0xe]
      %v3755 = vld [vmem:[%s583 + $0x64] sm:$0xf]
      %v3756 = vld [vmem:[%s583 + $0x68] sm:$0x1]
      %v3757 = vld [vmem:[%s583 + $0x6c] sm:$0xe]
      %v3758 = vld [vmem:[%s583 + $0x70] sm:$0xf]
      %v3759 = vld [vmem:[%s583 + $0x74] sm:$0x1]
      %v3760 = vld [vmem:[%s583 + $0x78] sm:$0xe]
      %v3761 = vld [vmem:[%s583 + $0x7c] sm:$0xf]
      %v3762 = vld [vmem:[%s583 + $0x80] sm:$0x1]
      %v3763 = vld [vmem:[%s583 + $0x84] sm:$0xe]
      %v3764 = vld [vmem:[%s583 + $0x88] sm:$0xf]
      %v3765 = vld [vmem:[%s583 + $0x8c] sm:$0x1]
      %v3766 = vld [vmem:[%s583 + $0x90] sm:$0xe]
      %v3767 = vld [vmem:[%s583 + $0x94] sm:$0xf]
      %v3768 = vld [vmem:[%s583 + $0x98] sm:$0x1]
      %v3769 = vld [vmem:[%s583 + $0x9c] sm:$0xe]
      %v3770 = vld [vmem:[%s583 + $0xa0] sm:$0xf]
      %v3771 = vld [vmem:[%s583 + $0xa4] sm:$0x1]
      %v3772 = vld [vmem:[%s583 + $0xa8] sm:$0xe]
      %v3773 = vld [vmem:[%s583 + $0xac] sm:$0xf]
      %v3774 = vld [vmem:[%s583 + $0xb0] sm:$0x1]
      %v3775 = vld [vmem:[%s583 + $0xb4] sm:$0xe]
      %v3776 = vld [vmem:[%s583 + $0xb8] sm:$0xf]
      %v3777 = vld [vmem:[%s583 + $0xbc] sm:$0x1]
      %v3826 = vrot.slane %v3730, 5
      %v3827 = vrot.slane %v3826, 4
      %v3828 = vrot.slane %v3731, 5
      %v3829 = vsel %vm2047, %v3827, %v3828
      %v3830 = vrot.slane %v3828, 4
      %v3831 = vrot.slane %v3732, 5
      %v3832 = vsel %vm2047, %v3830, %v3831
      %v3833 = vrot.slane %v3733, 5
      %v3834 = vrot.slane %v3833, 4
      %v3835 = vrot.slane %v3734, 5
      %v3836 = vsel %vm2047, %v3834, %v3835
      %v3837 = vrot.slane %v3835, 4
      %v3838 = vrot.slane %v3735, 5
      %v3839 = vsel %vm2047, %v3837, %v3838
      %v3840 = vrot.slane %v3736, 5
      %v3841 = vrot.slane %v3840, 4
      %v3842 = vrot.slane %v3737, 5
      %v3843 = vsel %vm2047, %v3841, %v3842
      %v3844 = vrot.slane %v3842, 4
      %v3845 = vrot.slane %v3738, 5
      %v3846 = vsel %vm2047, %v3844, %v3845
      %v3847 = vrot.slane %v3739, 5
      %v3848 = vrot.slane %v3847, 4
      %v3849 = vrot.slane %v3740, 5
      %v3850 = vsel %vm2047, %v3848, %v3849
      %v3851 = vrot.slane %v3849, 4
      %v3852 = vrot.slane %v3741, 5
      %v3853 = vsel %vm2047, %v3851, %v3852
      %v3854 = vrot.slane %v3742, 5
      %v3855 = vrot.slane %v3854, 4
      %v3856 = vrot.slane %v3743, 5
      %v3857 = vsel %vm2047, %v3855, %v3856
      %v3858 = vrot.slane %v3856, 4
      %v3859 = vrot.slane %v3744, 5
      %v3860 = vsel %vm2047, %v3858, %v3859
      %v3861 = vrot.slane %v3745, 5
      %v3862 = vrot.slane %v3861, 4
      %v3863 = vrot.slane %v3746, 5
      %v3864 = vsel %vm2047, %v3862, %v3863
      %v3865 = vrot.slane %v3863, 4
      %v3866 = vrot.slane %v3747, 5
      %v3867 = vsel %vm2047, %v3865, %v3866
      %v3868 = vrot.slane %v3748, 5
      %v3869 = vrot.slane %v3868, 4
      %v3870 = vrot.slane %v3749, 5
      %v3871 = vsel %vm2047, %v3869, %v3870
      %v3872 = vrot.slane %v3870, 4
      %v3873 = vrot.slane %v3750, 5
      %v3874 = vsel %vm2047, %v3872, %v3873
      %v3875 = vrot.slane %v3751, 5
      %v3876 = vrot.slane %v3875, 4
      %v3877 = vrot.slane %v3752, 5
      %v3878 = vsel %vm2047, %v3876, %v3877
      %v3879 = vrot.slane %v3877, 4
      %v3880 = vrot.slane %v3753, 5
      %v3881 = vsel %vm2047, %v3879, %v3880
      %v3882 = vrot.slane %v3754, 5
      %v3883 = vrot.slane %v3882, 4
      %v3884 = vrot.slane %v3755, 5
      %v3885 = vsel %vm2047, %v3883, %v3884
      %v3886 = vrot.slane %v3884, 4
      %v3887 = vrot.slane %v3756, 5
      %v3888 = vsel %vm2047, %v3886, %v3887
      %v3889 = vrot.slane %v3757, 5
      %v3890 = vrot.slane %v3889, 4
      %v3891 = vrot.slane %v3758, 5
      %v3892 = vsel %vm2047, %v3890, %v3891
      %v3893 = vrot.slane %v3891, 4
      %v3894 = vrot.slane %v3759, 5
      %v3895 = vsel %vm2047, %v3893, %v3894
      %v3896 = vrot.slane %v3760, 5
      %v3897 = vrot.slane %v3896, 4
      %v3898 = vrot.slane %v3761, 5
      %v3899 = vsel %vm2047, %v3897, %v3898
      %v3900 = vrot.slane %v3898, 4
      %v3901 = vrot.slane %v3762, 5
      %v3902 = vsel %vm2047, %v3900, %v3901
      %v3903 = vrot.slane %v3763, 5
      %v3904 = vrot.slane %v3903, 4
      %v3905 = vrot.slane %v3764, 5
      %v3906 = vsel %vm2047, %v3904, %v3905
      %v3907 = vrot.slane %v3905, 4
      %v3908 = vrot.slane %v3765, 5
      %v3909 = vsel %vm2047, %v3907, %v3908
      %v3910 = vrot.slane %v3766, 5
      %v3911 = vrot.slane %v3910, 4
      %v3912 = vrot.slane %v3767, 5
      %v3913 = vsel %vm2047, %v3911, %v3912
      %v3914 = vrot.slane %v3912, 4
      %v3915 = vrot.slane %v3768, 5
      %v3916 = vsel %vm2047, %v3914, %v3915
      %v3917 = vrot.slane %v3769, 5
      %v3918 = vrot.slane %v3917, 4
      %v3919 = vrot.slane %v3770, 5
      %v3920 = vsel %vm2047, %v3918, %v3919
      %v3921 = vrot.slane %v3919, 4
      %v3922 = vrot.slane %v3771, 5
      %v3923 = vsel %vm2047, %v3921, %v3922
      %v3924 = vrot.slane %v3772, 5
      %v3925 = vrot.slane %v3924, 4
      %v3926 = vrot.slane %v3773, 5
      %v3927 = vsel %vm2047, %v3925, %v3926
      %v3928 = vrot.slane %v3926, 4
      %v3929 = vrot.slane %v3774, 5
      %v3930 = vsel %vm2047, %v3928, %v3929
      %v3931 = vrot.slane %v3775, 5
      %v3932 = vrot.slane %v3931, 4
      %v3933 = vrot.slane %v3776, 5
      %v3934 = vsel %vm2047, %v3932, %v3933
      %v3935 = vrot.slane %v3933, 4
      %v3936 = vrot.slane %v3777, 5
      %v3937 = vsel %vm2047, %v3935, %v3936
      %v3938 = vld [vmem:[#allocation3] sm:$0xff]
      %v3939 = vld [vmem:[#allocation3 + $0x8] sm:$0xff]
      %v3940 = vld [vmem:[#allocation3 + $0x10] sm:$0xff]
      %v3941 = vld [vmem:[#allocation3 + $0x18] sm:$0xff]
      %v3942 = vld [vmem:[#allocation3 + $0x20] sm:$0xff]
      %v3943 = vld [vmem:[#allocation3 + $0x28] sm:$0xff]
      %v3944 = vld [vmem:[#allocation3 + $0x30] sm:$0xff]
      %v3945 = vld [vmem:[#allocation3 + $0x38] sm:$0xff]
      %v3946 = vld [vmem:[#allocation3 + $0x40] sm:$0xff]
      %v3947 = vld [vmem:[#allocation3 + $0x48] sm:$0xff]
      %v3948 = vld [vmem:[#allocation3 + $0x50] sm:$0xff]
      %v3949 = vld [vmem:[#allocation3 + $0x58] sm:$0xff]
      %v3950 = vld [vmem:[#allocation3 + $0x60] sm:$0xff]
      %v3951 = vld [vmem:[#allocation3 + $0x68] sm:$0xff]
      %v3952 = vld [vmem:[#allocation3 + $0x70] sm:$0xff]
      %v3953 = vld [vmem:[#allocation3 + $0x78] sm:$0xff]
      %v3954 = vld [vmem:[#allocation3 + $0x80] sm:$0xff]
      %v3955 = vld [vmem:[#allocation3 + $0x88] sm:$0xff]
      %v3956 = vld [vmem:[#allocation3 + $0x90] sm:$0xff]
      %v3957 = vld [vmem:[#allocation3 + $0x98] sm:$0xff]
      %v3958 = vld [vmem:[#allocation3 + $0xa0] sm:$0xff]
      %v3959 = vld [vmem:[#allocation3 + $0xa8] sm:$0xff]
      %v3960 = vld [vmem:[#allocation3 + $0xb0] sm:$0xff]
      %v3961 = vld [vmem:[#allocation3 + $0xb8] sm:$0xff]
      %v3962 = vld [vmem:[#allocation3 + $0xc0] sm:$0xff]
      %v3963 = vld [vmem:[#allocation3 + $0xc8] sm:$0xff]
      %v3964 = vld [vmem:[#allocation3 + $0xd0] sm:$0xff]
      %v3965 = vld [vmem:[#allocation3 + $0xd8] sm:$0xff]
      %v3966 = vld [vmem:[#allocation3 + $0xe0] sm:$0xff]
      %v3967 = vld [vmem:[#allocation3 + $0xe8] sm:$0xff]
      %v3968 = vld [vmem:[#allocation3 + $0xf0] sm:$0xff]
      %v3969 = vld [vmem:[#allocation3 + $0xf8] sm:$0xff]
      %s3970 = scalar_lea.vmem %s1, 20
      %v3971 = vld [vmem:[%s3970] sm:$0xf]
      %v3972 = vunpack.c.l.b16 %v3829
      %v3973 = vunpack.c.l.b16 %v3832
      %v3974 = vunpack.c.l.b16 %v3836
      %v3975 = vunpack.c.l.b16 %v3839
      %v3976 = vunpack.c.l.b16 %v3843
      %v3977 = vunpack.c.l.b16 %v3846
      %v3978 = vunpack.c.l.b16 %v3850
      %v3979 = vunpack.c.l.b16 %v3853
      %v3980 = vunpack.c.l.b16 %v3857
      %v3981 = vunpack.c.l.b16 %v3860
      %v3982 = vunpack.c.l.b16 %v3864
      %v3983 = vunpack.c.l.b16 %v3867
      %v3984 = vunpack.c.l.b16 %v3871
      %v3985 = vunpack.c.l.b16 %v3874
      %v3986 = vunpack.c.l.b16 %v3878
      %v3987 = vunpack.c.l.b16 %v3881
      %v3988 = vunpack.c.l.b16 %v3885
      %v3989 = vunpack.c.l.b16 %v3888
      %v3990 = vunpack.c.l.b16 %v3892
      %v3991 = vunpack.c.l.b16 %v3895
      %v3992 = vunpack.c.l.b16 %v3899
      %v3993 = vunpack.c.l.b16 %v3902
      %v3994 = vunpack.c.l.b16 %v3906
      %v3995 = vunpack.c.l.b16 %v3909
      %v3996 = vunpack.c.l.b16 %v3913
      %v3997 = vunpack.c.l.b16 %v3916
      %v3998 = vunpack.c.l.b16 %v3920
      %v3999 = vunpack.c.l.b16 %v3923
      %v4000 = vunpack.c.l.b16 %v3927
      %v4001 = vunpack.c.l.b16 %v3930
      %v4002 = vunpack.c.l.b16 %v3934
      %v4003 = vunpack.c.l.b16 %v3937
      %v4004 = vpack.c.b16 %v3973, %v3972
      %v4005 = vpack.c.b16 %v3975, %v3974
      %v4006 = vpack.c.b16 %v3977, %v3976
      %v4007 = vpack.c.b16 %v3979, %v3978
      %v4008 = vpack.c.b16 %v3981, %v3980
      %v4009 = vpack.c.b16 %v3983, %v3982
      %v4010 = vpack.c.b16 %v3985, %v3984
      %v4011 = vpack.c.b16 %v3987, %v3986
      %v4012 = vpack.c.b16 %v3989, %v3988
      %v4013 = vpack.c.b16 %v3991, %v3990
      %v4014 = vpack.c.b16 %v3993, %v3992
      %v4015 = vpack.c.b16 %v3995, %v3994
      %v4016 = vpack.c.b16 %v3997, %v3996
      %v4017 = vpack.c.b16 %v3999, %v3998
      %v4018 = vpack.c.b16 %v4001, %v4000
      %v4019 = vpack.c.b16 %v4003, %v4002
      %v4021 = vsel %vm701, %v4004, 0
      %v4024 = vsel %vm701, %v4005, 0
      %v4027 = vsel %vm701, %v4006, 0
      %v4030 = vsel %vm701, %v4007, 0
      %v4033 = vsel %vm701, %v4008, 0
      %v4036 = vsel %vm701, %v4009, 0
      %v4039 = vsel %vm701, %v4010, 0
      %v4042 = vsel %vm701, %v4011, 0
      %v4045 = vsel %vm701, %v4012, 0
      %v4048 = vsel %vm701, %v4013, 0
      %v4051 = vsel %vm701, %v4014, 0
      %v4054 = vsel %vm701, %v4015, 0
      %v4057 = vsel %vm701, %v4016, 0
      %v4060 = vsel %vm701, %v4017, 0
      %v4063 = vsel %vm701, %v4018, 0
      %v4066 = vsel %vm701, %v4019, 0
      %v4069 = vsel %vm927, %v3971, 0
      %4071 = vmatprep.subr.bf16.mxu0 0
      %4072 = vmatpush1.bf16.msra.mxu0 0
      %4073 = vmatprep.subr.bf16.mxu0 0
      %4074 = vmatpush1.bf16.msra.mxu0 0
      %4075 = vmatprep.subr.bf16.mxu0 0
      %4076 = vmatpush1.bf16.msra.mxu0 0
      %4077 = vmatprep.subr.bf16.mxu0 0
      %4078 = vmatpush1.bf16.msra.mxu0 0
      %4079 = vmatprep.subr.bf16.mxu0 0
      %4080 = vmatpush1.bf16.msra.mxu0 0
      %4081 = vmatprep.subr.bf16.mxu0 0
      %4082 = vmatpush1.bf16.msra.mxu0 0
      %4083 = vmatprep.subr.bf16.mxu0 0
      %4084 = vmatpush1.bf16.msra.mxu0 0
      %4085 = vmatprep.subr.bf16.mxu0 0
      %4086 = vmatpush1.bf16.msra.mxu0 %v4069
      %4087 = vmatprep.subr.bf16.mxu0 0
      %4088 = vmatpush2.bf16.msra.mxu0 0
      %4089 = vmatprep.subr.bf16.mxu0 0
      %4090 = vmatpush2.bf16.msra.mxu0 0
      %4091 = vmatprep.subr.bf16.mxu0 0
      %4092 = vmatpush2.bf16.msra.mxu0 0
      %4093 = vmatprep.subr.bf16.mxu0 0
      %4094 = vmatpush2.bf16.msra.mxu0 0
      %4095 = vmatprep.subr.bf16.mxu0 0
      %4096 = vmatpush2.bf16.msra.mxu0 0
      %4097 = vmatprep.subr.bf16.mxu0 0
      %4098 = vmatpush2.bf16.msra.mxu0 0
      %4099 = vmatprep.subr.bf16.mxu0 0
      %4100 = vmatpush2.bf16.msra.mxu0 0
      %4101 = vmatprep.subr.bf16.mxu0 0
      %4102 = vmatpush2.bf16.msra.mxu0 0
      %4103 = vmatprep.mubr.bf16.mxu0 0
      %4104 = vmatmul.mubr.bf16.gmra.mxu0 %v4021
      %v4105 = vpop.f32.mrf.mxu0
      %v4106 = vadd.f32 0.0, %v4105
      %v4107 = vpop.f32.mrf.mxu0
      %v4108 = vpop.f32.mrf.mxu0
      %v4109 = vadd.f32 0.0, %v4108
      %v4110 = vpop.f32.mrf.mxu0
      %4111 = vmatprep.mubr.bf16.mxu0 0
      %4112 = vmatmul.mubr.bf16.gmra.mxu0 %v4024
      %v4113 = vpop.f32.mrf.mxu0
      %v4114 = vadd.f32 0.0, %v4113
      %v4115 = vpop.f32.mrf.mxu0
      %v4116 = vpop.f32.mrf.mxu0
      %v4117 = vadd.f32 0.0, %v4116
      %v4118 = vpop.f32.mrf.mxu0
      %4119 = vmatprep.mubr.bf16.mxu0 0
      %4120 = vmatmul.mubr.bf16.gmra.mxu0 %v4027
      %v4121 = vpop.f32.mrf.mxu0
      %v4122 = vadd.f32 0.0, %v4121
      %v4123 = vpop.f32.mrf.mxu0
      %v4124 = vpop.f32.mrf.mxu0
      %v4125 = vadd.f32 0.0, %v4124
      %v4126 = vpop.f32.mrf.mxu0
      %4127 = vmatprep.mubr.bf16.mxu0 0
      %4128 = vmatmul.mubr.bf16.gmra.mxu0 %v4030
      %v4129 = vpop.f32.mrf.mxu0
      %v4130 = vadd.f32 0.0, %v4129
      %v4131 = vpop.f32.mrf.mxu0
      %v4132 = vpop.f32.mrf.mxu0
      %v4133 = vadd.f32 0.0, %v4132
      %v4134 = vpop.f32.mrf.mxu0
      %4135 = vmatprep.mubr.bf16.mxu0 0
      %4136 = vmatmul.mubr.bf16.gmra.mxu0 %v4033
      %v4137 = vpop.f32.mrf.mxu0
      %v4138 = vadd.f32 0.0, %v4137
      %v4139 = vpop.f32.mrf.mxu0
      %v4140 = vpop.f32.mrf.mxu0
      %v4141 = vadd.f32 0.0, %v4140
      %v4142 = vpop.f32.mrf.mxu0
      %4143 = vmatprep.mubr.bf16.mxu0 0
      %4144 = vmatmul.mubr.bf16.gmra.mxu0 %v4036
      %v4145 = vpop.f32.mrf.mxu0
      %v4146 = vadd.f32 0.0, %v4145
      %v4147 = vpop.f32.mrf.mxu0
      %v4148 = vpop.f32.mrf.mxu0
      %v4149 = vadd.f32 0.0, %v4148
      %v4150 = vpop.f32.mrf.mxu0
      %4151 = vmatprep.mubr.bf16.mxu0 0
      %4152 = vmatmul.mubr.bf16.gmra.mxu0 %v4039
      %v4153 = vpop.f32.mrf.mxu0
      %v4154 = vadd.f32 0.0, %v4153
      %v4155 = vpop.f32.mrf.mxu0
      %v4156 = vpop.f32.mrf.mxu0
      %v4157 = vadd.f32 0.0, %v4156
      %v4158 = vpop.f32.mrf.mxu0
      %4159 = vmatprep.mubr.bf16.mxu0 0
      %4160 = vmatmul.mubr.bf16.gmra.mxu0 %v4042
      %v4161 = vpop.f32.mrf.mxu0
      %v4162 = vadd.f32 0.0, %v4161
      %v4163 = vpop.f32.mrf.mxu0
      %v4164 = vpop.f32.mrf.mxu0
      %v4165 = vadd.f32 0.0, %v4164
      %v4166 = vpop.f32.mrf.mxu0
      %4167 = vmatprep.mubr.bf16.mxu0 0
      %4168 = vmatmul.mubr.bf16.gmra.mxu0 %v4045
      %v4169 = vpop.f32.mrf.mxu0
      %v4170 = vadd.f32 0.0, %v4169
      %v4171 = vpop.f32.mrf.mxu0
      %v4172 = vpop.f32.mrf.mxu0
      %v4173 = vadd.f32 0.0, %v4172
      %v4174 = vpop.f32.mrf.mxu0
      %4175 = vmatprep.mubr.bf16.mxu0 0
      %4176 = vmatmul.mubr.bf16.gmra.mxu0 %v4048
      %v4177 = vpop.f32.mrf.mxu0
      %v4178 = vadd.f32 0.0, %v4177
      %v4179 = vpop.f32.mrf.mxu0
      %v4180 = vpop.f32.mrf.mxu0
      %v4181 = vadd.f32 0.0, %v4180
      %v4182 = vpop.f32.mrf.mxu0
      %4183 = vmatprep.mubr.bf16.mxu0 0
      %4184 = vmatmul.mubr.bf16.gmra.mxu0 %v4051
      %v4185 = vpop.f32.mrf.mxu0
      %v4186 = vadd.f32 0.0, %v4185
      %v4187 = vpop.f32.mrf.mxu0
      %v4188 = vpop.f32.mrf.mxu0
      %v4189 = vadd.f32 0.0, %v4188
      %v4190 = vpop.f32.mrf.mxu0
      %4191 = vmatprep.mubr.bf16.mxu0 0
      %4192 = vmatmul.mubr.bf16.gmra.mxu0 %v4054
      %v4193 = vpop.f32.mrf.mxu0
      %v4194 = vadd.f32 0.0, %v4193
      %v4195 = vpop.f32.mrf.mxu0
      %v4196 = vpop.f32.mrf.mxu0
      %v4197 = vadd.f32 0.0, %v4196
      %v4198 = vpop.f32.mrf.mxu0
      %4199 = vmatprep.mubr.bf16.mxu0 0
      %4200 = vmatmul.mubr.bf16.gmra.mxu0 %v4057
      %v4201 = vpop.f32.mrf.mxu0
      %v4202 = vadd.f32 0.0, %v4201
      %v4203 = vpop.f32.mrf.mxu0
      %v4204 = vpop.f32.mrf.mxu0
      %v4205 = vadd.f32 0.0, %v4204
      %v4206 = vpop.f32.mrf.mxu0
      %4207 = vmatprep.mubr.bf16.mxu0 0
      %4208 = vmatmul.mubr.bf16.gmra.mxu0 %v4060
      %v4209 = vpop.f32.mrf.mxu0
      %v4210 = vadd.f32 0.0, %v4209
      %v4211 = vpop.f32.mrf.mxu0
      %v4212 = vpop.f32.mrf.mxu0
      %v4213 = vadd.f32 0.0, %v4212
      %v4214 = vpop.f32.mrf.mxu0
      %4215 = vmatprep.mubr.bf16.mxu0 0
      %4216 = vmatmul.mubr.bf16.gmra.mxu0 %v4063
      %v4217 = vpop.f32.mrf.mxu0
      %v4218 = vadd.f32 0.0, %v4217
      %v4219 = vpop.f32.mrf.mxu0
      %v4220 = vpop.f32.mrf.mxu0
      %v4221 = vadd.f32 0.0, %v4220
      %v4222 = vpop.f32.mrf.mxu0
      %4223 = vmatprep.mubr.bf16.mxu0 0
      %4224 = vmatmul.mubr.bf16.gmra.mxu0 %v4066
      %v4225 = vpop.f32.mrf.mxu0
      %v4226 = vadd.f32 0.0, %v4225
      %v4227 = vpop.f32.mrf.mxu0
      %v4228 = vpop.f32.mrf.mxu0
      %v4229 = vadd.f32 0.0, %v4228
      %v4230 = vpop.f32.mrf.mxu0
      %4231 = vdwg.mxu0
      %v4232 = vadd.f32 %v3938, %v4106
      %v4233 = vadd.f32 %v3939, %v4109
      %v4234 = vadd.f32 %v3940, %v4114
      %v4235 = vadd.f32 %v3941, %v4117
      %v4236 = vadd.f32 %v3942, %v4122
      %v4237 = vadd.f32 %v3943, %v4125
      %v4238 = vadd.f32 %v3944, %v4130
      %v4239 = vadd.f32 %v3945, %v4133
      %v4240 = vadd.f32 %v3946, %v4138
      %v4241 = vadd.f32 %v3947, %v4141
      %v4242 = vadd.f32 %v3948, %v4146
      %v4243 = vadd.f32 %v3949, %v4149
      %v4244 = vadd.f32 %v3950, %v4154
      %v4245 = vadd.f32 %v3951, %v4157
      %v4246 = vadd.f32 %v3952, %v4162
      %v4247 = vadd.f32 %v3953, %v4165
      %v4248 = vadd.f32 %v3954, %v4170
      %v4249 = vadd.f32 %v3955, %v4173
      %v4250 = vadd.f32 %v3956, %v4178
      %v4251 = vadd.f32 %v3957, %v4181
      %v4252 = vadd.f32 %v3958, %v4186
      %v4253 = vadd.f32 %v3959, %v4189
      %v4254 = vadd.f32 %v3960, %v4194
      %v4255 = vadd.f32 %v3961, %v4197
      %v4256 = vadd.f32 %v3962, %v4202
      %v4257 = vadd.f32 %v3963, %v4205
      %v4258 = vadd.f32 %v3964, %v4210
      %v4259 = vadd.f32 %v3965, %v4213
      %v4260 = vadd.f32 %v3966, %v4218
      %v4261 = vadd.f32 %v3967, %v4221
      %v4262 = vadd.f32 %v3968, %v4226
      %v4263 = vadd.f32 %v3969, %v4229
      %4264 = vst.msk [vmem:[#allocation3] sm:$0xff] %vm701, %v4232
      %4265 = vst.msk [vmem:[#allocation3 + $0x8] sm:$0xff] %vm701, %v4233
      %4266 = vst.msk [vmem:[#allocation3 + $0x10] sm:$0xff] %vm701, %v4234
      %4267 = vst.msk [vmem:[#allocation3 + $0x18] sm:$0xff] %vm701, %v4235
      %4268 = vst.msk [vmem:[#allocation3 + $0x20] sm:$0xff] %vm701, %v4236
      %4269 = vst.msk [vmem:[#allocation3 + $0x28] sm:$0xff] %vm701, %v4237
      %4270 = vst.msk [vmem:[#allocation3 + $0x30] sm:$0xff] %vm701, %v4238
      %4271 = vst.msk [vmem:[#allocation3 + $0x38] sm:$0xff] %vm701, %v4239
      %4272 = vst.msk [vmem:[#allocation3 + $0x40] sm:$0xff] %vm701, %v4240
      %4273 = vst.msk [vmem:[#allocation3 + $0x48] sm:$0xff] %vm701, %v4241
      %4274 = vst.msk [vmem:[#allocation3 + $0x50] sm:$0xff] %vm701, %v4242
      %4275 = vst.msk [vmem:[#allocation3 + $0x58] sm:$0xff] %vm701, %v4243
      %4276 = vst.msk [vmem:[#allocation3 + $0x60] sm:$0xff] %vm701, %v4244
      %4277 = vst.msk [vmem:[#allocation3 + $0x68] sm:$0xff] %vm701, %v4245
      %4278 = vst.msk [vmem:[#allocation3 + $0x70] sm:$0xff] %vm701, %v4246
      %4279 = vst.msk [vmem:[#allocation3 + $0x78] sm:$0xff] %vm701, %v4247
      %4280 = vst.msk [vmem:[#allocation3 + $0x80] sm:$0xff] %vm701, %v4248
      %4281 = vst.msk [vmem:[#allocation3 + $0x88] sm:$0xff] %vm701, %v4249
      %4282 = vst.msk [vmem:[#allocation3 + $0x90] sm:$0xff] %vm701, %v4250
      %4283 = vst.msk [vmem:[#allocation3 + $0x98] sm:$0xff] %vm701, %v4251
      %4284 = vst.msk [vmem:[#allocation3 + $0xa0] sm:$0xff] %vm701, %v4252
      %4285 = vst.msk [vmem:[#allocation3 + $0xa8] sm:$0xff] %vm701, %v4253
      %4286 = vst.msk [vmem:[#allocation3 + $0xb0] sm:$0xff] %vm701, %v4254
      %4287 = vst.msk [vmem:[#allocation3 + $0xb8] sm:$0xff] %vm701, %v4255
      %4288 = vst.msk [vmem:[#allocation3 + $0xc0] sm:$0xff] %vm701, %v4256
      %4289 = vst.msk [vmem:[#allocation3 + $0xc8] sm:$0xff] %vm701, %v4257
      %4290 = vst.msk [vmem:[#allocation3 + $0xd0] sm:$0xff] %vm701, %v4258
      %4291 = vst.msk [vmem:[#allocation3 + $0xd8] sm:$0xff] %vm701, %v4259
      %4292 = vst.msk [vmem:[#allocation3 + $0xe0] sm:$0xff] %vm701, %v4260
      %4293 = vst.msk [vmem:[#allocation3 + $0xe8] sm:$0xff] %vm701, %v4261
      %4294 = vst.msk [vmem:[#allocation3 + $0xf0] sm:$0xff] %vm701, %v4262
      %4295 = vst.msk [vmem:[#allocation3 + $0xf8] sm:$0xff] %vm701, %v4263
      %s4296 = scalar_lea.vmem [#allocation2], 24
      %v4297 = vld [vmem:[%s4296] sm:$0xf]
      %v4298 = vld [vmem:[%s4296 + $0x4] sm:$0xf]
      %v4299 = vld [vmem:[%s4296 + $0xc] sm:$0xf]
      %v4300 = vld [vmem:[%s4296 + $0x10] sm:$0xf]
      %v4301 = vld [vmem:[%s4296 + $0x18] sm:$0xf]
      %v4302 = vld [vmem:[%s4296 + $0x1c] sm:$0xf]
      %v4303 = vld [vmem:[%s4296 + $0x24] sm:$0xf]
      %v4304 = vld [vmem:[%s4296 + $0x28] sm:$0xf]
      %v4305 = vld [vmem:[%s4296 + $0x30] sm:$0xf]
      %v4306 = vld [vmem:[%s4296 + $0x34] sm:$0xf]
      %v4307 = vld [vmem:[%s4296 + $0x3c] sm:$0xf]
      %v4308 = vld [vmem:[%s4296 + $0x40] sm:$0xf]
      %v4309 = vld [vmem:[%s4296 + $0x48] sm:$0xf]
      %v4310 = vld [vmem:[%s4296 + $0x4c] sm:$0xf]
      %v4311 = vld [vmem:[%s4296 + $0x54] sm:$0xf]
      %v4312 = vld [vmem:[%s4296 + $0x58] sm:$0xf]
      %v4313 = vld [vmem:[%s4296 + $0x60] sm:$0xf]
      %v4314 = vld [vmem:[%s4296 + $0x64] sm:$0xf]
      %v4315 = vld [vmem:[%s4296 + $0x6c] sm:$0xf]
      %v4316 = vld [vmem:[%s4296 + $0x70] sm:$0xf]
      %v4317 = vld [vmem:[%s4296 + $0x78] sm:$0xf]
      %v4318 = vld [vmem:[%s4296 + $0x7c] sm:$0xf]
      %v4319 = vld [vmem:[%s4296 + $0x84] sm:$0xf]
      %v4320 = vld [vmem:[%s4296 + $0x88] sm:$0xf]
      %v4321 = vld [vmem:[%s4296 + $0x90] sm:$0xf]
      %v4322 = vld [vmem:[%s4296 + $0x94] sm:$0xf]
      %v4323 = vld [vmem:[%s4296 + $0x9c] sm:$0xf]
      %v4324 = vld [vmem:[%s4296 + $0xa0] sm:$0xf]
      %v4325 = vld [vmem:[%s4296 + $0xa8] sm:$0xf]
      %v4326 = vld [vmem:[%s4296 + $0xac] sm:$0xf]
      %v4327 = vld [vmem:[%s4296 + $0xb4] sm:$0xf]
      %v4328 = vld [vmem:[%s4296 + $0xb8] sm:$0xf]
      %v4329 = vld [vmem:[#allocation3] sm:$0xff]
      %v4330 = vld [vmem:[#allocation3 + $0x8] sm:$0xff]
      %v4331 = vld [vmem:[#allocation3 + $0x10] sm:$0xff]
      %v4332 = vld [vmem:[#allocation3 + $0x18] sm:$0xff]
      %v4333 = vld [vmem:[#allocation3 + $0x20] sm:$0xff]
      %v4334 = vld [vmem:[#allocation3 + $0x28] sm:$0xff]
      %v4335 = vld [vmem:[#allocation3 + $0x30] sm:$0xff]
      %v4336 = vld [vmem:[#allocation3 + $0x38] sm:$0xff]
      %v4337 = vld [vmem:[#allocation3 + $0x40] sm:$0xff]
      %v4338 = vld [vmem:[#allocation3 + $0x48] sm:$0xff]
      %v4339 = vld [vmem:[#allocation3 + $0x50] sm:$0xff]
      %v4340 = vld [vmem:[#allocation3 + $0x58] sm:$0xff]
      %v4341 = vld [vmem:[#allocation3 + $0x60] sm:$0xff]
      %v4342 = vld [vmem:[#allocation3 + $0x68] sm:$0xff]
      %v4343 = vld [vmem:[#allocation3 + $0x70] sm:$0xff]
      %v4344 = vld [vmem:[#allocation3 + $0x78] sm:$0xff]
      %v4345 = vld [vmem:[#allocation3 + $0x80] sm:$0xff]
      %v4346 = vld [vmem:[#allocation3 + $0x88] sm:$0xff]
      %v4347 = vld [vmem:[#allocation3 + $0x90] sm:$0xff]
      %v4348 = vld [vmem:[#allocation3 + $0x98] sm:$0xff]
      %v4349 = vld [vmem:[#allocation3 + $0xa0] sm:$0xff]
      %v4350 = vld [vmem:[#allocation3 + $0xa8] sm:$0xff]
      %v4351 = vld [vmem:[#allocation3 + $0xb0] sm:$0xff]
      %v4352 = vld [vmem:[#allocation3 + $0xb8] sm:$0xff]
      %v4353 = vld [vmem:[#allocation3 + $0xc0] sm:$0xff]
      %v4354 = vld [vmem:[#allocation3 + $0xc8] sm:$0xff]
      %v4355 = vld [vmem:[#allocation3 + $0xd0] sm:$0xff]
      %v4356 = vld [vmem:[#allocation3 + $0xd8] sm:$0xff]
      %v4357 = vld [vmem:[#allocation3 + $0xe0] sm:$0xff]
      %v4358 = vld [vmem:[#allocation3 + $0xe8] sm:$0xff]
      %v4359 = vld [vmem:[#allocation3 + $0xf0] sm:$0xff]
      %v4360 = vld [vmem:[#allocation3 + $0xf8] sm:$0xff]
      %s4361 = scalar_lea.vmem %s1, 24
      %v4362 = vld [vmem:[%s4361] sm:$0xf]
      %v4395 = vunpack.c.l.b16 %v4297
      %v4396 = vunpack.c.l.b16 %v4298
      %v4397 = vunpack.c.l.b16 %v4299
      %v4398 = vunpack.c.l.b16 %v4300
      %v4399 = vunpack.c.l.b16 %v4301
      %v4400 = vunpack.c.l.b16 %v4302
      %v4401 = vunpack.c.l.b16 %v4303
      %v4402 = vunpack.c.l.b16 %v4304
      %v4403 = vunpack.c.l.b16 %v4305
      %v4404 = vunpack.c.l.b16 %v4306
      %v4405 = vunpack.c.l.b16 %v4307
      %v4406 = vunpack.c.l.b16 %v4308
      %v4407 = vunpack.c.l.b16 %v4309
      %v4408 = vunpack.c.l.b16 %v4310
      %v4409 = vunpack.c.l.b16 %v4311
      %v4410 = vunpack.c.l.b16 %v4312
      %v4411 = vunpack.c.l.b16 %v4313
      %v4412 = vunpack.c.l.b16 %v4314
      %v4413 = vunpack.c.l.b16 %v4315
      %v4414 = vunpack.c.l.b16 %v4316
      %v4415 = vunpack.c.l.b16 %v4317
      %v4416 = vunpack.c.l.b16 %v4318
      %v4417 = vunpack.c.l.b16 %v4319
      %v4418 = vunpack.c.l.b16 %v4320
      %v4419 = vunpack.c.l.b16 %v4321
      %v4420 = vunpack.c.l.b16 %v4322
      %v4421 = vunpack.c.l.b16 %v4323
      %v4422 = vunpack.c.l.b16 %v4324
      %v4423 = vunpack.c.l.b16 %v4325
      %v4424 = vunpack.c.l.b16 %v4326
      %v4425 = vunpack.c.l.b16 %v4327
      %v4426 = vunpack.c.l.b16 %v4328
      %v4427 = vpack.c.b16 %v4396, %v4395
      %v4428 = vpack.c.b16 %v4398, %v4397
      %v4429 = vpack.c.b16 %v4400, %v4399
      %v4430 = vpack.c.b16 %v4402, %v4401
      %v4431 = vpack.c.b16 %v4404, %v4403
      %v4432 = vpack.c.b16 %v4406, %v4405
      %v4433 = vpack.c.b16 %v4408, %v4407
      %v4434 = vpack.c.b16 %v4410, %v4409
      %v4435 = vpack.c.b16 %v4412, %v4411
      %v4436 = vpack.c.b16 %v4414, %v4413
      %v4437 = vpack.c.b16 %v4416, %v4415
      %v4438 = vpack.c.b16 %v4418, %v4417
      %v4439 = vpack.c.b16 %v4420, %v4419
      %v4440 = vpack.c.b16 %v4422, %v4421
      %v4441 = vpack.c.b16 %v4424, %v4423
      %v4442 = vpack.c.b16 %v4426, %v4425
      %v4444 = vsel %vm701, %v4427, 0
      %v4447 = vsel %vm701, %v4428, 0
      %v4450 = vsel %vm701, %v4429, 0
      %v4453 = vsel %vm701, %v4430, 0
      %v4456 = vsel %vm701, %v4431, 0
      %v4459 = vsel %vm701, %v4432, 0
      %v4462 = vsel %vm701, %v4433, 0
      %v4465 = vsel %vm701, %v4434, 0
      %v4468 = vsel %vm701, %v4435, 0
      %v4471 = vsel %vm701, %v4436, 0
      %v4474 = vsel %vm701, %v4437, 0
      %v4477 = vsel %vm701, %v4438, 0
      %v4480 = vsel %vm701, %v4439, 0
      %v4483 = vsel %vm701, %v4440, 0
      %v4486 = vsel %vm701, %v4441, 0
      %v4489 = vsel %vm701, %v4442, 0
      %v4492 = vsel %vm927, %v4362, 0
      %4494 = vmatprep.subr.bf16.mxu0 0
      %4495 = vmatpush1.bf16.msra.mxu0 0
      %4496 = vmatprep.subr.bf16.mxu0 0
      %4497 = vmatpush1.bf16.msra.mxu0 0
      %4498 = vmatprep.subr.bf16.mxu0 0
      %4499 = vmatpush1.bf16.msra.mxu0 0
      %4500 = vmatprep.subr.bf16.mxu0 0
      %4501 = vmatpush1.bf16.msra.mxu0 0
      %4502 = vmatprep.subr.bf16.mxu0 0
      %4503 = vmatpush1.bf16.msra.mxu0 0
      %4504 = vmatprep.subr.bf16.mxu0 0
      %4505 = vmatpush1.bf16.msra.mxu0 0
      %4506 = vmatprep.subr.bf16.mxu0 0
      %4507 = vmatpush1.bf16.msra.mxu0 0
      %4508 = vmatprep.subr.bf16.mxu0 0
      %4509 = vmatpush1.bf16.msra.mxu0 %v4492
      %4510 = vmatprep.subr.bf16.mxu0 0
      %4511 = vmatpush2.bf16.msra.mxu0 0
      %4512 = vmatprep.subr.bf16.mxu0 0
      %4513 = vmatpush2.bf16.msra.mxu0 0
      %4514 = vmatprep.subr.bf16.mxu0 0
      %4515 = vmatpush2.bf16.msra.mxu0 0
      %4516 = vmatprep.subr.bf16.mxu0 0
      %4517 = vmatpush2.bf16.msra.mxu0 0
      %4518 = vmatprep.subr.bf16.mxu0 0
      %4519 = vmatpush2.bf16.msra.mxu0 0
      %4520 = vmatprep.subr.bf16.mxu0 0
      %4521 = vmatpush2.bf16.msra.mxu0 0
      %4522 = vmatprep.subr.bf16.mxu0 0
      %4523 = vmatpush2.bf16.msra.mxu0 0
      %4524 = vmatprep.subr.bf16.mxu0 0
      %4525 = vmatpush2.bf16.msra.mxu0 0
      %4526 = vmatprep.mubr.bf16.mxu0 0
      %4527 = vmatmul.mubr.bf16.gmra.mxu0 %v4444
      %v4528 = vpop.f32.mrf.mxu0
      %v4529 = vadd.f32 0.0, %v4528
      %v4530 = vpop.f32.mrf.mxu0
      %v4531 = vpop.f32.mrf.mxu0
      %v4532 = vadd.f32 0.0, %v4531
      %v4533 = vpop.f32.mrf.mxu0
      %4534 = vmatprep.mubr.bf16.mxu0 0
      %4535 = vmatmul.mubr.bf16.gmra.mxu0 %v4447
      %v4536 = vpop.f32.mrf.mxu0
      %v4537 = vadd.f32 0.0, %v4536
      %v4538 = vpop.f32.mrf.mxu0
      %v4539 = vpop.f32.mrf.mxu0
      %v4540 = vadd.f32 0.0, %v4539
      %v4541 = vpop.f32.mrf.mxu0
      %4542 = vmatprep.mubr.bf16.mxu0 0
      %4543 = vmatmul.mubr.bf16.gmra.mxu0 %v4450
      %v4544 = vpop.f32.mrf.mxu0
      %v4545 = vadd.f32 0.0, %v4544
      %v4546 = vpop.f32.mrf.mxu0
      %v4547 = vpop.f32.mrf.mxu0
      %v4548 = vadd.f32 0.0, %v4547
      %v4549 = vpop.f32.mrf.mxu0
      %4550 = vmatprep.mubr.bf16.mxu0 0
      %4551 = vmatmul.mubr.bf16.gmra.mxu0 %v4453
      %v4552 = vpop.f32.mrf.mxu0
      %v4553 = vadd.f32 0.0, %v4552
      %v4554 = vpop.f32.mrf.mxu0
      %v4555 = vpop.f32.mrf.mxu0
      %v4556 = vadd.f32 0.0, %v4555
      %v4557 = vpop.f32.mrf.mxu0
      %4558 = vmatprep.mubr.bf16.mxu0 0
      %4559 = vmatmul.mubr.bf16.gmra.mxu0 %v4456
      %v4560 = vpop.f32.mrf.mxu0
      %v4561 = vadd.f32 0.0, %v4560
      %v4562 = vpop.f32.mrf.mxu0
      %v4563 = vpop.f32.mrf.mxu0
      %v4564 = vadd.f32 0.0, %v4563
      %v4565 = vpop.f32.mrf.mxu0
      %4566 = vmatprep.mubr.bf16.mxu0 0
      %4567 = vmatmul.mubr.bf16.gmra.mxu0 %v4459
      %v4568 = vpop.f32.mrf.mxu0
      %v4569 = vadd.f32 0.0, %v4568
      %v4570 = vpop.f32.mrf.mxu0
      %v4571 = vpop.f32.mrf.mxu0
      %v4572 = vadd.f32 0.0, %v4571
      %v4573 = vpop.f32.mrf.mxu0
      %4574 = vmatprep.mubr.bf16.mxu0 0
      %4575 = vmatmul.mubr.bf16.gmra.mxu0 %v4462
      %v4576 = vpop.f32.mrf.mxu0
      %v4577 = vadd.f32 0.0, %v4576
      %v4578 = vpop.f32.mrf.mxu0
      %v4579 = vpop.f32.mrf.mxu0
      %v4580 = vadd.f32 0.0, %v4579
      %v4581 = vpop.f32.mrf.mxu0
      %4582 = vmatprep.mubr.bf16.mxu0 0
      %4583 = vmatmul.mubr.bf16.gmra.mxu0 %v4465
      %v4584 = vpop.f32.mrf.mxu0
      %v4585 = vadd.f32 0.0, %v4584
      %v4586 = vpop.f32.mrf.mxu0
      %v4587 = vpop.f32.mrf.mxu0
      %v4588 = vadd.f32 0.0, %v4587
      %v4589 = vpop.f32.mrf.mxu0
      %4590 = vmatprep.mubr.bf16.mxu0 0
      %4591 = vmatmul.mubr.bf16.gmra.mxu0 %v4468
      %v4592 = vpop.f32.mrf.mxu0
      %v4593 = vadd.f32 0.0, %v4592
      %v4594 = vpop.f32.mrf.mxu0
      %v4595 = vpop.f32.mrf.mxu0
      %v4596 = vadd.f32 0.0, %v4595
      %v4597 = vpop.f32.mrf.mxu0
      %4598 = vmatprep.mubr.bf16.mxu0 0
      %4599 = vmatmul.mubr.bf16.gmra.mxu0 %v4471
      %v4600 = vpop.f32.mrf.mxu0
      %v4601 = vadd.f32 0.0, %v4600
      %v4602 = vpop.f32.mrf.mxu0
      %v4603 = vpop.f32.mrf.mxu0
      %v4604 = vadd.f32 0.0, %v4603
      %v4605 = vpop.f32.mrf.mxu0
      %4606 = vmatprep.mubr.bf16.mxu0 0
      %4607 = vmatmul.mubr.bf16.gmra.mxu0 %v4474
      %v4608 = vpop.f32.mrf.mxu0
      %v4609 = vadd.f32 0.0, %v4608
      %v4610 = vpop.f32.mrf.mxu0
      %v4611 = vpop.f32.mrf.mxu0
      %v4612 = vadd.f32 0.0, %v4611
      %v4613 = vpop.f32.mrf.mxu0
      %4614 = vmatprep.mubr.bf16.mxu0 0
      %4615 = vmatmul.mubr.bf16.gmra.mxu0 %v4477
      %v4616 = vpop.f32.mrf.mxu0
      %v4617 = vadd.f32 0.0, %v4616
      %v4618 = vpop.f32.mrf.mxu0
      %v4619 = vpop.f32.mrf.mxu0
      %v4620 = vadd.f32 0.0, %v4619
      %v4621 = vpop.f32.mrf.mxu0
      %4622 = vmatprep.mubr.bf16.mxu0 0
      %4623 = vmatmul.mubr.bf16.gmra.mxu0 %v4480
      %v4624 = vpop.f32.mrf.mxu0
      %v4625 = vadd.f32 0.0, %v4624
      %v4626 = vpop.f32.mrf.mxu0
      %v4627 = vpop.f32.mrf.mxu0
      %v4628 = vadd.f32 0.0, %v4627
      %v4629 = vpop.f32.mrf.mxu0
      %4630 = vmatprep.mubr.bf16.mxu0 0
      %4631 = vmatmul.mubr.bf16.gmra.mxu0 %v4483
      %v4632 = vpop.f32.mrf.mxu0
      %v4633 = vadd.f32 0.0, %v4632
      %v4634 = vpop.f32.mrf.mxu0
      %v4635 = vpop.f32.mrf.mxu0
      %v4636 = vadd.f32 0.0, %v4635
      %v4637 = vpop.f32.mrf.mxu0
      %4638 = vmatprep.mubr.bf16.mxu0 0
      %4639 = vmatmul.mubr.bf16.gmra.mxu0 %v4486
      %v4640 = vpop.f32.mrf.mxu0
      %v4641 = vadd.f32 0.0, %v4640
      %v4642 = vpop.f32.mrf.mxu0
      %v4643 = vpop.f32.mrf.mxu0
      %v4644 = vadd.f32 0.0, %v4643
      %v4645 = vpop.f32.mrf.mxu0
      %4646 = vmatprep.mubr.bf16.mxu0 0
      %4647 = vmatmul.mubr.bf16.gmra.mxu0 %v4489
      %v4648 = vpop.f32.mrf.mxu0
      %v4649 = vadd.f32 0.0, %v4648
      %v4650 = vpop.f32.mrf.mxu0
      %v4651 = vpop.f32.mrf.mxu0
      %v4652 = vadd.f32 0.0, %v4651
      %v4653 = vpop.f32.mrf.mxu0
      %4654 = vdwg.mxu0
      %v4655 = vadd.f32 %v4329, %v4529
      %v4656 = vadd.f32 %v4330, %v4532
      %v4657 = vadd.f32 %v4331, %v4537
      %v4658 = vadd.f32 %v4332, %v4540
      %v4659 = vadd.f32 %v4333, %v4545
      %v4660 = vadd.f32 %v4334, %v4548
      %v4661 = vadd.f32 %v4335, %v4553
      %v4662 = vadd.f32 %v4336, %v4556
      %v4663 = vadd.f32 %v4337, %v4561
      %v4664 = vadd.f32 %v4338, %v4564
      %v4665 = vadd.f32 %v4339, %v4569
      %v4666 = vadd.f32 %v4340, %v4572
      %v4667 = vadd.f32 %v4341, %v4577
      %v4668 = vadd.f32 %v4342, %v4580
      %v4669 = vadd.f32 %v4343, %v4585
      %v4670 = vadd.f32 %v4344, %v4588
      %v4671 = vadd.f32 %v4345, %v4593
      %v4672 = vadd.f32 %v4346, %v4596
      %v4673 = vadd.f32 %v4347, %v4601
      %v4674 = vadd.f32 %v4348, %v4604
      %v4675 = vadd.f32 %v4349, %v4609
      %v4676 = vadd.f32 %v4350, %v4612
      %v4677 = vadd.f32 %v4351, %v4617
      %v4678 = vadd.f32 %v4352, %v4620
      %v4679 = vadd.f32 %v4353, %v4625
      %v4680 = vadd.f32 %v4354, %v4628
      %v4681 = vadd.f32 %v4355, %v4633
      %v4682 = vadd.f32 %v4356, %v4636
      %v4683 = vadd.f32 %v4357, %v4641
      %v4684 = vadd.f32 %v4358, %v4644
      %v4685 = vadd.f32 %v4359, %v4649
      %v4686 = vadd.f32 %v4360, %v4652
      %4687 = vst.msk [vmem:[#allocation3] sm:$0xff] %vm701, %v4655
      %4688 = vst.msk [vmem:[#allocation3 + $0x8] sm:$0xff] %vm701, %v4656
      %4689 = vst.msk [vmem:[#allocation3 + $0x10] sm:$0xff] %vm701, %v4657
      %4690 = vst.msk [vmem:[#allocation3 + $0x18] sm:$0xff] %vm701, %v4658
      %4691 = vst.msk [vmem:[#allocation3 + $0x20] sm:$0xff] %vm701, %v4659
      %4692 = vst.msk [vmem:[#allocation3 + $0x28] sm:$0xff] %vm701, %v4660
      %4693 = vst.msk [vmem:[#allocation3 + $0x30] sm:$0xff] %vm701, %v4661
      %4694 = vst.msk [vmem:[#allocation3 + $0x38] sm:$0xff] %vm701, %v4662
      %4695 = vst.msk [vmem:[#allocation3 + $0x40] sm:$0xff] %vm701, %v4663
      %4696 = vst.msk [vmem:[#allocation3 + $0x48] sm:$0xff] %vm701, %v4664
      %4697 = vst.msk [vmem:[#allocation3 + $0x50] sm:$0xff] %vm701, %v4665
      %4698 = vst.msk [vmem:[#allocation3 + $0x58] sm:$0xff] %vm701, %v4666
      %4699 = vst.msk [vmem:[#allocation3 + $0x60] sm:$0xff] %vm701, %v4667
      %4700 = vst.msk [vmem:[#allocation3 + $0x68] sm:$0xff] %vm701, %v4668
      %4701 = vst.msk [vmem:[#allocation3 + $0x70] sm:$0xff] %vm701, %v4669
      %4702 = vst.msk [vmem:[#allocation3 + $0x78] sm:$0xff] %vm701, %v4670
      %4703 = vst.msk [vmem:[#allocation3 + $0x80] sm:$0xff] %vm701, %v4671
      %4704 = vst.msk [vmem:[#allocation3 + $0x88] sm:$0xff] %vm701, %v4672
      %4705 = vst.msk [vmem:[#allocation3 + $0x90] sm:$0xff] %vm701, %v4673
      %4706 = vst.msk [vmem:[#allocation3 + $0x98] sm:$0xff] %vm701, %v4674
      %4707 = vst.msk [vmem:[#allocation3 + $0xa0] sm:$0xff] %vm701, %v4675
      %4708 = vst.msk [vmem:[#allocation3 + $0xa8] sm:$0xff] %vm701, %v4676
      %4709 = vst.msk [vmem:[#allocation3 + $0xb0] sm:$0xff] %vm701, %v4677
      %4710 = vst.msk [vmem:[#allocation3 + $0xb8] sm:$0xff] %vm701, %v4678
      %4711 = vst.msk [vmem:[#allocation3 + $0xc0] sm:$0xff] %vm701, %v4679
      %4712 = vst.msk [vmem:[#allocation3 + $0xc8] sm:$0xff] %vm701, %v4680
      %4713 = vst.msk [vmem:[#allocation3 + $0xd0] sm:$0xff] %vm701, %v4681
      %4714 = vst.msk [vmem:[#allocation3 + $0xd8] sm:$0xff] %vm701, %v4682
      %4715 = vst.msk [vmem:[#allocation3 + $0xe0] sm:$0xff] %vm701, %v4683
      %4716 = vst.msk [vmem:[#allocation3 + $0xe8] sm:$0xff] %vm701, %v4684
      %4717 = vst.msk [vmem:[#allocation3 + $0xf0] sm:$0xff] %vm701, %v4685
      %4718 = vst.msk [vmem:[#allocation3 + $0xf8] sm:$0xff] %vm701, %v4686
      %v4719 = vld [vmem:[%s4296] sm:$0xf]
      %v4720 = vld [vmem:[%s4296 + $0x4] sm:$0xf]
      %v4721 = vld [vmem:[%s4296 + $0x8] sm:$0x1]
      %v4722 = vld [vmem:[%s4296 + $0xc] sm:$0xf]
      %v4723 = vld [vmem:[%s4296 + $0x10] sm:$0xf]
      %v4724 = vld [vmem:[%s4296 + $0x14] sm:$0x1]
      %v4725 = vld [vmem:[%s4296 + $0x18] sm:$0xf]
      %v4726 = vld [vmem:[%s4296 + $0x1c] sm:$0xf]
      %v4727 = vld [vmem:[%s4296 + $0x20] sm:$0x1]
      %v4728 = vld [vmem:[%s4296 + $0x24] sm:$0xf]
      %v4729 = vld [vmem:[%s4296 + $0x28] sm:$0xf]
      %v4730 = vld [vmem:[%s4296 + $0x2c] sm:$0x1]
      %v4731 = vld [vmem:[%s4296 + $0x30] sm:$0xf]
      %v4732 = vld [vmem:[%s4296 + $0x34] sm:$0xf]
      %v4733 = vld [vmem:[%s4296 + $0x38] sm:$0x1]
      %v4734 = vld [vmem:[%s4296 + $0x3c] sm:$0xf]
      %v4735 = vld [vmem:[%s4296 + $0x40] sm:$0xf]
      %v4736 = vld [vmem:[%s4296 + $0x44] sm:$0x1]
      %v4737 = vld [vmem:[%s4296 + $0x48] sm:$0xf]
      %v4738 = vld [vmem:[%s4296 + $0x4c] sm:$0xf]
      %v4739 = vld [vmem:[%s4296 + $0x50] sm:$0x1]
      %v4740 = vld [vmem:[%s4296 + $0x54] sm:$0xf]
      %v4741 = vld [vmem:[%s4296 + $0x58] sm:$0xf]
      %v4742 = vld [vmem:[%s4296 + $0x5c] sm:$0x1]
      %v4743 = vld [vmem:[%s4296 + $0x60] sm:$0xf]
      %v4744 = vld [vmem:[%s4296 + $0x64] sm:$0xf]
      %v4745 = vld [vmem:[%s4296 + $0x68] sm:$0x1]
      %v4746 = vld [vmem:[%s4296 + $0x6c] sm:$0xf]
      %v4747 = vld [vmem:[%s4296 + $0x70] sm:$0xf]
      %v4748 = vld [vmem:[%s4296 + $0x74] sm:$0x1]
      %v4749 = vld [vmem:[%s4296 + $0x78] sm:$0xf]
      %v4750 = vld [vmem:[%s4296 + $0x7c] sm:$0xf]
      %v4751 = vld [vmem:[%s4296 + $0x80] sm:$0x1]
      %v4752 = vld [vmem:[%s4296 + $0x84] sm:$0xf]
      %v4753 = vld [vmem:[%s4296 + $0x88] sm:$0xf]
      %v4754 = vld [vmem:[%s4296 + $0x8c] sm:$0x1]
      %v4755 = vld [vmem:[%s4296 + $0x90] sm:$0xf]
      %v4756 = vld [vmem:[%s4296 + $0x94] sm:$0xf]
      %v4757 = vld [vmem:[%s4296 + $0x98] sm:$0x1]
      %v4758 = vld [vmem:[%s4296 + $0x9c] sm:$0xf]
      %v4759 = vld [vmem:[%s4296 + $0xa0] sm:$0xf]
      %v4760 = vld [vmem:[%s4296 + $0xa4] sm:$0x1]
      %v4761 = vld [vmem:[%s4296 + $0xa8] sm:$0xf]
      %v4762 = vld [vmem:[%s4296 + $0xac] sm:$0xf]
      %v4763 = vld [vmem:[%s4296 + $0xb0] sm:$0x1]
      %v4764 = vld [vmem:[%s4296 + $0xb4] sm:$0xf]
      %v4765 = vld [vmem:[%s4296 + $0xb8] sm:$0xf]
      %v4766 = vld [vmem:[%s4296 + $0xbc] sm:$0x1]
      %v4768 = vshrl.u32 %v4719, 16
      %v4770 = vrot.slane %v4768, 4
      %v4771 = vshll.u32 %v4719, 16
      %v4773 = vrot.slane %v4771, 5
      %v4774 = vor.u32 %v4770, %v4773
      %v4775 = vrot.slane %v4774, 4
      %v4777 = vshll.u32 %v4720, 16
      %v4779 = vrot.slane %v4777, 5
      %v4780 = vsel %vm1206, %v4775, %v4779
      %v4781 = vshrl.u32 %v4720, 16
      %v4783 = vrot.slane %v4781, 4
      %v4784 = vor.u32 %v4783, %v4779
      %v4785 = vrot.slane %v4784, 4
      %v4787 = vshll.u32 %v4721, 16
      %v4789 = vrot.slane %v4787, 5
      %v4790 = vsel %vm1206, %v4785, %v4789
      %v4792 = vshrl.u32 %v4722, 16
      %v4794 = vrot.slane %v4792, 4
      %v4795 = vshll.u32 %v4722, 16
      %v4797 = vrot.slane %v4795, 5
      %v4798 = vor.u32 %v4794, %v4797
      %v4799 = vrot.slane %v4798, 4
      %v4801 = vshll.u32 %v4723, 16
      %v4803 = vrot.slane %v4801, 5
      %v4804 = vsel %vm1206, %v4799, %v4803
      %v4805 = vshrl.u32 %v4723, 16
      %v4807 = vrot.slane %v4805, 4
      %v4808 = vor.u32 %v4807, %v4803
      %v4809 = vrot.slane %v4808, 4
      %v4811 = vshll.u32 %v4724, 16
      %v4813 = vrot.slane %v4811, 5
      %v4814 = vsel %vm1206, %v4809, %v4813
      %v4816 = vshrl.u32 %v4725, 16
      %v4818 = vrot.slane %v4816, 4
      %v4819 = vshll.u32 %v4725, 16
      %v4821 = vrot.slane %v4819, 5
      %v4822 = vor.u32 %v4818, %v4821
      %v4823 = vrot.slane %v4822, 4
      %v4825 = vshll.u32 %v4726, 16
      %v4827 = vrot.slane %v4825, 5
      %v4828 = vsel %vm1206, %v4823, %v4827
      %v4829 = vshrl.u32 %v4726, 16
      %v4831 = vrot.slane %v4829, 4
      %v4832 = vor.u32 %v4831, %v4827
      %v4833 = vrot.slane %v4832, 4
      %v4835 = vshll.u32 %v4727, 16
      %v4837 = vrot.slane %v4835, 5
      %v4838 = vsel %vm1206, %v4833, %v4837
      %v4840 = vshrl.u32 %v4728, 16
      %v4842 = vrot.slane %v4840, 4
      %v4843 = vshll.u32 %v4728, 16
      %v4845 = vrot.slane %v4843, 5
      %v4846 = vor.u32 %v4842, %v4845
      %v4847 = vrot.slane %v4846, 4
      %v4849 = vshll.u32 %v4729, 16
      %v4851 = vrot.slane %v4849, 5
      %v4852 = vsel %vm1206, %v4847, %v4851
      %v4853 = vshrl.u32 %v4729, 16
      %v4855 = vrot.slane %v4853, 4
      %v4856 = vor.u32 %v4855, %v4851
      %v4857 = vrot.slane %v4856, 4
      %v4859 = vshll.u32 %v4730, 16
      %v4861 = vrot.slane %v4859, 5
      %v4862 = vsel %vm1206, %v4857, %v4861
      %v4864 = vshrl.u32 %v4731, 16
      %v4866 = vrot.slane %v4864, 4
      %v4867 = vshll.u32 %v4731, 16
      %v4869 = vrot.slane %v4867, 5
      %v4870 = vor.u32 %v4866, %v4869
      %v4871 = vrot.slane %v4870, 4
      %v4873 = vshll.u32 %v4732, 16
      %v4875 = vrot.slane %v4873, 5
      %v4876 = vsel %vm1206, %v4871, %v4875
      %v4877 = vshrl.u32 %v4732, 16
      %v4879 = vrot.slane %v4877, 4
      %v4880 = vor.u32 %v4879, %v4875
      %v4881 = vrot.slane %v4880, 4
      %v4883 = vshll.u32 %v4733, 16
      %v4885 = vrot.slane %v4883, 5
      %v4886 = vsel %vm1206, %v4881, %v4885
      %v4888 = vshrl.u32 %v4734, 16
      %v4890 = vrot.slane %v4888, 4
      %v4891 = vshll.u32 %v4734, 16
      %v4893 = vrot.slane %v4891, 5
      %v4894 = vor.u32 %v4890, %v4893
      %v4895 = vrot.slane %v4894, 4
      %v4897 = vshll.u32 %v4735, 16
      %v4899 = vrot.slane %v4897, 5
      %v4900 = vsel %vm1206, %v4895, %v4899
      %v4901 = vshrl.u32 %v4735, 16
      %v4903 = vrot.slane %v4901, 4
      %v4904 = vor.u32 %v4903, %v4899
      %v4905 = vrot.slane %v4904, 4
      %v4907 = vshll.u32 %v4736, 16
      %v4909 = vrot.slane %v4907, 5
      %v4910 = vsel %vm1206, %v4905, %v4909
      %v4912 = vshrl.u32 %v4737, 16
      %v4914 = vrot.slane %v4912, 4
      %v4915 = vshll.u32 %v4737, 16
      %v4917 = vrot.slane %v4915, 5
      %v4918 = vor.u32 %v4914, %v4917
      %v4919 = vrot.slane %v4918, 4
      %v4921 = vshll.u32 %v4738, 16
      %v4923 = vrot.slane %v4921, 5
      %v4924 = vsel %vm1206, %v4919, %v4923
      %v4925 = vshrl.u32 %v4738, 16
      %v4927 = vrot.slane %v4925, 4
      %v4928 = vor.u32 %v4927, %v4923
      %v4929 = vrot.slane %v4928, 4
      %v4931 = vshll.u32 %v4739, 16
      %v4933 = vrot.slane %v4931, 5
      %v4934 = vsel %vm1206, %v4929, %v4933
      %v4936 = vshrl.u32 %v4740, 16
      %v4938 = vrot.slane %v4936, 4
      %v4939 = vshll.u32 %v4740, 16
      %v4941 = vrot.slane %v4939, 5
      %v4942 = vor.u32 %v4938, %v4941
      %v4943 = vrot.slane %v4942, 4
      %v4945 = vshll.u32 %v4741, 16
      %v4947 = vrot.slane %v4945, 5
      %v4948 = vsel %vm1206, %v4943, %v4947
      %v4949 = vshrl.u32 %v4741, 16
      %v4951 = vrot.slane %v4949, 4
      %v4952 = vor.u32 %v4951, %v4947
      %v4953 = vrot.slane %v4952, 4
      %v4955 = vshll.u32 %v4742, 16
      %v4957 = vrot.slane %v4955, 5
      %v4958 = vsel %vm1206, %v4953, %v4957
      %v4960 = vshrl.u32 %v4743, 16
      %v4962 = vrot.slane %v4960, 4
      %v4963 = vshll.u32 %v4743, 16
      %v4965 = vrot.slane %v4963, 5
      %v4966 = vor.u32 %v4962, %v4965
      %v4967 = vrot.slane %v4966, 4
      %v4969 = vshll.u32 %v4744, 16
      %v4971 = vrot.slane %v4969, 5
      %v4972 = vsel %vm1206, %v4967, %v4971
      %v4973 = vshrl.u32 %v4744, 16
      %v4975 = vrot.slane %v4973, 4
      %v4976 = vor.u32 %v4975, %v4971
      %v4977 = vrot.slane %v4976, 4
      %v4979 = vshll.u32 %v4745, 16
      %v4981 = vrot.slane %v4979, 5
      %v4982 = vsel %vm1206, %v4977, %v4981
      %v4984 = vshrl.u32 %v4746, 16
      %v4986 = vrot.slane %v4984, 4
      %v4987 = vshll.u32 %v4746, 16
      %v4989 = vrot.slane %v4987, 5
      %v4990 = vor.u32 %v4986, %v4989
      %v4991 = vrot.slane %v4990, 4
      %v4993 = vshll.u32 %v4747, 16
      %v4995 = vrot.slane %v4993, 5
      %v4996 = vsel %vm1206, %v4991, %v4995
      %v4997 = vshrl.u32 %v4747, 16
      %v4999 = vrot.slane %v4997, 4
      %v5000 = vor.u32 %v4999, %v4995
      %v5001 = vrot.slane %v5000, 4
      %v5003 = vshll.u32 %v4748, 16
      %v5005 = vrot.slane %v5003, 5
      %v5006 = vsel %vm1206, %v5001, %v5005
      %v5008 = vshrl.u32 %v4749, 16
      %v5010 = vrot.slane %v5008, 4
      %v5011 = vshll.u32 %v4749, 16
      %v5013 = vrot.slane %v5011, 5
      %v5014 = vor.u32 %v5010, %v5013
      %v5015 = vrot.slane %v5014, 4
      %v5017 = vshll.u32 %v4750, 16
      %v5019 = vrot.slane %v5017, 5
      %v5020 = vsel %vm1206, %v5015, %v5019
      %v5021 = vshrl.u32 %v4750, 16
      %v5023 = vrot.slane %v5021, 4
      %v5024 = vor.u32 %v5023, %v5019
      %v5025 = vrot.slane %v5024, 4
      %v5027 = vshll.u32 %v4751, 16
      %v5029 = vrot.slane %v5027, 5
      %v5030 = vsel %vm1206, %v5025, %v5029
      %v5032 = vshrl.u32 %v4752, 16
      %v5034 = vrot.slane %v5032, 4
      %v5035 = vshll.u32 %v4752, 16
      %v5037 = vrot.slane %v5035, 5
      %v5038 = vor.u32 %v5034, %v5037
      %v5039 = vrot.slane %v5038, 4
      %v5041 = vshll.u32 %v4753, 16
      %v5043 = vrot.slane %v5041, 5
      %v5044 = vsel %vm1206, %v5039, %v5043
      %v5045 = vshrl.u32 %v4753, 16
      %v5047 = vrot.slane %v5045, 4
      %v5048 = vor.u32 %v5047, %v5043
      %v5049 = vrot.slane %v5048, 4
      %v5051 = vshll.u32 %v4754, 16
      %v5053 = vrot.slane %v5051, 5
      %v5054 = vsel %vm1206, %v5049, %v5053
      %v5056 = vshrl.u32 %v4755, 16
      %v5058 = vrot.slane %v5056, 4
      %v5059 = vshll.u32 %v4755, 16
      %v5061 = vrot.slane %v5059, 5
      %v5062 = vor.u32 %v5058, %v5061
      %v5063 = vrot.slane %v5062, 4
      %v5065 = vshll.u32 %v4756, 16
      %v5067 = vrot.slane %v5065, 5
      %v5068 = vsel %vm1206, %v5063, %v5067
      %v5069 = vshrl.u32 %v4756, 16
      %v5071 = vrot.slane %v5069, 4
      %v5072 = vor.u32 %v5071, %v5067
      %v5073 = vrot.slane %v5072, 4
      %v5075 = vshll.u32 %v4757, 16
      %v5077 = vrot.slane %v5075, 5
      %v5078 = vsel %vm1206, %v5073, %v5077
      %v5080 = vshrl.u32 %v4758, 16
      %v5082 = vrot.slane %v5080, 4
      %v5083 = vshll.u32 %v4758, 16
      %v5085 = vrot.slane %v5083, 5
      %v5086 = vor.u32 %v5082, %v5085
      %v5087 = vrot.slane %v5086, 4
      %v5089 = vshll.u32 %v4759, 16
      %v5091 = vrot.slane %v5089, 5
      %v5092 = vsel %vm1206, %v5087, %v5091
      %v5093 = vshrl.u32 %v4759, 16
      %v5095 = vrot.slane %v5093, 4
      %v5096 = vor.u32 %v5095, %v5091
      %v5097 = vrot.slane %v5096, 4
      %v5099 = vshll.u32 %v4760, 16
      %v5101 = vrot.slane %v5099, 5
      %v5102 = vsel %vm1206, %v5097, %v5101
      %v5104 = vshrl.u32 %v4761, 16
      %v5106 = vrot.slane %v5104, 4
      %v5107 = vshll.u32 %v4761, 16
      %v5109 = vrot.slane %v5107, 5
      %v5110 = vor.u32 %v5106, %v5109
      %v5111 = vrot.slane %v5110, 4
      %v5113 = vshll.u32 %v4762, 16
      %v5115 = vrot.slane %v5113, 5
      %v5116 = vsel %vm1206, %v5111, %v5115
      %v5117 = vshrl.u32 %v4762, 16
      %v5119 = vrot.slane %v5117, 4
      %v5120 = vor.u32 %v5119, %v5115
      %v5121 = vrot.slane %v5120, 4
      %v5123 = vshll.u32 %v4763, 16
      %v5125 = vrot.slane %v5123, 5
      %v5126 = vsel %vm1206, %v5121, %v5125
      %v5128 = vshrl.u32 %v4764, 16
      %v5130 = vrot.slane %v5128, 4
      %v5131 = vshll.u32 %v4764, 16
      %v5133 = vrot.slane %v5131, 5
      %v5134 = vor.u32 %v5130, %v5133
      %v5135 = vrot.slane %v5134, 4
      %v5137 = vshll.u32 %v4765, 16
      %v5139 = vrot.slane %v5137, 5
      %v5140 = vsel %vm1206, %v5135, %v5139
      %v5141 = vshrl.u32 %v4765, 16
      %v5143 = vrot.slane %v5141, 4
      %v5144 = vor.u32 %v5143, %v5139
      %v5145 = vrot.slane %v5144, 4
      %v5147 = vshll.u32 %v4766, 16
      %v5149 = vrot.slane %v5147, 5
      %v5150 = vsel %vm1206, %v5145, %v5149
      %v5151 = vld [vmem:[#allocation3] sm:$0xff]
      %v5152 = vld [vmem:[#allocation3 + $0x8] sm:$0xff]
      %v5153 = vld [vmem:[#allocation3 + $0x10] sm:$0xff]
      %v5154 = vld [vmem:[#allocation3 + $0x18] sm:$0xff]
      %v5155 = vld [vmem:[#allocation3 + $0x20] sm:$0xff]
      %v5156 = vld [vmem:[#allocation3 + $0x28] sm:$0xff]
      %v5157 = vld [vmem:[#allocation3 + $0x30] sm:$0xff]
      %v5158 = vld [vmem:[#allocation3 + $0x38] sm:$0xff]
      %v5159 = vld [vmem:[#allocation3 + $0x40] sm:$0xff]
      %v5160 = vld [vmem:[#allocation3 + $0x48] sm:$0xff]
      %v5161 = vld [vmem:[#allocation3 + $0x50] sm:$0xff]
      %v5162 = vld [vmem:[#allocation3 + $0x58] sm:$0xff]
      %v5163 = vld [vmem:[#allocation3 + $0x60] sm:$0xff]
      %v5164 = vld [vmem:[#allocation3 + $0x68] sm:$0xff]
      %v5165 = vld [vmem:[#allocation3 + $0x70] sm:$0xff]
      %v5166 = vld [vmem:[#allocation3 + $0x78] sm:$0xff]
      %v5167 = vld [vmem:[#allocation3 + $0x80] sm:$0xff]
      %v5168 = vld [vmem:[#allocation3 + $0x88] sm:$0xff]
      %v5169 = vld [vmem:[#allocation3 + $0x90] sm:$0xff]
      %v5170 = vld [vmem:[#allocation3 + $0x98] sm:$0xff]
      %v5171 = vld [vmem:[#allocation3 + $0xa0] sm:$0xff]
      %v5172 = vld [vmem:[#allocation3 + $0xa8] sm:$0xff]
      %v5173 = vld [vmem:[#allocation3 + $0xb0] sm:$0xff]
      %v5174 = vld [vmem:[#allocation3 + $0xb8] sm:$0xff]
      %v5175 = vld [vmem:[#allocation3 + $0xc0] sm:$0xff]
      %v5176 = vld [vmem:[#allocation3 + $0xc8] sm:$0xff]
      %v5177 = vld [vmem:[#allocation3 + $0xd0] sm:$0xff]
      %v5178 = vld [vmem:[#allocation3 + $0xd8] sm:$0xff]
      %v5179 = vld [vmem:[#allocation3 + $0xe0] sm:$0xff]
      %v5180 = vld [vmem:[#allocation3 + $0xe8] sm:$0xff]
      %v5181 = vld [vmem:[#allocation3 + $0xf0] sm:$0xff]
      %v5182 = vld [vmem:[#allocation3 + $0xf8] sm:$0xff]
      %s5183 = scalar_lea.vmem %s1, 28
      %v5184 = vld [vmem:[%s5183] sm:$0xf]
      %v5185 = vunpack.c.l.b16 %v4780
      %v5186 = vunpack.c.l.b16 %v4790
      %v5187 = vunpack.c.l.b16 %v4804
      %v5188 = vunpack.c.l.b16 %v4814
      %v5189 = vunpack.c.l.b16 %v4828
      %v5190 = vunpack.c.l.b16 %v4838
      %v5191 = vunpack.c.l.b16 %v4852
      %v5192 = vunpack.c.l.b16 %v4862
      %v5193 = vunpack.c.l.b16 %v4876
      %v5194 = vunpack.c.l.b16 %v4886
      %v5195 = vunpack.c.l.b16 %v4900
      %v5196 = vunpack.c.l.b16 %v4910
      %v5197 = vunpack.c.l.b16 %v4924
      %v5198 = vunpack.c.l.b16 %v4934
      %v5199 = vunpack.c.l.b16 %v4948
      %v5200 = vunpack.c.l.b16 %v4958
      %v5201 = vunpack.c.l.b16 %v4972
      %v5202 = vunpack.c.l.b16 %v4982
      %v5203 = vunpack.c.l.b16 %v4996
      %v5204 = vunpack.c.l.b16 %v5006
      %v5205 = vunpack.c.l.b16 %v5020
      %v5206 = vunpack.c.l.b16 %v5030
      %v5207 = vunpack.c.l.b16 %v5044
      %v5208 = vunpack.c.l.b16 %v5054
      %v5209 = vunpack.c.l.b16 %v5068
      %v5210 = vunpack.c.l.b16 %v5078
      %v5211 = vunpack.c.l.b16 %v5092
      %v5212 = vunpack.c.l.b16 %v5102
      %v5213 = vunpack.c.l.b16 %v5116
      %v5214 = vunpack.c.l.b16 %v5126
      %v5215 = vunpack.c.l.b16 %v5140
      %v5216 = vunpack.c.l.b16 %v5150
      %v5217 = vpack.c.b16 %v5186, %v5185
      %v5218 = vpack.c.b16 %v5188, %v5187
      %v5219 = vpack.c.b16 %v5190, %v5189
      %v5220 = vpack.c.b16 %v5192, %v5191
      %v5221 = vpack.c.b16 %v5194, %v5193
      %v5222 = vpack.c.b16 %v5196, %v5195
      %v5223 = vpack.c.b16 %v5198, %v5197
      %v5224 = vpack.c.b16 %v5200, %v5199
      %v5225 = vpack.c.b16 %v5202, %v5201
      %v5226 = vpack.c.b16 %v5204, %v5203
      %v5227 = vpack.c.b16 %v5206, %v5205
      %v5228 = vpack.c.b16 %v5208, %v5207
      %v5229 = vpack.c.b16 %v5210, %v5209
      %v5230 = vpack.c.b16 %v5212, %v5211
      %v5231 = vpack.c.b16 %v5214, %v5213
      %v5232 = vpack.c.b16 %v5216, %v5215
      %v5234 = vsel %vm701, %v5217, 0
      %v5237 = vsel %vm701, %v5218, 0
      %v5240 = vsel %vm701, %v5219, 0
      %v5243 = vsel %vm701, %v5220, 0
      %v5246 = vsel %vm701, %v5221, 0
      %v5249 = vsel %vm701, %v5222, 0
      %v5252 = vsel %vm701, %v5223, 0
      %v5255 = vsel %vm701, %v5224, 0
      %v5258 = vsel %vm701, %v5225, 0
      %v5261 = vsel %vm701, %v5226, 0
      %v5264 = vsel %vm701, %v5227, 0
      %v5267 = vsel %vm701, %v5228, 0
      %v5270 = vsel %vm701, %v5229, 0
      %v5273 = vsel %vm701, %v5230, 0
      %v5276 = vsel %vm701, %v5231, 0
      %v5279 = vsel %vm701, %v5232, 0
      %v5282 = vsel %vm927, %v5184, 0
      %5284 = vmatprep.subr.bf16.mxu0 0
      %5285 = vmatpush1.bf16.msra.mxu0 0
      %5286 = vmatprep.subr.bf16.mxu0 0
      %5287 = vmatpush1.bf16.msra.mxu0 0
      %5288 = vmatprep.subr.bf16.mxu0 0
      %5289 = vmatpush1.bf16.msra.mxu0 0
      %5290 = vmatprep.subr.bf16.mxu0 0
      %5291 = vmatpush1.bf16.msra.mxu0 0
      %5292 = vmatprep.subr.bf16.mxu0 0
      %5293 = vmatpush1.bf16.msra.mxu0 0
      %5294 = vmatprep.subr.bf16.mxu0 0
      %5295 = vmatpush1.bf16.msra.mxu0 0
      %5296 = vmatprep.subr.bf16.mxu0 0
      %5297 = vmatpush1.bf16.msra.mxu0 0
      %5298 = vmatprep.subr.bf16.mxu0 0
      %5299 = vmatpush1.bf16.msra.mxu0 %v5282
      %5300 = vmatprep.subr.bf16.mxu0 0
      %5301 = vmatpush2.bf16.msra.mxu0 0
      %5302 = vmatprep.subr.bf16.mxu0 0
      %5303 = vmatpush2.bf16.msra.mxu0 0
      %5304 = vmatprep.subr.bf16.mxu0 0
      %5305 = vmatpush2.bf16.msra.mxu0 0
      %5306 = vmatprep.subr.bf16.mxu0 0
      %5307 = vmatpush2.bf16.msra.mxu0 0
      %5308 = vmatprep.subr.bf16.mxu0 0
      %5309 = vmatpush2.bf16.msra.mxu0 0
      %5310 = vmatprep.subr.bf16.mxu0 0
      %5311 = vmatpush2.bf16.msra.mxu0 0
      %5312 = vmatprep.subr.bf16.mxu0 0
      %5313 = vmatpush2.bf16.msra.mxu0 0
      %5314 = vmatprep.subr.bf16.mxu0 0
      %5315 = vmatpush2.bf16.msra.mxu0 0
      %5316 = vmatprep.mubr.bf16.mxu0 0
      %5317 = vmatmul.mubr.bf16.gmra.mxu0 %v5234
      %v5318 = vpop.f32.mrf.mxu0
      %v5319 = vadd.f32 0.0, %v5318
      %v5320 = vpop.f32.mrf.mxu0
      %v5321 = vpop.f32.mrf.mxu0
      %v5322 = vadd.f32 0.0, %v5321
      %v5323 = vpop.f32.mrf.mxu0
      %5324 = vmatprep.mubr.bf16.mxu0 0
      %5325 = vmatmul.mubr.bf16.gmra.mxu0 %v5237
      %v5326 = vpop.f32.mrf.mxu0
      %v5327 = vadd.f32 0.0, %v5326
      %v5328 = vpop.f32.mrf.mxu0
      %v5329 = vpop.f32.mrf.mxu0
      %v5330 = vadd.f32 0.0, %v5329
      %v5331 = vpop.f32.mrf.mxu0
      %5332 = vmatprep.mubr.bf16.mxu0 0
      %5333 = vmatmul.mubr.bf16.gmra.mxu0 %v5240
      %v5334 = vpop.f32.mrf.mxu0
      %v5335 = vadd.f32 0.0, %v5334
      %v5336 = vpop.f32.mrf.mxu0
      %v5337 = vpop.f32.mrf.mxu0
      %v5338 = vadd.f32 0.0, %v5337
      %v5339 = vpop.f32.mrf.mxu0
      %5340 = vmatprep.mubr.bf16.mxu0 0
      %5341 = vmatmul.mubr.bf16.gmra.mxu0 %v5243
      %v5342 = vpop.f32.mrf.mxu0
      %v5343 = vadd.f32 0.0, %v5342
      %v5344 = vpop.f32.mrf.mxu0
      %v5345 = vpop.f32.mrf.mxu0
      %v5346 = vadd.f32 0.0, %v5345
      %v5347 = vpop.f32.mrf.mxu0
      %5348 = vmatprep.mubr.bf16.mxu0 0
      %5349 = vmatmul.mubr.bf16.gmra.mxu0 %v5246
      %v5350 = vpop.f32.mrf.mxu0
      %v5351 = vadd.f32 0.0, %v5350
      %v5352 = vpop.f32.mrf.mxu0
      %v5353 = vpop.f32.mrf.mxu0
      %v5354 = vadd.f32 0.0, %v5353
      %v5355 = vpop.f32.mrf.mxu0
      %5356 = vmatprep.mubr.bf16.mxu0 0
      %5357 = vmatmul.mubr.bf16.gmra.mxu0 %v5249
      %v5358 = vpop.f32.mrf.mxu0
      %v5359 = vadd.f32 0.0, %v5358
      %v5360 = vpop.f32.mrf.mxu0
      %v5361 = vpop.f32.mrf.mxu0
      %v5362 = vadd.f32 0.0, %v5361
      %v5363 = vpop.f32.mrf.mxu0
      %5364 = vmatprep.mubr.bf16.mxu0 0
      %5365 = vmatmul.mubr.bf16.gmra.mxu0 %v5252
      %v5366 = vpop.f32.mrf.mxu0
      %v5367 = vadd.f32 0.0, %v5366
      %v5368 = vpop.f32.mrf.mxu0
      %v5369 = vpop.f32.mrf.mxu0
      %v5370 = vadd.f32 0.0, %v5369
      %v5371 = vpop.f32.mrf.mxu0
      %5372 = vmatprep.mubr.bf16.mxu0 0
      %5373 = vmatmul.mubr.bf16.gmra.mxu0 %v5255
      %v5374 = vpop.f32.mrf.mxu0
      %v5375 = vadd.f32 0.0, %v5374
      %v5376 = vpop.f32.mrf.mxu0
      %v5377 = vpop.f32.mrf.mxu0
      %v5378 = vadd.f32 0.0, %v5377
      %v5379 = vpop.f32.mrf.mxu0
      %5380 = vmatprep.mubr.bf16.mxu0 0
      %5381 = vmatmul.mubr.bf16.gmra.mxu0 %v5258
      %v5382 = vpop.f32.mrf.mxu0
      %v5383 = vadd.f32 0.0, %v5382
      %v5384 = vpop.f32.mrf.mxu0
      %v5385 = vpop.f32.mrf.mxu0
      %v5386 = vadd.f32 0.0, %v5385
      %v5387 = vpop.f32.mrf.mxu0
      %5388 = vmatprep.mubr.bf16.mxu0 0
      %5389 = vmatmul.mubr.bf16.gmra.mxu0 %v5261
      %v5390 = vpop.f32.mrf.mxu0
      %v5391 = vadd.f32 0.0, %v5390
      %v5392 = vpop.f32.mrf.mxu0
      %v5393 = vpop.f32.mrf.mxu0
      %v5394 = vadd.f32 0.0, %v5393
      %v5395 = vpop.f32.mrf.mxu0
      %5396 = vmatprep.mubr.bf16.mxu0 0
      %5397 = vmatmul.mubr.bf16.gmra.mxu0 %v5264
      %v5398 = vpop.f32.mrf.mxu0
      %v5399 = vadd.f32 0.0, %v5398
      %v5400 = vpop.f32.mrf.mxu0
      %v5401 = vpop.f32.mrf.mxu0
      %v5402 = vadd.f32 0.0, %v5401
      %v5403 = vpop.f32.mrf.mxu0
      %5404 = vmatprep.mubr.bf16.mxu0 0
      %5405 = vmatmul.mubr.bf16.gmra.mxu0 %v5267
      %v5406 = vpop.f32.mrf.mxu0
      %v5407 = vadd.f32 0.0, %v5406
      %v5408 = vpop.f32.mrf.mxu0
      %v5409 = vpop.f32.mrf.mxu0
      %v5410 = vadd.f32 0.0, %v5409
      %v5411 = vpop.f32.mrf.mxu0
      %5412 = vmatprep.mubr.bf16.mxu0 0
      %5413 = vmatmul.mubr.bf16.gmra.mxu0 %v5270
      %v5414 = vpop.f32.mrf.mxu0
      %v5415 = vadd.f32 0.0, %v5414
      %v5416 = vpop.f32.mrf.mxu0
      %v5417 = vpop.f32.mrf.mxu0
      %v5418 = vadd.f32 0.0, %v5417
      %v5419 = vpop.f32.mrf.mxu0
      %5420 = vmatprep.mubr.bf16.mxu0 0
      %5421 = vmatmul.mubr.bf16.gmra.mxu0 %v5273
      %v5422 = vpop.f32.mrf.mxu0
      %v5423 = vadd.f32 0.0, %v5422
      %v5424 = vpop.f32.mrf.mxu0
      %v5425 = vpop.f32.mrf.mxu0
      %v5426 = vadd.f32 0.0, %v5425
      %v5427 = vpop.f32.mrf.mxu0
      %5428 = vmatprep.mubr.bf16.mxu0 0
      %5429 = vmatmul.mubr.bf16.gmra.mxu0 %v5276
      %v5430 = vpop.f32.mrf.mxu0
      %v5431 = vadd.f32 0.0, %v5430
      %v5432 = vpop.f32.mrf.mxu0
      %v5433 = vpop.f32.mrf.mxu0
      %v5434 = vadd.f32 0.0, %v5433
      %v5435 = vpop.f32.mrf.mxu0
      %5436 = vmatprep.mubr.bf16.mxu0 0
      %5437 = vmatmul.mubr.bf16.gmra.mxu0 %v5279
      %v5438 = vpop.f32.mrf.mxu0
      %v5439 = vadd.f32 0.0, %v5438
      %v5440 = vpop.f32.mrf.mxu0
      %v5441 = vpop.f32.mrf.mxu0
      %v5442 = vadd.f32 0.0, %v5441
      %v5443 = vpop.f32.mrf.mxu0
      %5444 = vdwg.mxu0
      %v5445 = vadd.f32 %v5151, %v5319
      %v5446 = vadd.f32 %v5152, %v5322
      %v5447 = vadd.f32 %v5153, %v5327
      %v5448 = vadd.f32 %v5154, %v5330
      %v5449 = vadd.f32 %v5155, %v5335
      %v5450 = vadd.f32 %v5156, %v5338
      %v5451 = vadd.f32 %v5157, %v5343
      %v5452 = vadd.f32 %v5158, %v5346
      %v5453 = vadd.f32 %v5159, %v5351
      %v5454 = vadd.f32 %v5160, %v5354
      %v5455 = vadd.f32 %v5161, %v5359
      %v5456 = vadd.f32 %v5162, %v5362
      %v5457 = vadd.f32 %v5163, %v5367
      %v5458 = vadd.f32 %v5164, %v5370
      %v5459 = vadd.f32 %v5165, %v5375
      %v5460 = vadd.f32 %v5166, %v5378
      %v5461 = vadd.f32 %v5167, %v5383
      %v5462 = vadd.f32 %v5168, %v5386
      %v5463 = vadd.f32 %v5169, %v5391
      %v5464 = vadd.f32 %v5170, %v5394
      %v5465 = vadd.f32 %v5171, %v5399
      %v5466 = vadd.f32 %v5172, %v5402
      %v5467 = vadd.f32 %v5173, %v5407
      %v5468 = vadd.f32 %v5174, %v5410
      %v5469 = vadd.f32 %v5175, %v5415
      %v5470 = vadd.f32 %v5176, %v5418
      %v5471 = vadd.f32 %v5177, %v5423
      %v5472 = vadd.f32 %v5178, %v5426
      %v5473 = vadd.f32 %v5179, %v5431
      %v5474 = vadd.f32 %v5180, %v5434
      %v5475 = vadd.f32 %v5181, %v5439
      %v5476 = vadd.f32 %v5182, %v5442
      %5477 = vst.msk [vmem:[#allocation3] sm:$0xff] %vm701, %v5445
      %5478 = vst.msk [vmem:[#allocation3 + $0x8] sm:$0xff] %vm701, %v5446
      %5479 = vst.msk [vmem:[#allocation3 + $0x10] sm:$0xff] %vm701, %v5447
      %5480 = vst.msk [vmem:[#allocation3 + $0x18] sm:$0xff] %vm701, %v5448
      %5481 = vst.msk [vmem:[#allocation3 + $0x20] sm:$0xff] %vm701, %v5449
      %5482 = vst.msk [vmem:[#allocation3 + $0x28] sm:$0xff] %vm701, %v5450
      %5483 = vst.msk [vmem:[#allocation3 + $0x30] sm:$0xff] %vm701, %v5451
      %5484 = vst.msk [vmem:[#allocation3 + $0x38] sm:$0xff] %vm701, %v5452
      %5485 = vst.msk [vmem:[#allocation3 + $0x40] sm:$0xff] %vm701, %v5453
      %5486 = vst.msk [vmem:[#allocation3 + $0x48] sm:$0xff] %vm701, %v5454
      %5487 = vst.msk [vmem:[#allocation3 + $0x50] sm:$0xff] %vm701, %v5455
      %5488 = vst.msk [vmem:[#allocation3 + $0x58] sm:$0xff] %vm701, %v5456
      %5489 = vst.msk [vmem:[#allocation3 + $0x60] sm:$0xff] %vm701, %v5457
      %5490 = vst.msk [vmem:[#allocation3 + $0x68] sm:$0xff] %vm701, %v5458
      %5491 = vst.msk [vmem:[#allocation3 + $0x70] sm:$0xff] %vm701, %v5459
      %5492 = vst.msk [vmem:[#allocation3 + $0x78] sm:$0xff] %vm701, %v5460
      %5493 = vst.msk [vmem:[#allocation3 + $0x80] sm:$0xff] %vm701, %v5461
      %5494 = vst.msk [vmem:[#allocation3 + $0x88] sm:$0xff] %vm701, %v5462
      %5495 = vst.msk [vmem:[#allocation3 + $0x90] sm:$0xff] %vm701, %v5463
      %5496 = vst.msk [vmem:[#allocation3 + $0x98] sm:$0xff] %vm701, %v5464
      %5497 = vst.msk [vmem:[#allocation3 + $0xa0] sm:$0xff] %vm701, %v5465
      %5498 = vst.msk [vmem:[#allocation3 + $0xa8] sm:$0xff] %vm701, %v5466
      %5499 = vst.msk [vmem:[#allocation3 + $0xb0] sm:$0xff] %vm701, %v5467
      %5500 = vst.msk [vmem:[#allocation3 + $0xb8] sm:$0xff] %vm701, %v5468
      %5501 = vst.msk [vmem:[#allocation3 + $0xc0] sm:$0xff] %vm701, %v5469
      %5502 = vst.msk [vmem:[#allocation3 + $0xc8] sm:$0xff] %vm701, %v5470
      %5503 = vst.msk [vmem:[#allocation3 + $0xd0] sm:$0xff] %vm701, %v5471
      %5504 = vst.msk [vmem:[#allocation3 + $0xd8] sm:$0xff] %vm701, %v5472
      %5505 = vst.msk [vmem:[#allocation3 + $0xe0] sm:$0xff] %vm701, %v5473
      %5506 = vst.msk [vmem:[#allocation3 + $0xe8] sm:$0xff] %vm701, %v5474
      %5507 = vst.msk [vmem:[#allocation3 + $0xf0] sm:$0xff] %vm701, %v5475
      %5508 = vst.msk [vmem:[#allocation3 + $0xf8] sm:$0xff] %vm701, %v5476
      %v5509 = vld [vmem:[%s4296] sm:$0xe]
      %v5510 = vld [vmem:[%s4296 + $0x4] sm:$0xf]
      %v5511 = vld [vmem:[%s4296 + $0x8] sm:$0x1]
      %v5512 = vld [vmem:[%s4296 + $0xc] sm:$0xe]
      %v5513 = vld [vmem:[%s4296 + $0x10] sm:$0xf]
      %v5514 = vld [vmem:[%s4296 + $0x14] sm:$0x1]
      %v5515 = vld [vmem:[%s4296 + $0x18] sm:$0xe]
      %v5516 = vld [vmem:[%s4296 + $0x1c] sm:$0xf]
      %v5517 = vld [vmem:[%s4296 + $0x20] sm:$0x1]
      %v5518 = vld [vmem:[%s4296 + $0x24] sm:$0xe]
      %v5519 = vld [vmem:[%s4296 + $0x28] sm:$0xf]
      %v5520 = vld [vmem:[%s4296 + $0x2c] sm:$0x1]
      %v5521 = vld [vmem:[%s4296 + $0x30] sm:$0xe]
      %v5522 = vld [vmem:[%s4296 + $0x34] sm:$0xf]
      %v5523 = vld [vmem:[%s4296 + $0x38] sm:$0x1]
      %v5524 = vld [vmem:[%s4296 + $0x3c] sm:$0xe]
      %v5525 = vld [vmem:[%s4296 + $0x40] sm:$0xf]
      %v5526 = vld [vmem:[%s4296 + $0x44] sm:$0x1]
      %v5527 = vld [vmem:[%s4296 + $0x48] sm:$0xe]
      %v5528 = vld [vmem:[%s4296 + $0x4c] sm:$0xf]
      %v5529 = vld [vmem:[%s4296 + $0x50] sm:$0x1]
      %v5530 = vld [vmem:[%s4296 + $0x54] sm:$0xe]
      %v5531 = vld [vmem:[%s4296 + $0x58] sm:$0xf]
      %v5532 = vld [vmem:[%s4296 + $0x5c] sm:$0x1]
      %v5533 = vld [vmem:[%s4296 + $0x60] sm:$0xe]
      %v5534 = vld [vmem:[%s4296 + $0x64] sm:$0xf]
      %v5535 = vld [vmem:[%s4296 + $0x68] sm:$0x1]
      %v5536 = vld [vmem:[%s4296 + $0x6c] sm:$0xe]
      %v5537 = vld [vmem:[%s4296 + $0x70] sm:$0xf]
      %v5538 = vld [vmem:[%s4296 + $0x74] sm:$0x1]
      %v5539 = vld [vmem:[%s4296 + $0x78] sm:$0xe]
      %v5540 = vld [vmem:[%s4296 + $0x7c] sm:$0xf]
      %v5541 = vld [vmem:[%s4296 + $0x80] sm:$0x1]
      %v5542 = vld [vmem:[%s4296 + $0x84] sm:$0xe]
      %v5543 = vld [vmem:[%s4296 + $0x88] sm:$0xf]
      %v5544 = vld [vmem:[%s4296 + $0x8c] sm:$0x1]
      %v5545 = vld [vmem:[%s4296 + $0x90] sm:$0xe]
      %v5546 = vld [vmem:[%s4296 + $0x94] sm:$0xf]
      %v5547 = vld [vmem:[%s4296 + $0x98] sm:$0x1]
      %v5548 = vld [vmem:[%s4296 + $0x9c] sm:$0xe]
      %v5549 = vld [vmem:[%s4296 + $0xa0] sm:$0xf]
      %v5550 = vld [vmem:[%s4296 + $0xa4] sm:$0x1]
      %v5551 = vld [vmem:[%s4296 + $0xa8] sm:$0xe]
      %v5552 = vld [vmem:[%s4296 + $0xac] sm:$0xf]
      %v5553 = vld [vmem:[%s4296 + $0xb0] sm:$0x1]
      %v5554 = vld [vmem:[%s4296 + $0xb4] sm:$0xe]
      %v5555 = vld [vmem:[%s4296 + $0xb8] sm:$0xf]
      %v5556 = vld [vmem:[%s4296 + $0xbc] sm:$0x1]
      %v5605 = vrot.slane %v5509, 5
      %v5606 = vrot.slane %v5605, 4
      %v5607 = vrot.slane %v5510, 5
      %v5608 = vsel %vm2047, %v5606, %v5607
      %v5609 = vrot.slane %v5607, 4
      %v5610 = vrot.slane %v5511, 5
      %v5611 = vsel %vm2047, %v5609, %v5610
      %v5612 = vrot.slane %v5512, 5
      %v5613 = vrot.slane %v5612, 4
      %v5614 = vrot.slane %v5513, 5
      %v5615 = vsel %vm2047, %v5613, %v5614
      %v5616 = vrot.slane %v5614, 4
      %v5617 = vrot.slane %v5514, 5
      %v5618 = vsel %vm2047, %v5616, %v5617
      %v5619 = vrot.slane %v5515, 5
      %v5620 = vrot.slane %v5619, 4
      %v5621 = vrot.slane %v5516, 5
      %v5622 = vsel %vm2047, %v5620, %v5621
      %v5623 = vrot.slane %v5621, 4
      %v5624 = vrot.slane %v5517, 5
      %v5625 = vsel %vm2047, %v5623, %v5624
      %v5626 = vrot.slane %v5518, 5
      %v5627 = vrot.slane %v5626, 4
      %v5628 = vrot.slane %v5519, 5
      %v5629 = vsel %vm2047, %v5627, %v5628
      %v5630 = vrot.slane %v5628, 4
      %v5631 = vrot.slane %v5520, 5
      %v5632 = vsel %vm2047, %v5630, %v5631
      %v5633 = vrot.slane %v5521, 5
      %v5634 = vrot.slane %v5633, 4
      %v5635 = vrot.slane %v5522, 5
      %v5636 = vsel %vm2047, %v5634, %v5635
      %v5637 = vrot.slane %v5635, 4
      %v5638 = vrot.slane %v5523, 5
      %v5639 = vsel %vm2047, %v5637, %v5638
      %v5640 = vrot.slane %v5524, 5
      %v5641 = vrot.slane %v5640, 4
      %v5642 = vrot.slane %v5525, 5
      %v5643 = vsel %vm2047, %v5641, %v5642
      %v5644 = vrot.slane %v5642, 4
      %v5645 = vrot.slane %v5526, 5
      %v5646 = vsel %vm2047, %v5644, %v5645
      %v5647 = vrot.slane %v5527, 5
      %v5648 = vrot.slane %v5647, 4
      %v5649 = vrot.slane %v5528, 5
      %v5650 = vsel %vm2047, %v5648, %v5649
      %v5651 = vrot.slane %v5649, 4
      %v5652 = vrot.slane %v5529, 5
      %v5653 = vsel %vm2047, %v5651, %v5652
      %v5654 = vrot.slane %v5530, 5
      %v5655 = vrot.slane %v5654, 4
      %v5656 = vrot.slane %v5531, 5
      %v5657 = vsel %vm2047, %v5655, %v5656
      %v5658 = vrot.slane %v5656, 4
      %v5659 = vrot.slane %v5532, 5
      %v5660 = vsel %vm2047, %v5658, %v5659
      %v5661 = vrot.slane %v5533, 5
      %v5662 = vrot.slane %v5661, 4
      %v5663 = vrot.slane %v5534, 5
      %v5664 = vsel %vm2047, %v5662, %v5663
      %v5665 = vrot.slane %v5663, 4
      %v5666 = vrot.slane %v5535, 5
      %v5667 = vsel %vm2047, %v5665, %v5666
      %v5668 = vrot.slane %v5536, 5
      %v5669 = vrot.slane %v5668, 4
      %v5670 = vrot.slane %v5537, 5
      %v5671 = vsel %vm2047, %v5669, %v5670
      %v5672 = vrot.slane %v5670, 4
      %v5673 = vrot.slane %v5538, 5
      %v5674 = vsel %vm2047, %v5672, %v5673
      %v5675 = vrot.slane %v5539, 5
      %v5676 = vrot.slane %v5675, 4
      %v5677 = vrot.slane %v5540, 5
      %v5678 = vsel %vm2047, %v5676, %v5677
      %v5679 = vrot.slane %v5677, 4
      %v5680 = vrot.slane %v5541, 5
      %v5681 = vsel %vm2047, %v5679, %v5680
      %v5682 = vrot.slane %v5542, 5
      %v5683 = vrot.slane %v5682, 4
      %v5684 = vrot.slane %v5543, 5
      %v5685 = vsel %vm2047, %v5683, %v5684
      %v5686 = vrot.slane %v5684, 4
      %v5687 = vrot.slane %v5544, 5
      %v5688 = vsel %vm2047, %v5686, %v5687
      %v5689 = vrot.slane %v5545, 5
      %v5690 = vrot.slane %v5689, 4
      %v5691 = vrot.slane %v5546, 5
      %v5692 = vsel %vm2047, %v5690, %v5691
      %v5693 = vrot.slane %v5691, 4
      %v5694 = vrot.slane %v5547, 5
      %v5695 = vsel %vm2047, %v5693, %v5694
      %v5696 = vrot.slane %v5548, 5
      %v5697 = vrot.slane %v5696, 4
      %v5698 = vrot.slane %v5549, 5
      %v5699 = vsel %vm2047, %v5697, %v5698
      %v5700 = vrot.slane %v5698, 4
      %v5701 = vrot.slane %v5550, 5
      %v5702 = vsel %vm2047, %v5700, %v5701
      %v5703 = vrot.slane %v5551, 5
      %v5704 = vrot.slane %v5703, 4
      %v5705 = vrot.slane %v5552, 5
      %v5706 = vsel %vm2047, %v5704, %v5705
      %v5707 = vrot.slane %v5705, 4
      %v5708 = vrot.slane %v5553, 5
      %v5709 = vsel %vm2047, %v5707, %v5708
      %v5710 = vrot.slane %v5554, 5
      %v5711 = vrot.slane %v5710, 4
      %v5712 = vrot.slane %v5555, 5
      %v5713 = vsel %vm2047, %v5711, %v5712
      %v5714 = vrot.slane %v5712, 4
      %v5715 = vrot.slane %v5556, 5
      %v5716 = vsel %vm2047, %v5714, %v5715
      %v5717 = vld [vmem:[#allocation3] sm:$0xff]
      %v5718 = vld [vmem:[#allocation3 + $0x8] sm:$0xff]
      %v5719 = vld [vmem:[#allocation3 + $0x10] sm:$0xff]
      %v5720 = vld [vmem:[#allocation3 + $0x18] sm:$0xff]
      %v5721 = vld [vmem:[#allocation3 + $0x20] sm:$0xff]
      %v5722 = vld [vmem:[#allocation3 + $0x28] sm:$0xff]
      %v5723 = vld [vmem:[#allocation3 + $0x30] sm:$0xff]
      %v5724 = vld [vmem:[#allocation3 + $0x38] sm:$0xff]
      %v5725 = vld [vmem:[#allocation3 + $0x40] sm:$0xff]
      %v5726 = vld [vmem:[#allocation3 + $0x48] sm:$0xff]
      %v5727 = vld [vmem:[#allocation3 + $0x50] sm:$0xff]
      %v5728 = vld [vmem:[#allocation3 + $0x58] sm:$0xff]
      %v5729 = vld [vmem:[#allocation3 + $0x60] sm:$0xff]
      %v5730 = vld [vmem:[#allocation3 + $0x68] sm:$0xff]
      %v5731 = vld [vmem:[#allocation3 + $0x70] sm:$0xff]
      %v5732 = vld [vmem:[#allocation3 + $0x78] sm:$0xff]
      %v5733 = vld [vmem:[#allocation3 + $0x80] sm:$0xff]
      %v5734 = vld [vmem:[#allocation3 + $0x88] sm:$0xff]
      %v5735 = vld [vmem:[#allocation3 + $0x90] sm:$0xff]
      %v5736 = vld [vmem:[#allocation3 + $0x98] sm:$0xff]
      %v5737 = vld [vmem:[#allocation3 + $0xa0] sm:$0xff]
      %v5738 = vld [vmem:[#allocation3 + $0xa8] sm:$0xff]
      %v5739 = vld [vmem:[#allocation3 + $0xb0] sm:$0xff]
      %v5740 = vld [vmem:[#allocation3 + $0xb8] sm:$0xff]
      %v5741 = vld [vmem:[#allocation3 + $0xc0] sm:$0xff]
      %v5742 = vld [vmem:[#allocation3 + $0xc8] sm:$0xff]
      %v5743 = vld [vmem:[#allocation3 + $0xd0] sm:$0xff]
      %v5744 = vld [vmem:[#allocation3 + $0xd8] sm:$0xff]
      %v5745 = vld [vmem:[#allocation3 + $0xe0] sm:$0xff]
      %v5746 = vld [vmem:[#allocation3 + $0xe8] sm:$0xff]
      %v5747 = vld [vmem:[#allocation3 + $0xf0] sm:$0xff]
      %v5748 = vld [vmem:[#allocation3 + $0xf8] sm:$0xff]
      %s5749 = scalar_lea.vmem %s1, 32
      %v5750 = vld [vmem:[%s5749] sm:$0xf]
      %v5751 = vunpack.c.l.b16 %v5608
      %v5752 = vunpack.c.l.b16 %v5611
      %v5753 = vunpack.c.l.b16 %v5615
      %v5754 = vunpack.c.l.b16 %v5618
      %v5755 = vunpack.c.l.b16 %v5622
      %v5756 = vunpack.c.l.b16 %v5625
      %v5757 = vunpack.c.l.b16 %v5629
      %v5758 = vunpack.c.l.b16 %v5632
      %v5759 = vunpack.c.l.b16 %v5636
      %v5760 = vunpack.c.l.b16 %v5639
      %v5761 = vunpack.c.l.b16 %v5643
      %v5762 = vunpack.c.l.b16 %v5646
      %v5763 = vunpack.c.l.b16 %v5650
      %v5764 = vunpack.c.l.b16 %v5653
      %v5765 = vunpack.c.l.b16 %v5657
      %v5766 = vunpack.c.l.b16 %v5660
      %v5767 = vunpack.c.l.b16 %v5664
      %v5768 = vunpack.c.l.b16 %v5667
      %v5769 = vunpack.c.l.b16 %v5671
      %v5770 = vunpack.c.l.b16 %v5674
      %v5771 = vunpack.c.l.b16 %v5678
      %v5772 = vunpack.c.l.b16 %v5681
      %v5773 = vunpack.c.l.b16 %v5685
      %v5774 = vunpack.c.l.b16 %v5688
      %v5775 = vunpack.c.l.b16 %v5692
      %v5776 = vunpack.c.l.b16 %v5695
      %v5777 = vunpack.c.l.b16 %v5699
      %v5778 = vunpack.c.l.b16 %v5702
      %v5779 = vunpack.c.l.b16 %v5706
      %v5780 = vunpack.c.l.b16 %v5709
      %v5781 = vunpack.c.l.b16 %v5713
      %v5782 = vunpack.c.l.b16 %v5716
      %v5783 = vpack.c.b16 %v5752, %v5751
      %v5784 = vpack.c.b16 %v5754, %v5753
      %v5785 = vpack.c.b16 %v5756, %v5755
      %v5786 = vpack.c.b16 %v5758, %v5757
      %v5787 = vpack.c.b16 %v5760, %v5759
      %v5788 = vpack.c.b16 %v5762, %v5761
      %v5789 = vpack.c.b16 %v5764, %v5763
      %v5790 = vpack.c.b16 %v5766, %v5765
      %v5791 = vpack.c.b16 %v5768, %v5767
      %v5792 = vpack.c.b16 %v5770, %v5769
      %v5793 = vpack.c.b16 %v5772, %v5771
      %v5794 = vpack.c.b16 %v5774, %v5773
      %v5795 = vpack.c.b16 %v5776, %v5775
      %v5796 = vpack.c.b16 %v5778, %v5777
      %v5797 = vpack.c.b16 %v5780, %v5779
      %v5798 = vpack.c.b16 %v5782, %v5781
      %v5800 = vsel %vm701, %v5783, 0
      %v5803 = vsel %vm701, %v5784, 0
      %v5806 = vsel %vm701, %v5785, 0
      %v5809 = vsel %vm701, %v5786, 0
      %v5812 = vsel %vm701, %v5787, 0
      %v5815 = vsel %vm701, %v5788, 0
      %v5818 = vsel %vm701, %v5789, 0
      %v5821 = vsel %vm701, %v5790, 0
      %v5824 = vsel %vm701, %v5791, 0
      %v5827 = vsel %vm701, %v5792, 0
      %v5830 = vsel %vm701, %v5793, 0
      %v5833 = vsel %vm701, %v5794, 0
      %v5836 = vsel %vm701, %v5795, 0
      %v5839 = vsel %vm701, %v5796, 0
      %v5842 = vsel %vm701, %v5797, 0
      %v5845 = vsel %vm701, %v5798, 0
      %v5848 = vsel %vm927, %v5750, 0
      %5850 = vmatprep.subr.bf16.mxu0 0
      %5851 = vmatpush1.bf16.msra.mxu0 0
      %5852 = vmatprep.subr.bf16.mxu0 0
      %5853 = vmatpush1.bf16.msra.mxu0 0
      %5854 = vmatprep.subr.bf16.mxu0 0
      %5855 = vmatpush1.bf16.msra.mxu0 0
      %5856 = vmatprep.subr.bf16.mxu0 0
      %5857 = vmatpush1.bf16.msra.mxu0 0
      %5858 = vmatprep.subr.bf16.mxu0 0
      %5859 = vmatpush1.bf16.msra.mxu0 0
      %5860 = vmatprep.subr.bf16.mxu0 0
      %5861 = vmatpush1.bf16.msra.mxu0 0
      %5862 = vmatprep.subr.bf16.mxu0 0
      %5863 = vmatpush1.bf16.msra.mxu0 0
      %5864 = vmatprep.subr.bf16.mxu0 0
      %5865 = vmatpush1.bf16.msra.mxu0 %v5848
      %5866 = vmatprep.subr.bf16.mxu0 0
      %5867 = vmatpush2.bf16.msra.mxu0 0
      %5868 = vmatprep.subr.bf16.mxu0 0
      %5869 = vmatpush2.bf16.msra.mxu0 0
      %5870 = vmatprep.subr.bf16.mxu0 0
      %5871 = vmatpush2.bf16.msra.mxu0 0
      %5872 = vmatprep.subr.bf16.mxu0 0
      %5873 = vmatpush2.bf16.msra.mxu0 0
      %5874 = vmatprep.subr.bf16.mxu0 0
      %5875 = vmatpush2.bf16.msra.mxu0 0
      %5876 = vmatprep.subr.bf16.mxu0 0
      %5877 = vmatpush2.bf16.msra.mxu0 0
      %5878 = vmatprep.subr.bf16.mxu0 0
      %5879 = vmatpush2.bf16.msra.mxu0 0
      %5880 = vmatprep.subr.bf16.mxu0 0
      %5881 = vmatpush2.bf16.msra.mxu0 0
      %5882 = vmatprep.mubr.bf16.mxu0 0
      %5883 = vmatmul.mubr.bf16.gmra.mxu0 %v5800
      %v5884 = vpop.f32.mrf.mxu0
      %v5885 = vadd.f32 0.0, %v5884
      %v5886 = vpop.f32.mrf.mxu0
      %v5887 = vpop.f32.mrf.mxu0
      %v5888 = vadd.f32 0.0, %v5887
      %v5889 = vpop.f32.mrf.mxu0
      %5890 = vmatprep.mubr.bf16.mxu0 0
      %5891 = vmatmul.mubr.bf16.gmra.mxu0 %v5803
      %v5892 = vpop.f32.mrf.mxu0
      %v5893 = vadd.f32 0.0, %v5892
      %v5894 = vpop.f32.mrf.mxu0
      %v5895 = vpop.f32.mrf.mxu0
      %v5896 = vadd.f32 0.0, %v5895
      %v5897 = vpop.f32.mrf.mxu0
      %5898 = vmatprep.mubr.bf16.mxu0 0
      %5899 = vmatmul.mubr.bf16.gmra.mxu0 %v5806
      %v5900 = vpop.f32.mrf.mxu0
      %v5901 = vadd.f32 0.0, %v5900
      %v5902 = vpop.f32.mrf.mxu0
      %v5903 = vpop.f32.mrf.mxu0
      %v5904 = vadd.f32 0.0, %v5903
      %v5905 = vpop.f32.mrf.mxu0
      %5906 = vmatprep.mubr.bf16.mxu0 0
      %5907 = vmatmul.mubr.bf16.gmra.mxu0 %v5809
      %v5908 = vpop.f32.mrf.mxu0
      %v5909 = vadd.f32 0.0, %v5908
      %v5910 = vpop.f32.mrf.mxu0
      %v5911 = vpop.f32.mrf.mxu0
      %v5912 = vadd.f32 0.0, %v5911
      %v5913 = vpop.f32.mrf.mxu0
      %5914 = vmatprep.mubr.bf16.mxu0 0
      %5915 = vmatmul.mubr.bf16.gmra.mxu0 %v5812
      %v5916 = vpop.f32.mrf.mxu0
      %v5917 = vadd.f32 0.0, %v5916
      %v5918 = vpop.f32.mrf.mxu0
      %v5919 = vpop.f32.mrf.mxu0
      %v5920 = vadd.f32 0.0, %v5919
      %v5921 = vpop.f32.mrf.mxu0
      %5922 = vmatprep.mubr.bf16.mxu0 0
      %5923 = vmatmul.mubr.bf16.gmra.mxu0 %v5815
      %v5924 = vpop.f32.mrf.mxu0
      %v5925 = vadd.f32 0.0, %v5924
      %v5926 = vpop.f32.mrf.mxu0
      %v5927 = vpop.f32.mrf.mxu0
      %v5928 = vadd.f32 0.0, %v5927
      %v5929 = vpop.f32.mrf.mxu0
      %5930 = vmatprep.mubr.bf16.mxu0 0
      %5931 = vmatmul.mubr.bf16.gmra.mxu0 %v5818
      %v5932 = vpop.f32.mrf.mxu0
      %v5933 = vadd.f32 0.0, %v5932
      %v5934 = vpop.f32.mrf.mxu0
      %v5935 = vpop.f32.mrf.mxu0
      %v5936 = vadd.f32 0.0, %v5935
      %v5937 = vpop.f32.mrf.mxu0
      %5938 = vmatprep.mubr.bf16.mxu0 0
      %5939 = vmatmul.mubr.bf16.gmra.mxu0 %v5821
      %v5940 = vpop.f32.mrf.mxu0
      %v5941 = vadd.f32 0.0, %v5940
      %v5942 = vpop.f32.mrf.mxu0
      %v5943 = vpop.f32.mrf.mxu0
      %v5944 = vadd.f32 0.0, %v5943
      %v5945 = vpop.f32.mrf.mxu0
      %5946 = vmatprep.mubr.bf16.mxu0 0
      %5947 = vmatmul.mubr.bf16.gmra.mxu0 %v5824
      %v5948 = vpop.f32.mrf.mxu0
      %v5949 = vadd.f32 0.0, %v5948
      %v5950 = vpop.f32.mrf.mxu0
      %v5951 = vpop.f32.mrf.mxu0
      %v5952 = vadd.f32 0.0, %v5951
      %v5953 = vpop.f32.mrf.mxu0
      %5954 = vmatprep.mubr.bf16.mxu0 0
      %5955 = vmatmul.mubr.bf16.gmra.mxu0 %v5827
      %v5956 = vpop.f32.mrf.mxu0
      %v5957 = vadd.f32 0.0, %v5956
      %v5958 = vpop.f32.mrf.mxu0
      %v5959 = vpop.f32.mrf.mxu0
      %v5960 = vadd.f32 0.0, %v5959
      %v5961 = vpop.f32.mrf.mxu0
      %5962 = vmatprep.mubr.bf16.mxu0 0
      %5963 = vmatmul.mubr.bf16.gmra.mxu0 %v5830
      %v5964 = vpop.f32.mrf.mxu0
      %v5965 = vadd.f32 0.0, %v5964
      %v5966 = vpop.f32.mrf.mxu0
      %v5967 = vpop.f32.mrf.mxu0
      %v5968 = vadd.f32 0.0, %v5967
      %v5969 = vpop.f32.mrf.mxu0
      %5970 = vmatprep.mubr.bf16.mxu0 0
      %5971 = vmatmul.mubr.bf16.gmra.mxu0 %v5833
      %v5972 = vpop.f32.mrf.mxu0
      %v5973 = vadd.f32 0.0, %v5972
      %v5974 = vpop.f32.mrf.mxu0
      %v5975 = vpop.f32.mrf.mxu0
      %v5976 = vadd.f32 0.0, %v5975
      %v5977 = vpop.f32.mrf.mxu0
      %5978 = vmatprep.mubr.bf16.mxu0 0
      %5979 = vmatmul.mubr.bf16.gmra.mxu0 %v5836
      %v5980 = vpop.f32.mrf.mxu0
      %v5981 = vadd.f32 0.0, %v5980
      %v5982 = vpop.f32.mrf.mxu0
      %v5983 = vpop.f32.mrf.mxu0
      %v5984 = vadd.f32 0.0, %v5983
      %v5985 = vpop.f32.mrf.mxu0
      %5986 = vmatprep.mubr.bf16.mxu0 0
      %5987 = vmatmul.mubr.bf16.gmra.mxu0 %v5839
      %v5988 = vpop.f32.mrf.mxu0
      %v5989 = vadd.f32 0.0, %v5988
      %v5990 = vpop.f32.mrf.mxu0
      %v5991 = vpop.f32.mrf.mxu0
      %v5992 = vadd.f32 0.0, %v5991
      %v5993 = vpop.f32.mrf.mxu0
      %5994 = vmatprep.mubr.bf16.mxu0 0
      %5995 = vmatmul.mubr.bf16.gmra.mxu0 %v5842
      %v5996 = vpop.f32.mrf.mxu0
      %v5997 = vadd.f32 0.0, %v5996
      %v5998 = vpop.f32.mrf.mxu0
      %v5999 = vpop.f32.mrf.mxu0
      %v6000 = vadd.f32 0.0, %v5999
      %v6001 = vpop.f32.mrf.mxu0
      %6002 = vmatprep.mubr.bf16.mxu0 0
      %6003 = vmatmul.mubr.bf16.gmra.mxu0 %v5845
      %v6004 = vpop.f32.mrf.mxu0
      %v6005 = vadd.f32 0.0, %v6004
      %v6006 = vpop.f32.mrf.mxu0
      %v6007 = vpop.f32.mrf.mxu0
      %v6008 = vadd.f32 0.0, %v6007
      %v6009 = vpop.f32.mrf.mxu0
      %6010 = vdwg.mxu0
      %v6011 = vadd.f32 %v5717, %v5885
      %v6012 = vadd.f32 %v5718, %v5888
      %v6013 = vadd.f32 %v5719, %v5893
      %v6014 = vadd.f32 %v5720, %v5896
      %v6015 = vadd.f32 %v5721, %v5901
      %v6016 = vadd.f32 %v5722, %v5904
      %v6017 = vadd.f32 %v5723, %v5909
      %v6018 = vadd.f32 %v5724, %v5912
      %v6019 = vadd.f32 %v5725, %v5917
      %v6020 = vadd.f32 %v5726, %v5920
      %v6021 = vadd.f32 %v5727, %v5925
      %v6022 = vadd.f32 %v5728, %v5928
      %v6023 = vadd.f32 %v5729, %v5933
      %v6024 = vadd.f32 %v5730, %v5936
      %v6025 = vadd.f32 %v5731, %v5941
      %v6026 = vadd.f32 %v5732, %v5944
      %v6027 = vadd.f32 %v5733, %v5949
      %v6028 = vadd.f32 %v5734, %v5952
      %v6029 = vadd.f32 %v5735, %v5957
      %v6030 = vadd.f32 %v5736, %v5960
      %v6031 = vadd.f32 %v5737, %v5965
      %v6032 = vadd.f32 %v5738, %v5968
      %v6033 = vadd.f32 %v5739, %v5973
      %v6034 = vadd.f32 %v5740, %v5976
      %v6035 = vadd.f32 %v5741, %v5981
      %v6036 = vadd.f32 %v5742, %v5984
      %v6037 = vadd.f32 %v5743, %v5989
      %v6038 = vadd.f32 %v5744, %v5992
      %v6039 = vadd.f32 %v5745, %v5997
      %v6040 = vadd.f32 %v5746, %v6000
      %v6041 = vadd.f32 %v5747, %v6005
      %v6042 = vadd.f32 %v5748, %v6008
      %6043 = vst.msk [vmem:[#allocation3] sm:$0xff] %vm701, %v6011
      %6044 = vst.msk [vmem:[#allocation3 + $0x8] sm:$0xff] %vm701, %v6012
      %6045 = vst.msk [vmem:[#allocation3 + $0x10] sm:$0xff] %vm701, %v6013
      %6046 = vst.msk [vmem:[#allocation3 + $0x18] sm:$0xff] %vm701, %v6014
      %6047 = vst.msk [vmem:[#allocation3 + $0x20] sm:$0xff] %vm701, %v6015
      %6048 = vst.msk [vmem:[#allocation3 + $0x28] sm:$0xff] %vm701, %v6016
      %6049 = vst.msk [vmem:[#allocation3 + $0x30] sm:$0xff] %vm701, %v6017
      %6050 = vst.msk [vmem:[#allocation3 + $0x38] sm:$0xff] %vm701, %v6018
      %6051 = vst.msk [vmem:[#allocation3 + $0x40] sm:$0xff] %vm701, %v6019
      %6052 = vst.msk [vmem:[#allocation3 + $0x48] sm:$0xff] %vm701, %v6020
      %6053 = vst.msk [vmem:[#allocation3 + $0x50] sm:$0xff] %vm701, %v6021
      %6054 = vst.msk [vmem:[#allocation3 + $0x58] sm:$0xff] %vm701, %v6022
      %6055 = vst.msk [vmem:[#allocation3 + $0x60] sm:$0xff] %vm701, %v6023
      %6056 = vst.msk [vmem:[#allocation3 + $0x68] sm:$0xff] %vm701, %v6024
      %6057 = vst.msk [vmem:[#allocation3 + $0x70] sm:$0xff] %vm701, %v6025
      %6058 = vst.msk [vmem:[#allocation3 + $0x78] sm:$0xff] %vm701, %v6026
      %6059 = vst.msk [vmem:[#allocation3 + $0x80] sm:$0xff] %vm701, %v6027
      %6060 = vst.msk [vmem:[#allocation3 + $0x88] sm:$0xff] %vm701, %v6028
      %6061 = vst.msk [vmem:[#allocation3 + $0x90] sm:$0xff] %vm701, %v6029
      %6062 = vst.msk [vmem:[#allocation3 + $0x98] sm:$0xff] %vm701, %v6030
      %6063 = vst.msk [vmem:[#allocation3 + $0xa0] sm:$0xff] %vm701, %v6031
      %6064 = vst.msk [vmem:[#allocation3 + $0xa8] sm:$0xff] %vm701, %v6032
      %6065 = vst.msk [vmem:[#allocation3 + $0xb0] sm:$0xff] %vm701, %v6033
      %6066 = vst.msk [vmem:[#allocation3 + $0xb8] sm:$0xff] %vm701, %v6034
      %6067 = vst.msk [vmem:[#allocation3 + $0xc0] sm:$0xff] %vm701, %v6035
      %6068 = vst.msk [vmem:[#allocation3 + $0xc8] sm:$0xff] %vm701, %v6036
      %6069 = vst.msk [vmem:[#allocation3 + $0xd0] sm:$0xff] %vm701, %v6037
      %6070 = vst.msk [vmem:[#allocation3 + $0xd8] sm:$0xff] %vm701, %v6038
      %6071 = vst.msk [vmem:[#allocation3 + $0xe0] sm:$0xff] %vm701, %v6039
      %6072 = vst.msk [vmem:[#allocation3 + $0xe8] sm:$0xff] %vm701, %v6040
      %6073 = vst.msk [vmem:[#allocation3 + $0xf0] sm:$0xff] %vm701, %v6041
      %6074 = vst.msk [vmem:[#allocation3 + $0xf8] sm:$0xff] %vm701, %v6042
      %v6075 = vld [vmem:[#allocation3] sm:$0xff]
      %v6076 = vld [vmem:[#allocation3 + $0x8] sm:$0xff]
      %v6077 = vld [vmem:[#allocation3 + $0x10] sm:$0xff]
      %v6078 = vld [vmem:[#allocation3 + $0x18] sm:$0xff]
      %v6079 = vld [vmem:[#allocation3 + $0x20] sm:$0xff]
      %v6080 = vld [vmem:[#allocation3 + $0x28] sm:$0xff]
      %v6081 = vld [vmem:[#allocation3 + $0x30] sm:$0xff]
      %v6082 = vld [vmem:[#allocation3 + $0x38] sm:$0xff]
      %v6083 = vld [vmem:[#allocation3 + $0x40] sm:$0xff]
      %v6084 = vld [vmem:[#allocation3 + $0x48] sm:$0xff]
      %v6085 = vld [vmem:[#allocation3 + $0x50] sm:$0xff]
      %v6086 = vld [vmem:[#allocation3 + $0x58] sm:$0xff]
      %v6087 = vld [vmem:[#allocation3 + $0x60] sm:$0xff]
      %v6088 = vld [vmem:[#allocation3 + $0x68] sm:$0xff]
      %v6089 = vld [vmem:[#allocation3 + $0x70] sm:$0xff]
      %v6090 = vld [vmem:[#allocation3 + $0x78] sm:$0xff]
      %v6091 = vld [vmem:[#allocation3 + $0x80] sm:$0xff]
      %v6092 = vld [vmem:[#allocation3 + $0x88] sm:$0xff]
      %v6093 = vld [vmem:[#allocation3 + $0x90] sm:$0xff]
      %v6094 = vld [vmem:[#allocation3 + $0x98] sm:$0xff]
      %v6095 = vld [vmem:[#allocation3 + $0xa0] sm:$0xff]
      %v6096 = vld [vmem:[#allocation3 + $0xa8] sm:$0xff]
      %v6097 = vld [vmem:[#allocation3 + $0xb0] sm:$0xff]
      %v6098 = vld [vmem:[#allocation3 + $0xb8] sm:$0xff]
      %v6099 = vld [vmem:[#allocation3 + $0xc0] sm:$0xff]
      %v6100 = vld [vmem:[#allocation3 + $0xc8] sm:$0xff]
      %v6101 = vld [vmem:[#allocation3 + $0xd0] sm:$0xff]
      %v6102 = vld [vmem:[#allocation3 + $0xd8] sm:$0xff]
      %v6103 = vld [vmem:[#allocation3 + $0xe0] sm:$0xff]
      %v6104 = vld [vmem:[#allocation3 + $0xe8] sm:$0xff]
      %v6105 = vld [vmem:[#allocation3 + $0xf0] sm:$0xff]
      %v6106 = vld [vmem:[#allocation3 + $0xf8] sm:$0xff]
      %v6107 = vld [vmem:[%s2] sm:$0x1]
      %v6109 = vlaneseq
      %v6110 = vshrl.u32 %v6109, 7
      %v6111 = vsub.s32 0, %v6110
      %v6112 = vrot.slane %v6107, %v6111
      %v6114 = vadd.f32 %v6075, %v6112
      %v6115 = vadd.f32 %v6076, %v6112
      %v6116 = vadd.f32 %v6077, %v6112
      %v6117 = vadd.f32 %v6078, %v6112
      %v6118 = vadd.f32 %v6079, %v6112
      %v6119 = vadd.f32 %v6080, %v6112
      %v6120 = vadd.f32 %v6081, %v6112
      %v6121 = vadd.f32 %v6082, %v6112
      %v6122 = vadd.f32 %v6083, %v6112
      %v6123 = vadd.f32 %v6084, %v6112
      %v6124 = vadd.f32 %v6085, %v6112
      %v6125 = vadd.f32 %v6086, %v6112
      %v6126 = vadd.f32 %v6087, %v6112
      %v6127 = vadd.f32 %v6088, %v6112
      %v6128 = vadd.f32 %v6089, %v6112
      %v6129 = vadd.f32 %v6090, %v6112
      %v6130 = vadd.f32 %v6091, %v6112
      %v6131 = vadd.f32 %v6092, %v6112
      %v6132 = vadd.f32 %v6093, %v6112
      %v6133 = vadd.f32 %v6094, %v6112
      %v6134 = vadd.f32 %v6095, %v6112
      %v6135 = vadd.f32 %v6096, %v6112
      %v6136 = vadd.f32 %v6097, %v6112
      %v6137 = vadd.f32 %v6098, %v6112
      %v6138 = vadd.f32 %v6099, %v6112
      %v6139 = vadd.f32 %v6100, %v6112
      %v6140 = vadd.f32 %v6101, %v6112
      %v6141 = vadd.f32 %v6102, %v6112
      %v6142 = vadd.f32 %v6103, %v6112
      %v6143 = vadd.f32 %v6104, %v6112
      %v6144 = vadd.f32 %v6105, %v6112
      %v6145 = vadd.f32 %v6106, %v6112
      %v6146 = vxor.u32 %v6114, 2147483648
      %v6147 = vxor.u32 %v6115, 2147483648
      %v6148 = vxor.u32 %v6116, 2147483648
      %v6149 = vxor.u32 %v6117, 2147483648
      %v6150 = vxor.u32 %v6118, 2147483648
      %v6151 = vxor.u32 %v6119, 2147483648
      %v6152 = vxor.u32 %v6120, 2147483648
      %v6153 = vxor.u32 %v6121, 2147483648
      %v6154 = vxor.u32 %v6122, 2147483648
      %v6155 = vxor.u32 %v6123, 2147483648
      %v6156 = vxor.u32 %v6124, 2147483648
      %v6157 = vxor.u32 %v6125, 2147483648
      %v6158 = vxor.u32 %v6126, 2147483648
      %v6159 = vxor.u32 %v6127, 2147483648
      %v6160 = vxor.u32 %v6128, 2147483648
      %v6161 = vxor.u32 %v6129, 2147483648
      %v6162 = vxor.u32 %v6130, 2147483648
      %v6163 = vxor.u32 %v6131, 2147483648
      %v6164 = vxor.u32 %v6132, 2147483648
      %v6165 = vxor.u32 %v6133, 2147483648
      %v6166 = vxor.u32 %v6134, 2147483648
      %v6167 = vxor.u32 %v6135, 2147483648
      %v6168 = vxor.u32 %v6136, 2147483648
      %v6169 = vxor.u32 %v6137, 2147483648
      %v6170 = vxor.u32 %v6138, 2147483648
      %v6171 = vxor.u32 %v6139, 2147483648
      %v6172 = vxor.u32 %v6140, 2147483648
      %v6173 = vxor.u32 %v6141, 2147483648
      %v6174 = vxor.u32 %v6142, 2147483648
      %v6175 = vxor.u32 %v6143, 2147483648
      %v6176 = vxor.u32 %v6144, 2147483648
      %v6177 = vxor.u32 %v6145, 2147483648
      %v6178 = vmul.f32 %v6146, 1.442695
      %v6179 = vpow.pop %v6178
      %v6180 = vmul.f32 %v6147, 1.442695
      %v6181 = vpow.pop %v6180
      %v6182 = vmul.f32 %v6148, 1.442695
      %v6183 = vpow.pop %v6182
      %v6184 = vmul.f32 %v6149, 1.442695
      %v6185 = vpow.pop %v6184
      %v6186 = vmul.f32 %v6150, 1.442695
      %v6187 = vpow.pop %v6186
      %v6188 = vmul.f32 %v6151, 1.442695
      %v6189 = vpow.pop %v6188
      %v6190 = vmul.f32 %v6152, 1.442695
      %v6191 = vpow.pop %v6190
      %v6192 = vmul.f32 %v6153, 1.442695
      %v6193 = vpow.pop %v6192
      %v6194 = vmul.f32 %v6154, 1.442695
      %v6195 = vpow.pop %v6194
      %v6196 = vmul.f32 %v6155, 1.442695
      %v6197 = vpow.pop %v6196
      %v6198 = vmul.f32 %v6156, 1.442695
      %v6199 = vpow.pop %v6198
      %v6200 = vmul.f32 %v6157, 1.442695
      %v6201 = vpow.pop %v6200
      %v6202 = vmul.f32 %v6158, 1.442695
      %v6203 = vpow.pop %v6202
      %v6204 = vmul.f32 %v6159, 1.442695
      %v6205 = vpow.pop %v6204
      %v6206 = vmul.f32 %v6160, 1.442695
      %v6207 = vpow.pop %v6206
      %v6208 = vmul.f32 %v6161, 1.442695
      %v6209 = vpow.pop %v6208
      %v6210 = vmul.f32 %v6162, 1.442695
      %v6211 = vpow.pop %v6210
      %v6212 = vmul.f32 %v6163, 1.442695
      %v6213 = vpow.pop %v6212
      %v6214 = vmul.f32 %v6164, 1.442695
      %v6215 = vpow.pop %v6214
      %v6216 = vmul.f32 %v6165, 1.442695
      %v6217 = vpow.pop %v6216
      %v6218 = vmul.f32 %v6166, 1.442695
      %v6219 = vpow.pop %v6218
      %v6220 = vmul.f32 %v6167, 1.442695
      %v6221 = vpow.pop %v6220
      %v6222 = vmul.f32 %v6168, 1.442695
      %v6223 = vpow.pop %v6222
      %v6224 = vmul.f32 %v6169, 1.442695
      %v6225 = vpow.pop %v6224
      %v6226 = vmul.f32 %v6170, 1.442695
      %v6227 = vpow.pop %v6226
      %v6228 = vmul.f32 %v6171, 1.442695
      %v6229 = vpow.pop %v6228
      %v6230 = vmul.f32 %v6172, 1.442695
      %v6231 = vpow.pop %v6230
      %v6232 = vmul.f32 %v6173, 1.442695
      %v6233 = vpow.pop %v6232
      %v6234 = vmul.f32 %v6174, 1.442695
      %v6235 = vpow.pop %v6234
      %v6236 = vmul.f32 %v6175, 1.442695
      %v6237 = vpow.pop %v6236
      %v6238 = vmul.f32 %v6176, 1.442695
      %v6239 = vpow.pop %v6238
      %v6240 = vmul.f32 %v6177, 1.442695
      %v6241 = vpow.pop %v6240
      %v6242 = vadd.f32 %v6179, 1.0
      %v6243 = vadd.f32 %v6181, 1.0
      %v6244 = vadd.f32 %v6183, 1.0
      %v6245 = vadd.f32 %v6185, 1.0
      %v6246 = vadd.f32 %v6187, 1.0
      %v6247 = vadd.f32 %v6189, 1.0
      %v6248 = vadd.f32 %v6191, 1.0
      %v6249 = vadd.f32 %v6193, 1.0
      %v6250 = vadd.f32 %v6195, 1.0
      %v6251 = vadd.f32 %v6197, 1.0
      %v6252 = vadd.f32 %v6199, 1.0
      %v6253 = vadd.f32 %v6201, 1.0
      %v6254 = vadd.f32 %v6203, 1.0
      %v6255 = vadd.f32 %v6205, 1.0
      %v6256 = vadd.f32 %v6207, 1.0
      %v6257 = vadd.f32 %v6209, 1.0
      %v6258 = vadd.f32 %v6211, 1.0
      %v6259 = vadd.f32 %v6213, 1.0
      %v6260 = vadd.f32 %v6215, 1.0
      %v6261 = vadd.f32 %v6217, 1.0
      %v6262 = vadd.f32 %v6219, 1.0
      %v6263 = vadd.f32 %v6221, 1.0
      %v6264 = vadd.f32 %v6223, 1.0
      %v6265 = vadd.f32 %v6225, 1.0
      %v6266 = vadd.f32 %v6227, 1.0
      %v6267 = vadd.f32 %v6229, 1.0
      %v6268 = vadd.f32 %v6231, 1.0
      %v6269 = vadd.f32 %v6233, 1.0
      %v6270 = vadd.f32 %v6235, 1.0
      %v6271 = vadd.f32 %v6237, 1.0
      %v6272 = vadd.f32 %v6239, 1.0
      %v6273 = vadd.f32 %v6241, 1.0
      %v6274 = vrcp.pop %v6242
      %v6275 = vmul.f32 1.0, %v6274
      %v6276 = vrcp.pop %v6243
      %v6277 = vmul.f32 1.0, %v6276
      %v6278 = vrcp.pop %v6244
      %v6279 = vmul.f32 1.0, %v6278
      %v6280 = vrcp.pop %v6245
      %v6281 = vmul.f32 1.0, %v6280
      %v6282 = vrcp.pop %v6246
      %v6283 = vmul.f32 1.0, %v6282
      %v6284 = vrcp.pop %v6247
      %v6285 = vmul.f32 1.0, %v6284
      %v6286 = vrcp.pop %v6248
      %v6287 = vmul.f32 1.0, %v6286
      %v6288 = vrcp.pop %v6249
      %v6289 = vmul.f32 1.0, %v6288
      %v6290 = vrcp.pop %v6250
      %v6291 = vmul.f32 1.0, %v6290
      %v6292 = vrcp.pop %v6251
      %v6293 = vmul.f32 1.0, %v6292
      %v6294 = vrcp.pop %v6252
      %v6295 = vmul.f32 1.0, %v6294
      %v6296 = vrcp.pop %v6253
      %v6297 = vmul.f32 1.0, %v6296
      %v6298 = vrcp.pop %v6254
      %v6299 = vmul.f32 1.0, %v6298
      %v6300 = vrcp.pop %v6255
      %v6301 = vmul.f32 1.0, %v6300
      %v6302 = vrcp.pop %v6256
      %v6303 = vmul.f32 1.0, %v6302
      %v6304 = vrcp.pop %v6257
      %v6305 = vmul.f32 1.0, %v6304
      %v6306 = vrcp.pop %v6258
      %v6307 = vmul.f32 1.0, %v6306
      %v6308 = vrcp.pop %v6259
      %v6309 = vmul.f32 1.0, %v6308
      %v6310 = vrcp.pop %v6260
      %v6311 = vmul.f32 1.0, %v6310
      %v6312 = vrcp.pop %v6261
      %v6313 = vmul.f32 1.0, %v6312
      %v6314 = vrcp.pop %v6262
      %v6315 = vmul.f32 1.0, %v6314
      %v6316 = vrcp.pop %v6263
      %v6317 = vmul.f32 1.0, %v6316
      %v6318 = vrcp.pop %v6264
      %v6319 = vmul.f32 1.0, %v6318
      %v6320 = vrcp.pop %v6265
      %v6321 = vmul.f32 1.0, %v6320
      %v6322 = vrcp.pop %v6266
      %v6323 = vmul.f32 1.0, %v6322
      %v6324 = vrcp.pop %v6267
      %v6325 = vmul.f32 1.0, %v6324
      %v6326 = vrcp.pop %v6268
      %v6327 = vmul.f32 1.0, %v6326
      %v6328 = vrcp.pop %v6269
      %v6329 = vmul.f32 1.0, %v6328
      %v6330 = vrcp.pop %v6270
      %v6331 = vmul.f32 1.0, %v6330
      %v6332 = vrcp.pop %v6271
      %v6333 = vmul.f32 1.0, %v6332
      %v6334 = vrcp.pop %v6272
      %v6335 = vmul.f32 1.0, %v6334
      %v6336 = vrcp.pop %v6273
      %v6337 = vmul.f32 1.0, %v6336
      %v6338 = vmul.f32 %v6114, %v6275
      %v6339 = vmul.f32 %v6115, %v6277
      %v6340 = vmul.f32 %v6116, %v6279
      %v6341 = vmul.f32 %v6117, %v6281
      %v6342 = vmul.f32 %v6118, %v6283
      %v6343 = vmul.f32 %v6119, %v6285
      %v6344 = vmul.f32 %v6120, %v6287
      %v6345 = vmul.f32 %v6121, %v6289
      %v6346 = vmul.f32 %v6122, %v6291
      %v6347 = vmul.f32 %v6123, %v6293
      %v6348 = vmul.f32 %v6124, %v6295
      %v6349 = vmul.f32 %v6125, %v6297
      %v6350 = vmul.f32 %v6126, %v6299
      %v6351 = vmul.f32 %v6127, %v6301
      %v6352 = vmul.f32 %v6128, %v6303
      %v6353 = vmul.f32 %v6129, %v6305
      %v6354 = vmul.f32 %v6130, %v6307
      %v6355 = vmul.f32 %v6131, %v6309
      %v6356 = vmul.f32 %v6132, %v6311
      %v6357 = vmul.f32 %v6133, %v6313
      %v6358 = vmul.f32 %v6134, %v6315
      %v6359 = vmul.f32 %v6135, %v6317
      %v6360 = vmul.f32 %v6136, %v6319
      %v6361 = vmul.f32 %v6137, %v6321
      %v6362 = vmul.f32 %v6138, %v6323
      %v6363 = vmul.f32 %v6139, %v6325
      %v6364 = vmul.f32 %v6140, %v6327
      %v6365 = vmul.f32 %v6141, %v6329
      %v6366 = vmul.f32 %v6142, %v6331
      %v6367 = vmul.f32 %v6143, %v6333
      %v6368 = vmul.f32 %v6144, %v6335
      %v6369 = vmul.f32 %v6145, %v6337
      %v6370 = vpack.c.bf16 %v6339, %v6338
      %v6371 = vpack.c.bf16 %v6341, %v6340
      %v6372 = vpack.c.bf16 %v6343, %v6342
      %v6373 = vpack.c.bf16 %v6345, %v6344
      %v6374 = vpack.c.bf16 %v6347, %v6346
      %v6375 = vpack.c.bf16 %v6349, %v6348
      %v6376 = vpack.c.bf16 %v6351, %v6350
      %v6377 = vpack.c.bf16 %v6353, %v6352
      %v6378 = vpack.c.bf16 %v6355, %v6354
      %v6379 = vpack.c.bf16 %v6357, %v6356
      %v6380 = vpack.c.bf16 %v6359, %v6358
      %v6381 = vpack.c.bf16 %v6361, %v6360
      %v6382 = vpack.c.bf16 %v6363, %v6362
      %v6383 = vpack.c.bf16 %v6365, %v6364
      %v6384 = vpack.c.bf16 %v6367, %v6366
      %v6385 = vpack.c.bf16 %v6369, %v6368
      %v6402 = vunpack.c.l.b16 %v6370
      %v6403 = vunpack.c.h.b16 %v6370
      %v6404 = vunpack.c.l.b16 %v6371
      %v6405 = vunpack.c.h.b16 %v6371
      %v6406 = vunpack.c.l.b16 %v6372
      %v6407 = vunpack.c.h.b16 %v6372
      %v6408 = vunpack.c.l.b16 %v6373
      %v6409 = vunpack.c.h.b16 %v6373
      %v6410 = vunpack.c.l.b16 %v6374
      %v6411 = vunpack.c.h.b16 %v6374
      %v6412 = vunpack.c.l.b16 %v6375
      %v6413 = vunpack.c.h.b16 %v6375
      %v6414 = vunpack.c.l.b16 %v6376
      %v6415 = vunpack.c.h.b16 %v6376
      %v6416 = vunpack.c.l.b16 %v6377
      %v6417 = vunpack.c.h.b16 %v6377
      %v6418 = vunpack.c.l.b16 %v6378
      %v6419 = vunpack.c.h.b16 %v6378
      %v6420 = vunpack.c.l.b16 %v6379
      %v6421 = vunpack.c.h.b16 %v6379
      %v6422 = vunpack.c.l.b16 %v6380
      %v6423 = vunpack.c.h.b16 %v6380
      %v6424 = vunpack.c.l.b16 %v6381
      %v6425 = vunpack.c.h.b16 %v6381
      %v6426 = vunpack.c.l.b16 %v6382
      %v6427 = vunpack.c.h.b16 %v6382
      %v6428 = vunpack.c.l.b16 %v6383
      %v6429 = vunpack.c.h.b16 %v6383
      %v6430 = vunpack.c.l.b16 %v6384
      %v6431 = vunpack.c.h.b16 %v6384
      %v6432 = vunpack.c.l.b16 %v6385
      %v6433 = vunpack.c.h.b16 %v6385
      %v6434 = vpack.c.b16 %v6402, %v6402
      %v6435 = vpack.c.b16 %v6403, %v6403
      %v6436 = vpack.c.b16 %v6404, %v6404
      %v6437 = vpack.c.b16 %v6405, %v6405
      %v6438 = vpack.c.b16 %v6406, %v6406
      %v6439 = vpack.c.b16 %v6407, %v6407
      %v6440 = vpack.c.b16 %v6408, %v6408
      %v6441 = vpack.c.b16 %v6409, %v6409
      %v6442 = vpack.c.b16 %v6410, %v6410
      %v6443 = vpack.c.b16 %v6411, %v6411
      %v6444 = vpack.c.b16 %v6412, %v6412
      %v6445 = vpack.c.b16 %v6413, %v6413
      %v6446 = vpack.c.b16 %v6414, %v6414
      %v6447 = vpack.c.b16 %v6415, %v6415
      %v6448 = vpack.c.b16 %v6416, %v6416
      %v6449 = vpack.c.b16 %v6417, %v6417
      %v6450 = vpack.c.b16 %v6418, %v6418
      %v6451 = vpack.c.b16 %v6419, %v6419
      %v6452 = vpack.c.b16 %v6420, %v6420
      %v6453 = vpack.c.b16 %v6421, %v6421
      %v6454 = vpack.c.b16 %v6422, %v6422
      %v6455 = vpack.c.b16 %v6423, %v6423
      %v6456 = vpack.c.b16 %v6424, %v6424
      %v6457 = vpack.c.b16 %v6425, %v6425
      %v6458 = vpack.c.b16 %v6426, %v6426
      %v6459 = vpack.c.b16 %v6427, %v6427
      %v6460 = vpack.c.b16 %v6428, %v6428
      %v6461 = vpack.c.b16 %v6429, %v6429
      %v6462 = vpack.c.b16 %v6430, %v6430
      %v6463 = vpack.c.b16 %v6431, %v6431
      %v6464 = vpack.c.b16 %v6432, %v6432
      %v6465 = vpack.c.b16 %v6433, %v6433
      %6498 = vst.msk [vmem:[%s170] sm:$0xf] %vm172, %v6434
      %6499 = vst.msk [vmem:[%s170 + $0x4] sm:$0xf] %vm172, %v6435
      %6500 = vst.msk [vmem:[%s170 + $0x8] sm:$0xf] %vm172, %v6436
      %6501 = vst.msk [vmem:[%s170 + $0xc] sm:$0xf] %vm172, %v6437
      %6502 = vst.msk [vmem:[%s170 + $0x10] sm:$0xf] %vm172, %v6438
      %6503 = vst.msk [vmem:[%s170 + $0x14] sm:$0xf] %vm172, %v6439
      %6504 = vst.msk [vmem:[%s170 + $0x18] sm:$0xf] %vm172, %v6440
      %6505 = vst.msk [vmem:[%s170 + $0x1c] sm:$0xf] %vm172, %v6441
      %6506 = vst.msk [vmem:[%s170 + $0x20] sm:$0xf] %vm172, %v6442
      %6507 = vst.msk [vmem:[%s170 + $0x24] sm:$0xf] %vm172, %v6443
      %6508 = vst.msk [vmem:[%s170 + $0x28] sm:$0xf] %vm172, %v6444
      %6509 = vst.msk [vmem:[%s170 + $0x2c] sm:$0xf] %vm172, %v6445
      %6510 = vst.msk [vmem:[%s170 + $0x30] sm:$0xf] %vm172, %v6446
      %6511 = vst.msk [vmem:[%s170 + $0x34] sm:$0xf] %vm172, %v6447
      %6512 = vst.msk [vmem:[%s170 + $0x38] sm:$0xf] %vm172, %v6448
      %6513 = vst.msk [vmem:[%s170 + $0x3c] sm:$0xf] %vm172, %v6449
      %6514 = vst.msk [vmem:[%s170 + $0x40] sm:$0xf] %vm172, %v6450
      %6515 = vst.msk [vmem:[%s170 + $0x44] sm:$0xf] %vm172, %v6451
      %6516 = vst.msk [vmem:[%s170 + $0x48] sm:$0xf] %vm172, %v6452
      %6517 = vst.msk [vmem:[%s170 + $0x4c] sm:$0xf] %vm172, %v6453
      %6518 = vst.msk [vmem:[%s170 + $0x50] sm:$0xf] %vm172, %v6454
      %6519 = vst.msk [vmem:[%s170 + $0x54] sm:$0xf] %vm172, %v6455
      %6520 = vst.msk [vmem:[%s170 + $0x58] sm:$0xf] %vm172, %v6456
      %6521 = vst.msk [vmem:[%s170 + $0x5c] sm:$0xf] %vm172, %v6457
      %6522 = vst.msk [vmem:[%s170 + $0x60] sm:$0xf] %vm172, %v6458
      %6523 = vst.msk [vmem:[%s170 + $0x64] sm:$0xf] %vm172, %v6459
      %6524 = vst.msk [vmem:[%s170 + $0x68] sm:$0xf] %vm172, %v6460
      %6525 = vst.msk [vmem:[%s170 + $0x6c] sm:$0xf] %vm172, %v6461
      %6526 = vst.msk [vmem:[%s170 + $0x70] sm:$0xf] %vm172, %v6462
      %6527 = vst.msk [vmem:[%s170 + $0x74] sm:$0xf] %vm172, %v6463
      %6528 = vst.msk [vmem:[%s170 + $0x78] sm:$0xf] %vm172, %v6464
      %6529 = vst.msk [vmem:[%s170 + $0x7c] sm:$0xf] %vm172, %v6465
      %p6530 = scmp.lt.s32.totalorder %s14, 1
      %s6531 = scalar_select %p6530, %s14, 1
      %s6532 = smul.addr %s6531, 32
      %s6533 = smul.addr %s6532, 4
      %s6534 = scalar_lea.vmem %s3, %s6533
      // Predicated region
      $region33: #{tpu_custom_call.1} parent=31 // pred_check
        %p6535 = pneg %p100
      $region34: #{tpu_custom_call.1} parent=31 // pred_check_branch
        %6537 = sbr.rel (%p6535) target = $region36
      $region35: #{tpu_custom_call.1} parent=31 // pred_region
        _
      $region36: #{tpu_custom_call.1} parent=31 // pred_fallthru
        _
    $region32: #{tpu_custom_call.1} parent=5 // pred_fallthru
      _
    %p6538 = scmp.le.s32.totalorder 2, %s9
    // Predicated region
    $region37: #{tpu_custom_call.1} parent=5 // pred_check
      %p6539 = pneg %p6538
    $region38: #{tpu_custom_call.1} parent=5 // pred_check_branch
      %6541 = sbr.rel (%p6539) target = $region40
    $region39: #{tpu_custom_call.1} parent=5 // pred_region
      %s6542 = ssub.s32 %s9, 2
      // Predicated region
      $region41: #{tpu_custom_call.1} parent=39 // pred_check
        %p6543 = pneg %p106
      $region42: #{tpu_custom_call.1} parent=39 // pred_check_branch
        %6545 = sbr.rel (%p6543) target = $region44
      $region43: #{tpu_custom_call.1} parent=39 // pred_region
        %p6546 = scmp.lt.s32.totalorder %s15, 1
        %s6547 = scalar_select %p6546, %s15, 1
        %s6548 = smul.addr %s6547, 32
        %s6549 = smul.addr %s6548, 4
        %s6550 = scalar_lea.vmem %s3, %s6549
      $region44: #{tpu_custom_call.1} parent=39 // pred_fallthru
        _
    $region40: #{tpu_custom_call.1} parent=5 // pred_fallthru
      _
  $region6: #{tpu_custom_call.1} parent=0 // loop_footer
    %s13 = sadd.s32 1, %s9
  $region7: #{tpu_custom_call.1} parent=0 // loop_footer_branch
    %8 = sbr.rel target = $region3
  $region8: #{tpu_custom_call.1} parent=0 // loop_exit
    _

</llo_original>
